<compile_context>
chip_gen: v7x
topology: tpu7x:2x2x1
jax: 0.10.0
libtpu: 0.0.40
codegen_flags: <defaults>
</compile_context>

<pallas_src>
import functools
import math

import jax
import jax.numpy as jnp
from jax import lax
from jax.experimental import pallas as pl
from jax.experimental.pallas import tpu as pltpu

EPS = 1e-6  # timm ViT / TemporalEncoder LayerNorm eps


# ------------------------------ small helpers --------------------------------

def _round_up(x, m):
    return ((x + m - 1) // m) * m


def _nbytes(a):
    return math.prod(a.shape) * a.dtype.itemsize


def _vmem_limit(est_block_bytes):
    # double-buffered streams + headroom, clamped to [32 MiB, 64 MiB]
    # (>= v5e default 16 MiB; <= v7x physical 64 MiB).
    return int(min(max(2 * est_block_bytes + (8 << 20), 32 << 20), 64 << 20))


# ----------------------------- in-kernel helpers -----------------------------

def _ln(x, g, b, eps=EPS):
    mean = jnp.mean(x, axis=-1, keepdims=True)
    c = x - mean
    var = jnp.mean(c * c, axis=-1, keepdims=True)
    return (c * jax.lax.rsqrt(var + eps)) * g + b


def _gelu(x):
    # TODO(synk): torch nn.GELU() default is erf-exact; tanh approximation used here.
    return 0.5 * x * (1.0 + jnp.tanh(0.7978845608028654 * (x + 0.044715 * x * x * x)))


def _mha(q, k, v, num_heads, scale):
    """q, k, v: (N, D) f32 lane-dense.  Heads are stacked along a leading axis and
    both attention matmuls are single batched dot_generals (bf16 in, f32 acc)."""
    N, D = q.shape
    Dh = D // num_heads
    q = q * scale                                     # fold softmax scale into q once

    def split(x):                                     # (N, D) -> (H, N, Dh)
        return jnp.stack([x[:, h * Dh:(h + 1) * Dh] for h in range(num_heads)]
                         ).astype(jnp.bfloat16)

    qh, kh, vh = split(q), split(k), split(v)
    s = lax.dot_general(qh, kh, (((2,), (2,)), ((0,), (0,))),
                        preferred_element_type=jnp.float32)          # (H, N, N)
    m = jnp.max(s, axis=-1, keepdims=True)
    p = jnp.exp(s - m)
    # approx reciprocal -> EUP slot (will not match torch softmax bit-for-bit).
    p = p * pl.reciprocal(jnp.sum(p, axis=-1, keepdims=True), approx=True)
    o = lax.dot_general(p.astype(jnp.bfloat16), vh, (((2,), (1,)), ((0,), (0,))),
                        preferred_element_type=jnp.float32)          # (H, N, Dh)
    return jnp.concatenate([o[h] for h in range(num_heads)], axis=-1)  # (N, D)


# ------------------------- generic row-tiled linear ---------------------------

def _linear_kernel(x_ref, w_ref, b_ref, o_ref, *, act):
    y = jnp.dot(x_ref[...].astype(jnp.bfloat16), w_ref[...],
                preferred_element_type=jnp.float32) + b_ref[...]
    if act == "gelu":
        y = _gelu(y)
    o_ref[...] = y


def linear(x, w, b, act="none"):
    """Row-tiled y = act(x @ w + b); bf16 weights, rows padded to the tile."""
    M, K = x.shape
    N = w.shape[1]
    w = w.astype(jnp.bfloat16)
    tm = min(512, _round_up(M, 8))
    Mp = _round_up(M, tm)
    if Mp != M:
        x = jnp.pad(x, ((0, Mp - M), (0, 0)))
    est = tm * K * 4 + K * N * 2 + N * 4 + tm * N * 4
    out = pl.pallas_call(
        functools.partial(_linear_kernel, act=act),
        grid=(Mp // tm,),
        in_specs=[pl.BlockSpec((tm, K), lambda i: (i, 0)),
                  pl.BlockSpec((K, N), lambda i: (0, 0)),
                  pl.BlockSpec((1, N), lambda i: (0, 0))],
        out_specs=pl.BlockSpec((tm, N), lambda i: (i, 0)),
        out_shape=jax.ShapeDtypeStruct((Mp, N), jnp.float32),
        compiler_params=pltpu.CompilerParams(
            dimension_semantics=("parallel",),
            vmem_limit_bytes=_vmem_limit(est)),
    )(x, w, b.reshape(1, N))
    return out[:M] if Mp != M else out


# ----------------- fused depth-stacked ViT encoder (spatial) ------------------

def _vit_blocks_kernel(x_ref, pos_ref,
                       n1g, n1b, qkvw, qkvb, projw, projb, n2g, n2b,
                       fc1w, fc1b, fc2w, fc2b, lng, lnb, o_ref,
                       *, num_heads, scale):
    l = pl.program_id(1)
    nl = pl.num_programs(1)

    @pl.when(l == 0)
    def _():                                       # fuse pos-embed add into layer 0
        o_ref[...] = x_ref[...] + pos_ref[...]

    x = o_ref[0]                                   # (N, D) f32, VMEM-resident carry
    D = x.shape[-1]

    h = _ln(x, n1g[0], n1b[0])
    qkv = jnp.dot(h.astype(jnp.bfloat16), qkvw[0],
                  preferred_element_type=jnp.float32) + qkvb[0]
    a = _mha(qkv[:, :D], qkv[:, D:2 * D], qkv[:, 2 * D:], num_heads, scale)
    x = x + jnp.dot(a.astype(jnp.bfloat16), projw[0],
                    preferred_element_type=jnp.float32) + projb[0]

    h = _ln(x, n2g[0], n2b[0])
    h = _gelu(jnp.dot(h.astype(jnp.bfloat16), fc1w[0],
                      preferred_element_type=jnp.float32) + fc1b[0])
    x = x + jnp.dot(h.astype(jnp.bfloat16), fc2w[0],
                    preferred_element_type=jnp.float32) + fc2b[0]

    @pl.when(l < nl - 1)
    def _():
        o_ref[0] = x

    @pl.when(l == nl - 1)
    def _():                                       # fuse encoder's final LayerNorm
        o_ref[0] = _ln(x, lng[...], lnb[...])


def vit_blocks(x, pos, bp, norm_g, norm_b, num_heads):
    """All `depth` ViT blocks + final LN in ONE pallas_call.
    grid = (batch 'parallel', depth 'arbitrary'); activation VMEM-resident across
    depth; per-layer weights stream along depth (double-buffered)."""
    Bt, N, D = x.shape
    depth = bp['qkv_w'].shape[0]
    scale = (D // num_heads) ** -0.5

    act = pl.BlockSpec((1, N, D), lambda b, l: (b, 0, 0))
    pos_spec = pl.BlockSpec((1, N, D), lambda b, l: (0, 0, 0))

    def per_layer(a):
        nd = a.ndim
        return pl.BlockSpec((1,) + a.shape[1:], lambda b, l: (l,) + (0,) * (nd - 1))

    def const(a):
        nd = a.ndim
        return pl.BlockSpec(a.shape, lambda b, l: (0,) * nd)

    wargs = (bp['n1_g'], bp['n1_b'], bp['qkv_w'], bp['qkv_b'],
             bp['proj_w'], bp['proj_b'], bp['n2_g'], bp['n2_b'],
             bp['fc1_w'], bp['fc1_b'], bp['fc2_w'], bp['fc2_b'])
    in_specs = ([act, pos_spec] + [per_layer(a) for a in wargs]
                + [const(norm_g), const(norm_b)])

    est = (sum(_nbytes(a) // a.shape[0] for a in wargs)   # one layer's weight set
           + 3 * N * D * 4                                # x, pos, resident out
           + _nbytes(norm_g) + _nbytes(norm_b))

    return pl.pallas_call(
        functools.partial(_vit_blocks_kernel, num_heads=num_heads, scale=scale),
        grid=(Bt, depth),
        in_specs=in_specs,
        out_specs=act,
        out_shape=jax.ShapeDtypeStruct((Bt, N, D), jnp.float32),
        compiler_params=pltpu.CompilerParams(
            dimension_semantics=("parallel", "arbitrary"),
            vmem_limit_bytes=_vmem_limit(est)),
    )(x, pos, *wargs, norm_g, norm_b)


# -------------- fused depth-stacked BlockTime encoder (temporal) --------------

def _time_blocks_kernel(xt_ref, xs_ref,
                        n1tg, n1tb, n1sg, n1sb, qw, qb, kvw, kvb,
                        projw, projb, n2g, n2b, fc1w, fc1b, fc2w, fc2b,
                        lng, lnb, o_ref, *, num_heads, scale):
    l = pl.program_id(1)
    nl = pl.num_programs(1)

    @pl.when(l == 0)
    def _():
        o_ref[...] = xt_ref[...]

    xt = o_ref[0]                                  # carried across depth in VMEM
    xs = xs_ref[0]                                 # constant across depth (no re-DMA)
    D = xt.shape[-1]

    nxt = _ln(xt, n1tg[0], n1tb[0])
    nxs = _ln(xs, n1sg[0], n1sb[0])
    q = jnp.dot(nxs.astype(jnp.bfloat16), qw[0],
                preferred_element_type=jnp.float32) + qb[0]
    kv = jnp.dot(nxt.astype(jnp.bfloat16), kvw[0],
                 preferred_element_type=jnp.float32) + kvb[0]
    a = _mha(q, kv[:, :D], kv[:, D:], num_heads, scale)
    # BlockTime: xst = nxs + attn(nxs, nxt, nxt)  (residual from LayerNorm-ed xs)
    xst = nxs + jnp.dot(a.astype(jnp.bfloat16), projw[0],
                        preferred_element_type=jnp.float32) + projb[0]

    h = _ln(xst, n2g[0], n2b[0])
    h = _gelu(jnp.dot(h.astype(jnp.bfloat16), fc1w[0],
                      preferred_element_type=jnp.float32) + fc1b[0])
    xst = xst + jnp.dot(h.astype(jnp.bfloat16), fc2w[0],
                        preferred_element_type=jnp.float32) + fc2b[0]

    @pl.when(l < nl - 1)
    def _():
        o_ref[0] = xst

    @pl.when(l == nl - 1)
    def _():                                       # fuse encoder's final LayerNorm
        o_ref[0] = _ln(xst, lng[...], lnb[...])


def time_blocks(xt, xs, tp, num_heads=8):
    B, N, D = xt.shape
    bp = tp['blocks']
    depth = bp['q_w'].shape[0]
    scale = (D // num_heads) ** -0.5

    act = pl.BlockSpec((1, N, D), lambda b, l: (b, 0, 0))

    def per_layer(a):
        nd = a.ndim
        return pl.BlockSpec((1,) + a.shape[1:], lambda b, l: (l,) + (0,) * (nd - 1))

    def const(a):
        nd = a.ndim
        return pl.BlockSpec(a.shape, lambda b, l: (0,) * nd)

    wargs = (bp['n1t_g'], bp['n1t_b'], bp['n1s_g'], bp['n1s_b'],
             bp['q_w'], bp['q_b'], bp['kv_w'], bp['kv_b'],
             bp['proj_w'], bp['proj_b'], bp['n2_g'], bp['n2_b'],
             bp['fc1_w'], bp['fc1_b'], bp['fc2_w'], bp['fc2_b'])
    in_specs = ([act, act] + [per_layer(a) for a in wargs]
                + [const(tp['norm_g']), const(tp['norm_b'])])

    est = (sum(_nbytes(a) // a.shape[0] for a in wargs)
           + 3 * N * D * 4
           + _nbytes(tp['norm_g']) + _nbytes(tp['norm_b']))

    return pl.pallas_call(
        functools.partial(_time_blocks_kernel, num_heads=num_heads, scale=scale),
        grid=(B, depth),
        in_specs=in_specs,
        out_specs=act,
        out_shape=jax.ShapeDtypeStruct((B, N, D), jnp.float32),
        compiler_params=pltpu.CompilerParams(
            dimension_semantics=("parallel", "arbitrary"),
            vmem_limit_bytes=_vmem_limit(est)),
    )(xt, xs, *wargs, tp['norm_g'], tp['norm_b'])


# ------------------------------- output heads ---------------------------------

def _heads_kernel(f_ref, w_ref, b_ref, o_ref, *, window, nb):
    f = f_ref[...]
    y = jnp.dot(f, w_ref[...], preferred_element_type=jnp.float32) + b_ref[...]
    e = y[:, :nb]
    zs = y[:, nb:nb + 1]
    zl = y[:, nb + 1:nb + 2]
    s = (window - 1.0) / (1.0 + jnp.exp(-zs))          # sigmoid * (window - 1)
    ln = (window - s) / (1.0 + jnp.exp(-zl))           # sigmoid * (window - start)
    o_ref[...] = jnp.concatenate([e, s, ln], axis=-1)  # single lane-dense output slab


def output_heads(feat, hp, window, nb):
    B, F = feat.shape
    est = _nbytes(feat) + _nbytes(hp['w']) + _nbytes(hp['b']) + B * (nb + 2) * 4
    return pl.pallas_call(
        functools.partial(_heads_kernel, window=float(window), nb=nb),
        grid=(1,),
        in_specs=[pl.BlockSpec((B, F), lambda i: (0, 0)),
                  pl.BlockSpec(hp['w'].shape, lambda i: (0, 0)),
                  pl.BlockSpec(hp['b'].shape, lambda i: (0, 0))],
        out_specs=pl.BlockSpec((B, nb + 2), lambda i: (0, 0)),
        out_shape=jax.ShapeDtypeStruct((B, nb + 2), jnp.float32),
        compiler_params=pltpu.CompilerParams(vmem_limit_bytes=_vmem_limit(est)),
    )(feat, hp['w'], hp['b'])


# ------------------------------ model glue (JAX) ------------------------------

def patch_embed3d_batched(x, w_kd, b, temp_size, ps):
    """Conv3d with kernel == stride == (embed, ps, ps), batched over all temp_size
    chunks (shared projection weights).  x: (B, window, C, H, W);
    w_kd: im2col weight (C*embed*ps*ps, D) bf16.  Returns (temp_size*B, GH*GW, D)."""
    B, window, C, H, W = x.shape
    D = w_kd.shape[1]
    embed = window // temp_size
    GH, GW = H // ps, W // ps
    xr = x.reshape(B, temp_size, embed, C, GH, ps, GW, ps)
    xr = jnp.transpose(xr, (1, 0, 4, 6, 3, 2, 5, 7))    # (TS,B,GH,GW,C,embed,ps,ps)
    xr = xr.reshape(temp_size * B * GH * GW, C * embed * ps * ps)
    # TODO(synk): this im2col transpose is one extra HBM pass over the input; it could
    # be folded into the matmul's index_map (Element dims over GH/GW) or via
    # allow_input_fusion.
    y = linear(xr, w_kd, b)                             # Pallas row-tiled matmul + bias
    return y.reshape(temp_size * B, GH * GW, D)


def model_forward(x, params, cfg):
    """x: (B, window, C, H, W) -> (expression (B, nb_class), start (B,1), length (B,1))."""
    temp_size = cfg['temp_size']
    window = cfg['window']
    nb = cfg['nb_class']
    B = x.shape[0]
    sp = params['spatial']

    # TODO(synk): each SpatialEncoder builds its own PatchEmbed3d (identical values at
    # construction); a single shared projection weight is used here.
    tokens = patch_embed3d_batched(x, sp['patch_w'], sp['patch_b'],
                                   temp_size, cfg['patch_size'])      # (TS*B, Np, D)
    TSB, Np, D = tokens.shape
    cls = jnp.broadcast_to(sp['cls_token'], (TSB, 1, D))
    h = jnp.concatenate([cls, tokens], axis=1)                        # (TS*B, N, D)

    # shared-weight ViT backbone: one fused pass over all temp_size chunks;
    # pos-embed add and final norm fused into the same kernel.
    h = vit_blocks(h, sp['pos_embed'], sp['blocks'], sp['norm_g'], sp['norm_b'],
                   cfg['spatial_heads'])
    N = Np + 1
    spatial_out = h.reshape(temp_size, B, N, D)

    iet = spatial_out[0]
    st_features = [iet[:, 0]]                          # cls token (B, D)
    for i in range(1, temp_size):
        ies = spatial_out[i]
        iet = time_blocks(iet, ies, params['temporal'][i - 1], num_heads=8)
        st_features.append(iet[:, 0])
    feat = jnp.concatenate(st_features, axis=1)        # (B, temp_size * D)

    out = output_heads(feat, params['head'], window, nb)
    expression = out[:, :nb]
    start = out[:, nb:nb + 1]
    length = out[:, nb + 1:nb + 2]
    return expression, start, length


# ------------------------------ parameter init -------------------------------

def init_params(key, cfg):
    D = cfg['feature_size']
    C = 3
    ps = cfg['patch_size']
    embed = cfg['window'] // cfg['temp_size']
    GH = cfg['img_size'] // ps
    N = GH * GH + 1
    mlp = int(D * 4.0)
    sdepth = cfg['spatial_depth']
    tdepth = 6                                        # TemporalEncoder depth (hard-coded)
    BF = jnp.bfloat16

    kit = iter(jax.random.split(key, 4096))

    def nrm(shape, dtype=jnp.float32, scale=0.02):
        return (scale * jax.random.normal(next(kit), shape)).astype(dtype)

    def zeros(shape, dtype=jnp.float32):
        return jnp.zeros(shape, dtype)

    def ones(shape, dtype=jnp.float32):
        return jnp.ones(shape, dtype)

    # Conv3d weight (O, I, kT, kH, kW) -> im2col layout (I*kT*kH*kW, O), bf16 for MXU.
    patch_w = nrm((D, C, embed, ps, ps))
    patch_w = patch_w.reshape(D, C * embed * ps * ps).T.astype(BF)

    spatial_blocks = dict(
        n1_g=ones((sdepth, 1, D)), n1_b=zeros((sdepth, 1, D)),
        qkv_w=nrm((sdepth, D, 3 * D), BF), qkv_b=zeros((sdepth, 1, 3 * D)),
        proj_w=nrm((sdepth, D, D), BF), proj_b=zeros((sdepth, 1, D)),
        n2_g=ones((sdepth, 1, D)), n2_b=zeros((sdepth, 1, D)),
        fc1_w=nrm((sdepth, D, mlp), BF), fc1_b=zeros((sdepth, 1, mlp)),
        fc2_w=nrm((sdepth, mlp, D), BF), fc2_b=zeros((sdepth, 1, D)))

    spatial = dict(patch_w=patch_w, patch_b=zeros((D,)),
                   cls_token=nrm((1, 1, D)), pos_embed=nrm((1, N, D)),
                   blocks=spatial_blocks,
                   norm_g=ones((1, D)), norm_b=zeros((1, D)))

    def temporal_params():
        # k and v weights stored concatenated: kv_w = [k_w | v_w]  (one (D,2D) matmul)
        blocks = dict(
            n1t_g=ones((tdepth, 1, D)), n1t_b=zeros((tdepth, 1, D)),
            n1s_g=ones((tdepth, 1, D)), n1s_b=zeros((tdepth, 1, D)),
            q_w=nrm((tdepth, D, D), BF), q_b=zeros((tdepth, 1, D)),
            kv_w=nrm((tdepth, D, 2 * D), BF), kv_b=zeros((tdepth, 1, 2 * D)),
            proj_w=nrm((tdepth, D, D), BF), proj_b=zeros((tdepth, 1, D)),
            n2_g=ones((tdepth, 1, D)), n2_b=zeros((tdepth, 1, D)),
            fc1_w=nrm((tdepth, D, mlp), BF), fc1_b=zeros((tdepth, 1, mlp)),
            fc2_w=nrm((tdepth, mlp, D), BF), fc2_b=zeros((tdepth, 1, D)))
        return dict(blocks=blocks, norm_g=ones((1, D)), norm_b=zeros((1, D)))

    temporal = [temporal_params() for _ in range(cfg['temp_size'] - 1)]

    F = D * cfg['temp_size']
    # fused head weight: [expression | start | length]
    head_w = jnp.concatenate(
        [nrm((F, cfg['nb_class'])), nrm((F, 1)), nrm((F, 1))], axis=1)
    head = dict(w=head_w, b=zeros((1, cfg['nb_class'] + 2)))

    return dict(spatial=spatial, temporal=temporal, head=head)


# ----------------------------------- main ------------------------------------

if __name__ == "__main__":
    cfg = dict(img_size=16, patch_size=8, temp_size=2, window=4,
               feature_size=64, nb_class=3, spatial_depth=2, spatial_heads=4)

    key = jax.random.PRNGKey(0)
    pkey, xkey = jax.random.split(key)
    params = init_params(pkey, cfg)

    B = 2
    x = jax.random.normal(
        xkey, (B, cfg['window'], 3, cfg['img_size'], cfg['img_size']),
        dtype=jnp.float32)

    fwd = jax.jit(functools.partial(model_forward, cfg=cfg))
    expression, start, length = fwd(x, params)
    jax.block_until_ready((expression, start, length))

    assert expression.shape == (B, cfg['nb_class'])
    assert start.shape == (B, 1)
    assert length.shape == (B, 1)
    print("KERNEL_OK")
</pallas_src>

<mosaic_0001>
module attributes {stable_mosaic.version = 11 : i64} {
  func.func @_linear_kernel(%arg0: i32, %arg1: memref<16x384xf32, #tpu.memory_space<vmem>>, %arg2: memref<384x64xbf16, #tpu.memory_space<vmem>>, %arg3: memref<1x64xf32, #tpu.memory_space<vmem>>, %arg4: memref<16x64xf32, #tpu.memory_space<vmem>>) attributes {dimension_semantics = [#tpu.dimension_semantics<parallel>], iteration_bounds = array<i64: 1>, scalar_prefetch = 0 : i64, scratch_operands = 0 : i64, tpu.core_type = #tpu.core_type<tc>, window_params = [{transform_indices = @transform_0, window_bounds = array<i64: 16, 384>}, {pipeline_mode = #tpu.pipeline_mode<synchronous>, transform_indices = @transform_1, window_bounds = array<i64: 384, 64>}, {pipeline_mode = #tpu.pipeline_mode<synchronous>, transform_indices = @transform_2, window_bounds = array<i64: 1, 64>}, {transform_indices = @transform_3, window_bounds = array<i64: 16, 64>}]} {
    %c0 = arith.constant 0 : index
    %c0_0 = arith.constant 0 : index
    %0 = vector.load %arg1[%c0, %c0_0] : memref<16x384xf32, #tpu.memory_space<vmem>>, vector<16x384xf32>
    %1 = arith.truncf %0 : vector<16x384xf32> to vector<16x384xbf16>
    %c0_1 = arith.constant 0 : index
    %c0_2 = arith.constant 0 : index
    %2 = vector.load %arg2[%c0_1, %c0_2] : memref<384x64xbf16, #tpu.memory_space<vmem>>, vector<384x64xbf16>
    %cst = arith.constant dense<0.000000e+00> : vector<16x64xf32>
    %3 = tpu.matmul %1, %2, %cst {dimension_numbers = #tpu.dot_dimension_numbers<[1], [0], [0], [1], [0, 0, 1, 1], [], []>} : vector<16x384xbf16>, vector<384x64xbf16>, vector<16x64xf32> -> vector<16x64xf32>
    %c0_3 = arith.constant 0 : index
    %c0_4 = arith.constant 0 : index
    %4 = vector.load %arg3[%c0_3, %c0_4] : memref<1x64xf32, #tpu.memory_space<vmem>>, vector<1x64xf32>
    %5 = vector.broadcast %4 : vector<1x64xf32> to vector<16x64xf32>
    %6 = arith.addf %3, %5 : vector<16x64xf32>
    %c0_5 = arith.constant 0 : index
    %c0_6 = arith.constant 0 : index
    %7 = vector.load %arg4[%c0_5, %c0_6] : memref<16x64xf32, #tpu.memory_space<vmem>>, vector<16x64xf32>
    tpu.vector_store %arg4[%c0_5, %c0_6], %6 {strides = array<i32>} : memref<16x64xf32, #tpu.memory_space<vmem>>, vector<16x64xf32>,
    return
  }
  func.func @transform_0(%arg0: i32) -> (i32, i32) {
    %c0_i32 = arith.constant 0 : i32
    %c0_i32_0 = arith.constant 0 : i32
    return %arg0, %c0_i32 : i32, i32
  }
  func.func @transform_1(%arg0: i32) -> (i32, i32) {
    %c0_i32 = arith.constant 0 : i32
    %c0_i32_0 = arith.constant 0 : i32
    %c0_i32_1 = arith.constant 0 : i32
    return %c0_i32, %c0_i32_0 : i32, i32
  }
  func.func @transform_2(%arg0: i32) -> (i32, i32) {
    %c0_i32 = arith.constant 0 : i32
    %c0_i32_0 = arith.constant 0 : i32
    %c0_i32_1 = arith.constant 0 : i32
    return %c0_i32, %c0_i32_0 : i32, i32
  }
  func.func @transform_3(%arg0: i32) -> (i32, i32) {
    %c0_i32 = arith.constant 0 : i32
    %c0_i32_0 = arith.constant 0 : i32
    return %arg0, %c0_i32 : i32, i32
  }
}

module attributes {stable_mosaic.version = 11 : i64} {
  func.func @_vit_blocks_kernel(%arg0: i32, %arg1: i32, %arg2: memref<1x5x64xf32, #tpu.memory_space<vmem>>, %arg3: memref<1x5x64xf32, #tpu.memory_space<vmem>>, %arg4: memref<1x1x64xf32, #tpu.memory_space<vmem>>, %arg5: memref<1x1x64xf32, #tpu.memory_space<vmem>>, %arg6: memref<1x64x192xbf16, #tpu.memory_space<vmem>>, %arg7: memref<1x1x192xf32, #tpu.memory_space<vmem>>, %arg8: memref<1x64x64xbf16, #tpu.memory_space<vmem>>, %arg9: memref<1x1x64xf32, #tpu.memory_space<vmem>>, %arg10: memref<1x1x64xf32, #tpu.memory_space<vmem>>, %arg11: memref<1x1x64xf32, #tpu.memory_space<vmem>>, %arg12: memref<1x64x256xbf16, #tpu.memory_space<vmem>>, %arg13: memref<1x1x256xf32, #tpu.memory_space<vmem>>, %arg14: memref<1x256x64xbf16, #tpu.memory_space<vmem>>, %arg15: memref<1x1x64xf32, #tpu.memory_space<vmem>>, %arg16: memref<1x64xf32, #tpu.memory_space<vmem>>, %arg17: memref<1x64xf32, #tpu.memory_space<vmem>>, %arg18: memref<1x5x64xf32, #tpu.memory_space<vmem>>) attributes {dimension_semantics = [#tpu.dimension_semantics<parallel>, #tpu.dimension_semantics<arbitrary>], iteration_bounds = array<i64: 4, 2>, scalar_prefetch = 0 : i64, scratch_operands = 0 : i64, tpu.core_type = #tpu.core_type<tc>, window_params = [{transform_indices = @transform_0, window_bounds = array<i64: 1, 5, 64>}, {pipeline_mode = #tpu.pipeline_mode<synchronous>, transform_indices = @transform_1, window_bounds = array<i64: 1, 5, 64>}, {transform_indices = @transform_2, window_bounds = array<i64: 1, 1, 64>}, {transform_indices = @transform_3, window_bounds = array<i64: 1, 1, 64>}, {transform_indices = @transform_4, window_bounds = array<i64: 1, 64, 192>}, {transform_indices = @transform_5, window_bounds = array<i64: 1, 1, 192>}, {transform_indices = @transform_6, window_bounds = array<i64: 1, 64, 64>}, {transform_indices = @transform_7, window_bounds = array<i64: 1, 1, 64>}, {transform_indices = @transform_8, window_bounds = array<i64: 1, 1, 64>}, {transform_indices = @transform_9, window_bounds = array<i64: 1, 1, 64>}, {transform_indices = @transform_10, window_bounds = array<i64: 1, 64, 256>}, {transform_indices = @transform_11, window_bounds = array<i64: 1, 1, 256>}, {transform_indices = @transform_12, window_bounds = array<i64: 1, 256, 64>}, {transform_indices = @transform_13, window_bounds = array<i64: 1, 1, 64>}, {pipeline_mode = #tpu.pipeline_mode<synchronous>, transform_indices = @transform_14, window_bounds = array<i64: 1, 64>}, {pipeline_mode = #tpu.pipeline_mode<synchronous>, transform_indices = @transform_15, window_bounds = array<i64: 1, 64>}, {transform_indices = @transform_16, window_bounds = array<i64: 1, 5, 64>}]} {
    %c0_i32 = arith.constant 0 : i32
    %0 = arith.cmpi eq, %arg1, %c0_i32 : i32
    %1 = arith.extui %0 : i1 to i32
    %c0_i32_0 = arith.constant 0 : i32
    %2 = arith.cmpi ne, %1, %c0_i32_0 : i32
    scf.if %2 {
      %c0_64 = arith.constant 0 : index
      %c0_65 = arith.constant 0 : index
      %c0_66 = arith.constant 0 : index
      %163 = vector.load %arg2[%c0_64, %c0_65, %c0_66] : memref<1x5x64xf32, #tpu.memory_space<vmem>>, vector<1x5x64xf32>
      %c0_67 = arith.constant 0 : index
      %c0_68 = arith.constant 0 : index
      %c0_69 = arith.constant 0 : index
      %164 = vector.load %arg3[%c0_67, %c0_68, %c0_69] : memref<1x5x64xf32, #tpu.memory_space<vmem>>, vector<1x5x64xf32>
      %165 = arith.addf %163, %164 : vector<1x5x64xf32>
      %c0_70 = arith.constant 0 : index
      %c0_71 = arith.constant 0 : index
      %c0_72 = arith.constant 0 : index
      %166 = vector.load %arg18[%c0_70, %c0_71, %c0_72] : memref<1x5x64xf32, #tpu.memory_space<vmem>>, vector<1x5x64xf32>
      tpu.vector_store %arg18[%c0_70, %c0_71, %c0_72], %165 {strides = array<i32>} : memref<1x5x64xf32, #tpu.memory_space<vmem>>, vector<1x5x64xf32>,
    } else {
    }
    %c0 = arith.constant 0 : index
    %c0_1 = arith.constant 0 : index
    %c0_2 = arith.constant 0 : index
    %3 = vector.load %arg18[%c0, %c0_1, %c0_2] : memref<1x5x64xf32, #tpu.memory_space<vmem>>, vector<1x5x64xf32>
    %4 = vector.shape_cast %3 : vector<1x5x64xf32> to vector<5x64xf32>
    %c0_3 = arith.constant 0 : index
    %c0_4 = arith.constant 0 : index
    %c0_5 = arith.constant 0 : index
    %5 = vector.load %arg4[%c0_3, %c0_4, %c0_5] : memref<1x1x64xf32, #tpu.memory_space<vmem>>, vector<1x1x64xf32>
    %6 = vector.shape_cast %5 : vector<1x1x64xf32> to vector<1x64xf32>
    %c0_6 = arith.constant 0 : index
    %c0_7 = arith.constant 0 : index
    %c0_8 = arith.constant 0 : index
    %7 = vector.load %arg5[%c0_6, %c0_7, %c0_8] : memref<1x1x64xf32, #tpu.memory_space<vmem>>, vector<1x1x64xf32>
    %8 = vector.shape_cast %7 : vector<1x1x64xf32> to vector<1x64xf32>
    %cst = arith.constant dense<0.000000e+00> : vector<5xf32>
    %9 = vector.multi_reduction <add>, %4, %cst [1] : vector<5x64xf32> to vector<5xf32>
    %10 = vector.shape_cast %9 : vector<5xf32> to vector<5x1xf32>
    %cst_9 = arith.constant 6.400000e+01 : f32
    %11 = vector.broadcast %cst_9 : f32 to vector<5x1xf32>
    %12 = arith.divf %10, %11 : vector<5x1xf32>
    %13 = vector.broadcast %12 : vector<5x1xf32> to vector<5x64xf32>
    %14 = arith.subf %4, %13 : vector<5x64xf32>
    %15 = arith.mulf %14, %14 : vector<5x64xf32>
    %cst_10 = arith.constant dense<0.000000e+00> : vector<5xf32>
    %16 = vector.multi_reduction <add>, %15, %cst_10 [1] : vector<5x64xf32> to vector<5xf32>
    %17 = vector.shape_cast %16 : vector<5xf32> to vector<5x1xf32>
    %cst_11 = arith.constant 6.400000e+01 : f32
    %18 = vector.broadcast %cst_11 : f32 to vector<5x1xf32>
    %19 = arith.divf %17, %18 : vector<5x1xf32>
    %cst_12 = arith.constant 9.99999997E-7 : f32
    %20 = vector.broadcast %cst_12 : f32 to vector<5x1xf32>
    %21 = arith.addf %19, %20 : vector<5x1xf32>
    %22 = math.rsqrt %21 : vector<5x1xf32>
    %23 = vector.broadcast %22 : vector<5x1xf32> to vector<5x64xf32>
    %24 = arith.mulf %14, %23 : vector<5x64xf32>
    %25 = vector.broadcast %6 : vector<1x64xf32> to vector<5x64xf32>
    %26 = arith.mulf %24, %25 : vector<5x64xf32>
    %27 = vector.broadcast %8 : vector<1x64xf32> to vector<5x64xf32>
    %28 = arith.addf %26, %27 : vector<5x64xf32>
    %29 = arith.truncf %28 : vector<5x64xf32> to vector<5x64xbf16>
    %c0_13 = arith.constant 0 : index
    %c0_14 = arith.constant 0 : index
    %c0_15 = arith.constant 0 : index
    %30 = vector.load %arg6[%c0_13, %c0_14, %c0_15] : memref<1x64x192xbf16, #tpu.memory_space<vmem>>, vector<1x64x192xbf16>
    %31 = vector.shape_cast %30 : vector<1x64x192xbf16> to vector<64x192xbf16>
    %cst_16 = arith.constant dense<0.000000e+00> : vector<5x192xf32>
    %32 = tpu.matmul %29, %31, %cst_16 {dimension_numbers = #tpu.dot_dimension_numbers<[1], [0], [0], [1], [0, 0, 1, 1], [], []>} : vector<5x64xbf16>, vector<64x192xbf16>, vector<5x192xf32> -> vector<5x192xf32>
    %c0_17 = arith.constant 0 : index
    %c0_18 = arith.constant 0 : index
    %c0_19 = arith.constant 0 : index
    %33 = vector.load %arg7[%c0_17, %c0_18, %c0_19] : memref<1x1x192xf32, #tpu.memory_space<vmem>>, vector<1x1x192xf32>
    %34 = vector.shape_cast %33 : vector<1x1x192xf32> to vector<1x192xf32>
    %35 = vector.broadcast %34 : vector<1x192xf32> to vector<5x192xf32>
    %36 = arith.addf %32, %35 : vector<5x192xf32>
    %37 = vector.extract_strided_slice %36 {offsets = [0, 0], sizes = [5, 64], strides = [1, 1]} : vector<5x192xf32> to vector<5x64xf32>
    %38 = vector.extract_strided_slice %36 {offsets = [0, 64], sizes = [5, 64], strides = [1, 1]} : vector<5x192xf32> to vector<5x64xf32>
    %39 = vector.extract_strided_slice %36 {offsets = [0, 128], sizes = [5, 64], strides = [1, 1]} : vector<5x192xf32> to vector<5x64xf32>
    %cst_20 = arith.constant 2.500000e-01 : f32
    %40 = vector.broadcast %cst_20 : f32 to vector<5x64xf32>
    %41 = arith.mulf %37, %40 : vector<5x64xf32>
    %42 = vector.extract_strided_slice %41 {offsets = [0, 0], sizes = [5, 16], strides = [1, 1]} : vector<5x64xf32> to vector<5x16xf32>
    %43 = vector.extract_strided_slice %41 {offsets = [0, 16], sizes = [5, 16], strides = [1, 1]} : vector<5x64xf32> to vector<5x16xf32>
    %44 = vector.extract_strided_slice %41 {offsets = [0, 32], sizes = [5, 16], strides = [1, 1]} : vector<5x64xf32> to vector<5x16xf32>
    %45 = vector.extract_strided_slice %41 {offsets = [0, 48], sizes = [5, 16], strides = [1, 1]} : vector<5x64xf32> to vector<5x16xf32>
    %46 = vector.shape_cast %42 : vector<5x16xf32> to vector<1x5x16xf32>
    %47 = vector.shape_cast %43 : vector<5x16xf32> to vector<1x5x16xf32>
    %48 = vector.shape_cast %44 : vector<5x16xf32> to vector<1x5x16xf32>
    %49 = vector.shape_cast %45 : vector<5x16xf32> to vector<1x5x16xf32>
    %50 = tpu.concatenate %46, %47, %48, %49 in 0 : vector<1x5x16xf32>, vector<1x5x16xf32>, vector<1x5x16xf32>, vector<1x5x16xf32> -> vector<4x5x16xf32>
    %51 = arith.truncf %50 : vector<4x5x16xf32> to vector<4x5x16xbf16>
    %52 = vector.extract_strided_slice %38 {offsets = [0, 0], sizes = [5, 16], strides = [1, 1]} : vector<5x64xf32> to vector<5x16xf32>
    %53 = vector.extract_strided_slice %38 {offsets = [0, 16], sizes = [5, 16], strides = [1, 1]} : vector<5x64xf32> to vector<5x16xf32>
    %54 = vector.extract_strided_slice %38 {offsets = [0, 32], sizes = [5, 16], strides = [1, 1]} : vector<5x64xf32> to vector<5x16xf32>
    %55 = vector.extract_strided_slice %38 {offsets = [0, 48], sizes = [5, 16], strides = [1, 1]} : vector<5x64xf32> to vector<5x16xf32>
    %56 = vector.shape_cast %52 : vector<5x16xf32> to vector<1x5x16xf32>
    %57 = vector.shape_cast %53 : vector<5x16xf32> to vector<1x5x16xf32>
    %58 = vector.shape_cast %54 : vector<5x16xf32> to vector<1x5x16xf32>
    %59 = vector.shape_cast %55 : vector<5x16xf32> to vector<1x5x16xf32>
    %60 = tpu.concatenate %56, %57, %58, %59 in 0 : vector<1x5x16xf32>, vector<1x5x16xf32>, vector<1x5x16xf32>, vector<1x5x16xf32> -> vector<4x5x16xf32>
    %61 = arith.truncf %60 : vector<4x5x16xf32> to vector<4x5x16xbf16>
    %62 = vector.extract_strided_slice %39 {offsets = [0, 0], sizes = [5, 16], strides = [1, 1]} : vector<5x64xf32> to vector<5x16xf32>
    %63 = vector.extract_strided_slice %39 {offsets = [0, 16], sizes = [5, 16], strides = [1, 1]} : vector<5x64xf32> to vector<5x16xf32>
    %64 = vector.extract_strided_slice %39 {offsets = [0, 32], sizes = [5, 16], strides = [1, 1]} : vector<5x64xf32> to vector<5x16xf32>
    %65 = vector.extract_strided_slice %39 {offsets = [0, 48], sizes = [5, 16], strides = [1, 1]} : vector<5x64xf32> to vector<5x16xf32>
    %66 = vector.shape_cast %62 : vector<5x16xf32> to vector<1x5x16xf32>
    %67 = vector.shape_cast %63 : vector<5x16xf32> to vector<1x5x16xf32>
    %68 = vector.shape_cast %64 : vector<5x16xf32> to vector<1x5x16xf32>
    %69 = vector.shape_cast %65 : vector<5x16xf32> to vector<1x5x16xf32>
    %70 = tpu.concatenate %66, %67, %68, %69 in 0 : vector<1x5x16xf32>, vector<1x5x16xf32>, vector<1x5x16xf32>, vector<1x5x16xf32> -> vector<4x5x16xf32>
    %71 = arith.truncf %70 : vector<4x5x16xf32> to vector<4x5x16xbf16>
    %cst_21 = arith.constant dense<0.000000e+00> : vector<4x5x5xf32>
    %72 = tpu.matmul %51, %61, %cst_21 {dimension_numbers = #tpu.dot_dimension_numbers<[2], [2], [1], [1], [0, 0, 0, 1, 1, 1], [0], [0]>} : vector<4x5x16xbf16>, vector<4x5x16xbf16>, vector<4x5x5xf32> -> vector<4x5x5xf32>
    %cst_22 = arith.constant dense<0xFF800000> : vector<4x5xf32>
    %73 = vector.multi_reduction <maximumf>, %72, %cst_22 [2] : vector<4x5x5xf32> to vector<4x5xf32>
    %74 = vector.shape_cast %73 : vector<4x5xf32> to vector<4x5x1xf32>
    %75 = vector.broadcast %74 : vector<4x5x1xf32> to vector<4x5x5xf32>
    %76 = arith.subf %72, %75 : vector<4x5x5xf32>
    %77 = math.exp %76 : vector<4x5x5xf32>
    %cst_23 = arith.constant dense<0.000000e+00> : vector<4x5xf32>
    %78 = vector.multi_reduction <add>, %77, %cst_23 [2] : vector<4x5x5xf32> to vector<4x5xf32>
    %79 = vector.shape_cast %78 : vector<4x5xf32> to vector<4x5x1xf32>
    %80 = tpu.reciprocal %79 {approx = true} : vector<4x5x1xf32> -> vector<4x5x1xf32>
    %81 = vector.broadcast %80 : vector<4x5x1xf32> to vector<4x5x5xf32>
    %82 = arith.mulf %77, %81 : vector<4x5x5xf32>
    %83 = arith.truncf %82 : vector<4x5x5xf32> to vector<4x5x5xbf16>
    %cst_24 = arith.constant dense<0.000000e+00> : vector<4x5x16xf32>
    %84 = tpu.matmul %83, %71, %cst_24 {dimension_numbers = #tpu.dot_dimension_numbers<[2], [1], [1], [2], [0, 0, 0, 1, 1, 2], [0], [0]>} : vector<4x5x5xbf16>, vector<4x5x16xbf16>, vector<4x5x16xf32> -> vector<4x5x16xf32>
    %85 = vector.extract_strided_slice %84 {offsets = [0, 0, 0], sizes = [1, 5, 16], strides = [1, 1, 1]} : vector<4x5x16xf32> to vector<1x5x16xf32>
    %86 = vector.shape_cast %85 : vector<1x5x16xf32> to vector<5x16xf32>
    %87 = vector.extract_strided_slice %84 {offsets = [1, 0, 0], sizes = [1, 5, 16], strides = [1, 1, 1]} : vector<4x5x16xf32> to vector<1x5x16xf32>
    %88 = vector.shape_cast %87 : vector<1x5x16xf32> to vector<5x16xf32>
    %89 = vector.extract_strided_slice %84 {offsets = [2, 0, 0], sizes = [1, 5, 16], strides = [1, 1, 1]} : vector<4x5x16xf32> to vector<1x5x16xf32>
    %90 = vector.shape_cast %89 : vector<1x5x16xf32> to vector<5x16xf32>
    %91 = vector.extract_strided_slice %84 {offsets = [3, 0, 0], sizes = [1, 5, 16], strides = [1, 1, 1]} : vector<4x5x16xf32> to vector<1x5x16xf32>
    %92 = vector.shape_cast %91 : vector<1x5x16xf32> to vector<5x16xf32>
    %93 = tpu.concatenate %86, %88, %90, %92 in 1 : vector<5x16xf32>, vector<5x16xf32>, vector<5x16xf32>, vector<5x16xf32> -> vector<5x64xf32>
    %94 = arith.truncf %93 : vector<5x64xf32> to vector<5x64xbf16>
    %c0_25 = arith.constant 0 : index
    %c0_26 = arith.constant 0 : index
    %c0_27 = arith.constant 0 : index
    %95 = vector.load %arg8[%c0_25, %c0_26, %c0_27] : memref<1x64x64xbf16, #tpu.memory_space<vmem>>, vector<1x64x64xbf16>
    %96 = vector.shape_cast %95 : vector<1x64x64xbf16> to vector<64x64xbf16>
    %cst_28 = arith.constant dense<0.000000e+00> : vector<5x64xf32>
    %97 = tpu.matmul %94, %96, %cst_28 {dimension_numbers = #tpu.dot_dimension_numbers<[1], [0], [0], [1], [0, 0, 1, 1], [], []>} : vector<5x64xbf16>, vector<64x64xbf16>, vector<5x64xf32> -> vector<5x64xf32>
    %98 = arith.addf %4, %97 : vector<5x64xf32>
    %c0_29 = arith.constant 0 : index
    %c0_30 = arith.constant 0 : index
    %c0_31 = arith.constant 0 : index
    %99 = vector.load %arg9[%c0_29, %c0_30, %c0_31] : memref<1x1x64xf32, #tpu.memory_space<vmem>>, vector<1x1x64xf32>
    %100 = vector.shape_cast %99 : vector<1x1x64xf32> to vector<1x64xf32>
    %101 = vector.broadcast %100 : vector<1x64xf32> to vector<5x64xf32>
    %102 = arith.addf %98, %101 : vector<5x64xf32>
    %c0_32 = arith.constant 0 : index
    %c0_33 = arith.constant 0 : index
    %c0_34 = arith.constant 0 : index
    %103 = vector.load %arg10[%c0_32, %c0_33, %c0_34] : memref<1x1x64xf32, #tpu.memory_space<vmem>>, vector<1x1x64xf32>
    %104 = vector.shape_cast %103 : vector<1x1x64xf32> to vector<1x64xf32>
    %c0_35 = arith.constant 0 : index
    %c0_36 = arith.constant 0 : index
    %c0_37 = arith.constant 0 : index
    %105 = vector.load %arg11[%c0_35, %c0_36, %c0_37] : memref<1x1x64xf32, #tpu.memory_space<vmem>>, vector<1x1x64xf32>
    %106 = vector.shape_cast %105 : vector<1x1x64xf32> to vector<1x64xf32>
    %cst_38 = arith.constant dense<0.000000e+00> : vector<5xf32>
    %107 = vector.multi_reduction <add>, %102, %cst_38 [1] : vector<5x64xf32> to vector<5xf32>
    %108 = vector.shape_cast %107 : vector<5xf32> to vector<5x1xf32>
    %cst_39 = arith.constant 6.400000e+01 : f32
    %109 = vector.broadcast %cst_39 : f32 to vector<5x1xf32>
    %110 = arith.divf %108, %109 : vector<5x1xf32>
    %111 = vector.broadcast %110 : vector<5x1xf32> to vector<5x64xf32>
    %112 = arith.subf %102, %111 : vector<5x64xf32>
    %113 = arith.mulf %112, %112 : vector<5x64xf32>
    %cst_40 = arith.constant dense<0.000000e+00> : vector<5xf32>
    %114 = vector.multi_reduction <add>, %113, %cst_40 [1] : vector<5x64xf32> to vector<5xf32>
    %115 = vector.shape_cast %114 : vector<5xf32> to vector<5x1xf32>
    %cst_41 = arith.constant 6.400000e+01 : f32
    %116 = vector.broadcast %cst_41 : f32 to vector<5x1xf32>
    %117 = arith.divf %115, %116 : vector<5x1xf32>
    %cst_42 = arith.constant 9.99999997E-7 : f32
    %118 = vector.broadcast %cst_42 : f32 to vector<5x1xf32>
    %119 = arith.addf %117, %118 : vector<5x1xf32>
    %120 = math.rsqrt %119 : vector<5x1xf32>
    %121 = vector.broadcast %120 : vector<5x1xf32> to vector<5x64xf32>
    %122 = arith.mulf %112, %121 : vector<5x64xf32>
    %123 = vector.broadcast %104 : vector<1x64xf32> to vector<5x64xf32>
    %124 = arith.mulf %122, %123 : vector<5x64xf32>
    %125 = vector.broadcast %106 : vector<1x64xf32> to vector<5x64xf32>
    %126 = arith.addf %124, %125 : vector<5x64xf32>
    %127 = arith.truncf %126 : vector<5x64xf32> to vector<5x64xbf16>
    %c0_43 = arith.constant 0 : index
    %c0_44 = arith.constant 0 : index
    %c0_45 = arith.constant 0 : index
    %128 = vector.load %arg12[%c0_43, %c0_44, %c0_45] : memref<1x64x256xbf16, #tpu.memory_space<vmem>>, vector<1x64x256xbf16>
    %129 = vector.shape_cast %128 : vector<1x64x256xbf16> to vector<64x256xbf16>
    %cst_46 = arith.constant dense<0.000000e+00> : vector<5x256xf32>
    %130 = tpu.matmul %127, %129, %cst_46 {dimension_numbers = #tpu.dot_dimension_numbers<[1], [0], [0], [1], [0, 0, 1, 1], [], []>} : vector<5x64xbf16>, vector<64x256xbf16>, vector<5x256xf32> -> vector<5x256xf32>
    %c0_47 = arith.constant 0 : index
    %c0_48 = arith.constant 0 : index
    %c0_49 = arith.constant 0 : index
    %131 = vector.load %arg13[%c0_47, %c0_48, %c0_49] : memref<1x1x256xf32, #tpu.memory_space<vmem>>, vector<1x1x256xf32>
    %132 = vector.shape_cast %131 : vector<1x1x256xf32> to vector<1x256xf32>
    %133 = vector.broadcast %132 : vector<1x256xf32> to vector<5x256xf32>
    %134 = arith.addf %130, %133 : vector<5x256xf32>
    %cst_50 = arith.constant 5.000000e-01 : f32
    %135 = vector.broadcast %cst_50 : f32 to vector<5x256xf32>
    %136 = arith.mulf %135, %134 : vector<5x256xf32>
    %cst_51 = arith.constant 4.471500e-02 : f32
    %137 = vector.broadcast %cst_51 : f32 to vector<5x256xf32>
    %138 = arith.mulf %137, %134 : vector<5x256xf32>
    %139 = arith.mulf %138, %134 : vector<5x256xf32>
    %140 = arith.mulf %139, %134 : vector<5x256xf32>
    %141 = arith.addf %134, %140 : vector<5x256xf32>
    %cst_52 = arith.constant 0.797884583 : f32
    %142 = vector.broadcast %cst_52 : f32 to vector<5x256xf32>
    %143 = arith.mulf %142, %141 : vector<5x256xf32>
    %144 = math.tanh %143 : vector<5x256xf32>
    %cst_53 = arith.constant 1.000000e+00 : f32
    %145 = vector.broadcast %cst_53 : f32 to vector<5x256xf32>
    %146 = arith.addf %145, %144 : vector<5x256xf32>
    %147 = arith.mulf %136, %146 : vector<5x256xf32>
    %148 = arith.truncf %147 : vector<5x256xf32> to vector<5x256xbf16>
    %c0_54 = arith.constant 0 : index
    %c0_55 = arith.constant 0 : index
    %c0_56 = arith.constant 0 : index
    %149 = vector.load %arg14[%c0_54, %c0_55, %c0_56] : memref<1x256x64xbf16, #tpu.memory_space<vmem>>, vector<1x256x64xbf16>
    %150 = vector.shape_cast %149 : vector<1x256x64xbf16> to vector<256x64xbf16>
    %cst_57 = arith.constant dense<0.000000e+00> : vector<5x64xf32>
    %151 = tpu.matmul %148, %150, %cst_57 {dimension_numbers = #tpu.dot_dimension_numbers<[1], [0], [0], [1], [0, 0, 1, 1], [], []>} : vector<5x256xbf16>, vector<256x64xbf16>, vector<5x64xf32> -> vector<5x64xf32>
    %152 = arith.addf %102, %151 : vector<5x64xf32>
    %c0_58 = arith.constant 0 : index
    %c0_59 = arith.constant 0 : index
    %c0_60 = arith.constant 0 : index
    %153 = vector.load %arg15[%c0_58, %c0_59, %c0_60] : memref<1x1x64xf32, #tpu.memory_space<vmem>>, vector<1x1x64xf32>
    %154 = vector.shape_cast %153 : vector<1x1x64xf32> to vector<1x64xf32>
    %155 = vector.broadcast %154 : vector<1x64xf32> to vector<5x64xf32>
    %156 = arith.addf %152, %155 : vector<5x64xf32>
    %c1_i32 = arith.constant 1 : i32
    %157 = arith.cmpi slt, %arg1, %c1_i32 : i32
    %158 = arith.extui %157 : i1 to i32
    %c0_i32_61 = arith.constant 0 : i32
    %159 = arith.cmpi ne, %158, %c0_i32_61 : i32
    scf.if %159 {
      %c0_64 = arith.constant 0 : index
      %c0_65 = arith.constant 0 : index
      %c0_66 = arith.constant 0 : index
      %163 = vector.load %arg18[%c0_64, %c0_65, %c0_66] : memref<1x5x64xf32, #tpu.memory_space<vmem>>, vector<1x5x64xf32>
      %164 = vector.shape_cast %163 : vector<1x5x64xf32> to vector<5x64xf32>
      %165 = vector.shape_cast %156 : vector<5x64xf32> to vector<1x5x64xf32>
      tpu.vector_store %arg18[%c0_64, %c0_65, %c0_66], %165 {strides = array<i32>} : memref<1x5x64xf32, #tpu.memory_space<vmem>>, vector<1x5x64xf32>,
    } else {
    }
    %c1_i32_62 = arith.constant 1 : i32
    %160 = arith.cmpi eq, %arg1, %c1_i32_62 : i32
    %161 = arith.extui %160 : i1 to i32
    %c0_i32_63 = arith.constant 0 : i32
    %162 = arith.cmpi ne, %161, %c0_i32_63 : i32
    scf.if %162 {
      %c0_64 = arith.constant 0 : index
      %c0_65 = arith.constant 0 : index
      %163 = vector.load %arg16[%c0_64, %c0_65] : memref<1x64xf32, #tpu.memory_space<vmem>>, vector<1x64xf32>
      %c0_66 = arith.constant 0 : index
      %c0_67 = arith.constant 0 : index
      %164 = vector.load %arg17[%c0_66, %c0_67] : memref<1x64xf32, #tpu.memory_space<vmem>>, vector<1x64xf32>
      %cst_68 = arith.constant dense<0.000000e+00> : vector<5xf32>
      %165 = vector.multi_reduction <add>, %156, %cst_68 [1] : vector<5x64xf32> to vector<5xf32>
      %166 = vector.shape_cast %165 : vector<5xf32> to vector<5x1xf32>
      %cst_69 = arith.constant 6.400000e+01 : f32
      %167 = vector.broadcast %cst_69 : f32 to vector<5x1xf32>
      %168 = arith.divf %166, %167 : vector<5x1xf32>
      %169 = vector.broadcast %168 : vector<5x1xf32> to vector<5x64xf32>
      %170 = arith.subf %156, %169 : vector<5x64xf32>
      %171 = arith.mulf %170, %170 : vector<5x64xf32>
      %cst_70 = arith.constant dense<0.000000e+00> : vector<5xf32>
      %172 = vector.multi_reduction <add>, %171, %cst_70 [1] : vector<5x64xf32> to vector<5xf32>
      %173 = vector.shape_cast %172 : vector<5xf32> to vector<5x1xf32>
      %cst_71 = arith.constant 6.400000e+01 : f32
      %174 = vector.broadcast %cst_71 : f32 to vector<5x1xf32>
      %175 = arith.divf %173, %174 : vector<5x1xf32>
      %cst_72 = arith.constant 9.99999997E-7 : f32
      %176 = vector.broadcast %cst_72 : f32 to vector<5x1xf32>
      %177 = arith.addf %175, %176 : vector<5x1xf32>
      %178 = math.rsqrt %177 : vector<5x1xf32>
      %179 = vector.broadcast %178 : vector<5x1xf32> to vector<5x64xf32>
      %180 = arith.mulf %170, %179 : vector<5x64xf32>
      %181 = vector.broadcast %163 : vector<1x64xf32> to vector<5x64xf32>
      %182 = arith.mulf %180, %181 : vector<5x64xf32>
      %183 = vector.broadcast %164 : vector<1x64xf32> to vector<5x64xf32>
      %184 = arith.addf %182, %183 : vector<5x64xf32>
      %c0_73 = arith.constant 0 : index
      %c0_74 = arith.constant 0 : index
      %c0_75 = arith.constant 0 : index
      %185 = vector.load %arg18[%c0_73, %c0_74, %c0_75] : memref<1x5x64xf32, #tpu.memory_space<vmem>>, vector<1x5x64xf32>
      %186 = vector.shape_cast %185 : vector<1x5x64xf32> to vector<5x64xf32>
      %187 = vector.shape_cast %184 : vector<5x64xf32> to vector<1x5x64xf32>
      tpu.vector_store %arg18[%c0_73, %c0_74, %c0_75], %187 {strides = array<i32>} : memref<1x5x64xf32, #tpu.memory_space<vmem>>, vector<1x5x64xf32>,
    } else {
    }
    return
  }
  func.func @transform_0(%arg0: i32, %arg1: i32) -> (i32, i32, i32) {
    %c0_i32 = arith.constant 0 : i32
    %c0_i32_0 = arith.constant 0 : i32
    %c0_i32_1 = arith.constant 0 : i32
    return %arg0, %c0_i32, %c0_i32_0 : i32, i32, i32
  }
  func.func @transform_1(%arg0: i32, %arg1: i32) -> (i32, i32, i32) {
    %c0_i32 = arith.constant 0 : i32
    %c0_i32_0 = arith.constant 0 : i32
    %c0_i32_1 = arith.constant 0 : i32
    %c0_i32_2 = arith.constant 0 : i32
    return %c0_i32, %c0_i32_0, %c0_i32_1 : i32, i32, i32
  }
  func.func @transform_2(%arg0: i32, %arg1: i32) -> (i32, i32, i32) {
    %c0_i32 = arith.constant 0 : i32
    %c0_i32_0 = arith.constant 0 : i32
    %c0_i32_1 = arith.constant 0 : i32
    return %arg1, %c0_i32, %c0_i32_0 : i32, i32, i32
  }
  func.func @transform_3(%arg0: i32, %arg1: i32) -> (i32, i32, i32) {
    %c0_i32 = arith.constant 0 : i32
    %c0_i32_0 = arith.constant 0 : i32
    %c0_i32_1 = arith.constant 0 : i32
    return %arg1, %c0_i32, %c0_i32_0 : i32, i32, i32
  }
  func.func @transform_4(%arg0: i32, %arg1: i32) -> (i32, i32, i32) {
    %c0_i32 = arith.constant 0 : i32
    %c0_i32_0 = arith.constant 0 : i32
    %c0_i32_1 = arith.constant 0 : i32
    return %arg1, %c0_i32, %c0_i32_0 : i32, i32, i32
  }
  func.func @transform_5(%arg0: i32, %arg1: i32) -> (i32, i32, i32) {
    %c0_i32 = arith.constant 0 : i32
    %c0_i32_0 = arith.constant 0 : i32
    %c0_i32_1 = arith.constant 0 : i32
    return %arg1, %c0_i32, %c0_i32_0 : i32, i32, i32
  }
  func.func @transform_6(%arg0: i32, %arg1: i32) -> (i32, i32, i32) {
    %c0_i32 = arith.constant 0 : i32
    %c0_i32_0 = arith.constant 0 : i32
    %c0_i32_1 = arith.constant 0 : i32
    return %arg1, %c0_i32, %c0_i32_0 : i32, i32, i32
  }
  func.func @transform_7(%arg0: i32, %arg1: i32) -> (i32, i32, i32) {
    %c0_i32 = arith.constant 0 : i32
    %c0_i32_0 = arith.constant 0 : i32
    %c0_i32_1 = arith.constant 0 : i32
    return %arg1, %c0_i32, %c0_i32_0 : i32, i32, i32
  }
  func.func @transform_8(%arg0: i32, %arg1: i32) -> (i32, i32, i32) {
    %c0_i32 = arith.constant 0 : i32
    %c0_i32_0 = arith.constant 0 : i32
    %c0_i32_1 = arith.constant 0 : i32
    return %arg1, %c0_i32, %c0_i32_0 : i32, i32, i32
  }
  func.func @transform_9(%arg0: i32, %arg1: i32) -> (i32, i32, i32) {
    %c0_i32 = arith.constant 0 : i32
    %c0_i32_0 = arith.constant 0 : i32
    %c0_i32_1 = arith.constant 0 : i32
    return %arg1, %c0_i32, %c0_i32_0 : i32, i32, i32
  }
  func.func @transform_10(%arg0: i32, %arg1: i32) -> (i32, i32, i32) {
    %c0_i32 = arith.constant 0 : i32
    %c0_i32_0 = arith.constant 0 : i32
    %c0_i32_1 = arith.constant 0 : i32
    return %arg1, %c0_i32, %c0_i32_0 : i32, i32, i32
  }
  func.func @transform_11(%arg0: i32, %arg1: i32) -> (i32, i32, i32) {
    %c0_i32 = arith.constant 0 : i32
    %c0_i32_0 = arith.constant 0 : i32
    %c0_i32_1 = arith.constant 0 : i32
    return %arg1, %c0_i32, %c0_i32_0 : i32, i32, i32
  }
  func.func @transform_12(%arg0: i32, %arg1: i32) -> (i32, i32, i32) {
    %c0_i32 = arith.constant 0 : i32
    %c0_i32_0 = arith.constant 0 : i32
    %c0_i32_1 = arith.constant 0 : i32
    return %arg1, %c0_i32, %c0_i32_0 : i32, i32, i32
  }
  func.func @transform_13(%arg0: i32, %arg1: i32) -> (i32, i32, i32) {
    %c0_i32 = arith.constant 0 : i32
    %c0_i32_0 = arith.constant 0 : i32
    %c0_i32_1 = arith.constant 0 : i32
    return %arg1, %c0_i32, %c0_i32_0 : i32, i32, i32
  }
  func.func @transform_14(%arg0: i32, %arg1: i32) -> (i32, i32) {
    %c0_i32 = arith.constant 0 : i32
    %c0_i32_0 = arith.constant 0 : i32
    %c0_i32_1 = arith.constant 0 : i32
    return %c0_i32, %c0_i32_0 : i32, i32
  }
  func.func @transform_15(%arg0: i32, %arg1: i32) -> (i32, i32) {
    %c0_i32 = arith.constant 0 : i32
    %c0_i32_0 = arith.constant 0 : i32
    %c0_i32_1 = arith.constant 0 : i32
    return %c0_i32, %c0_i32_0 : i32, i32
  }
  func.func @transform_16(%arg0: i32, %arg1: i32) -> (i32, i32, i32) {
    %c0_i32 = arith.constant 0 : i32
    %c0_i32_0 = arith.constant 0 : i32
    %c0_i32_1 = arith.constant 0 : i32
    return %arg0, %c0_i32, %c0_i32_0 : i32, i32, i32
  }
}

module attributes {stable_mosaic.version = 11 : i64} {
  func.func @_time_blocks_kernel(%arg0: i32, %arg1: i32, %arg2: memref<1x5x64xf32, #tpu.memory_space<vmem>>, %arg3: memref<1x5x64xf32, #tpu.memory_space<vmem>>, %arg4: memref<1x1x64xf32, #tpu.memory_space<vmem>>, %arg5: memref<1x1x64xf32, #tpu.memory_space<vmem>>, %arg6: memref<1x1x64xf32, #tpu.memory_space<vmem>>, %arg7: memref<1x1x64xf32, #tpu.memory_space<vmem>>, %arg8: memref<1x64x64xbf16, #tpu.memory_space<vmem>>, %arg9: memref<1x1x64xf32, #tpu.memory_space<vmem>>, %arg10: memref<1x64x128xbf16, #tpu.memory_space<vmem>>, %arg11: memref<1x1x128xf32, #tpu.memory_space<vmem>>, %arg12: memref<1x64x64xbf16, #tpu.memory_space<vmem>>, %arg13: memref<1x1x64xf32, #tpu.memory_space<vmem>>, %arg14: memref<1x1x64xf32, #tpu.memory_space<vmem>>, %arg15: memref<1x1x64xf32, #tpu.memory_space<vmem>>, %arg16: memref<1x64x256xbf16, #tpu.memory_space<vmem>>, %arg17: memref<1x1x256xf32, #tpu.memory_space<vmem>>, %arg18: memref<1x256x64xbf16, #tpu.memory_space<vmem>>, %arg19: memref<1x1x64xf32, #tpu.memory_space<vmem>>, %arg20: memref<1x64xf32, #tpu.memory_space<vmem>>, %arg21: memref<1x64xf32, #tpu.memory_space<vmem>>, %arg22: memref<1x5x64xf32, #tpu.memory_space<vmem>>) attributes {dimension_semantics = [#tpu.dimension_semantics<parallel>, #tpu.dimension_semantics<arbitrary>], iteration_bounds = array<i64: 2, 6>, scalar_prefetch = 0 : i64, scratch_operands = 0 : i64, tpu.core_type = #tpu.core_type<tc>, window_params = [{transform_indices = @transform_0, window_bounds = array<i64: 1, 5, 64>}, {transform_indices = @transform_1, window_bounds = array<i64: 1, 5, 64>}, {transform_indices = @transform_2, window_bounds = array<i64: 1, 1, 64>}, {transform_indices = @transform_3, window_bounds = array<i64: 1, 1, 64>}, {transform_indices = @transform_4, window_bounds = array<i64: 1, 1, 64>}, {transform_indices = @transform_5, window_bounds = array<i64: 1, 1, 64>}, {transform_indices = @transform_6, window_bounds = array<i64: 1, 64, 64>}, {transform_indices = @transform_7, window_bounds = array<i64: 1, 1, 64>}, {transform_indices = @transform_8, window_bounds = array<i64: 1, 64, 128>}, {transform_indices = @transform_9, window_bounds = array<i64: 1, 1, 128>}, {transform_indices = @transform_10, window_bounds = array<i64: 1, 64, 64>}, {transform_indices = @transform_11, window_bounds = array<i64: 1, 1, 64>}, {transform_indices = @transform_12, window_bounds = array<i64: 1, 1, 64>}, {transform_indices = @transform_13, window_bounds = array<i64: 1, 1, 64>}, {transform_indices = @transform_14, window_bounds = array<i64: 1, 64, 256>}, {transform_indices = @transform_15, window_bounds = array<i64: 1, 1, 256>}, {transform_indices = @transform_16, window_bounds = array<i64: 1, 256, 64>}, {transform_indices = @transform_17, window_bounds = array<i64: 1, 1, 64>}, {pipeline_mode = #tpu.pipeline_mode<synchronous>, transform_indices = @transform_18, window_bounds = array<i64: 1, 64>}, {pipeline_mode = #tpu.pipeline_mode<synchronous>, transform_indices = @transform_19, window_bounds = array<i64: 1, 64>}, {transform_indices = @transform_20, window_bounds = array<i64: 1, 5, 64>}]} {
    %c0_i32 = arith.constant 0 : i32
    %0 = arith.cmpi eq, %arg1, %c0_i32 : i32
    %1 = arith.extui %0 : i1 to i32
    %c0_i32_0 = arith.constant 0 : i32
    %2 = arith.cmpi ne, %1, %c0_i32_0 : i32
    scf.if %2 {
      %c0_85 = arith.constant 0 : index
      %c0_86 = arith.constant 0 : index
      %c0_87 = arith.constant 0 : index
      %228 = vector.load %arg2[%c0_85, %c0_86, %c0_87] : memref<1x5x64xf32, #tpu.memory_space<vmem>>, vector<1x5x64xf32>
      %c0_88 = arith.constant 0 : index
      %c0_89 = arith.constant 0 : index
      %c0_90 = arith.constant 0 : index
      %229 = vector.load %arg22[%c0_88, %c0_89, %c0_90] : memref<1x5x64xf32, #tpu.memory_space<vmem>>, vector<1x5x64xf32>
      tpu.vector_store %arg22[%c0_88, %c0_89, %c0_90], %228 {strides = array<i32>} : memref<1x5x64xf32, #tpu.memory_space<vmem>>, vector<1x5x64xf32>,
    } else {
    }
    %c0 = arith.constant 0 : index
    %c0_1 = arith.constant 0 : index
    %c0_2 = arith.constant 0 : index
    %3 = vector.load %arg22[%c0, %c0_1, %c0_2] : memref<1x5x64xf32, #tpu.memory_space<vmem>>, vector<1x5x64xf32>
    %4 = vector.shape_cast %3 : vector<1x5x64xf32> to vector<5x64xf32>
    %c0_3 = arith.constant 0 : index
    %c0_4 = arith.constant 0 : index
    %c0_5 = arith.constant 0 : index
    %5 = vector.load %arg3[%c0_3, %c0_4, %c0_5] : memref<1x5x64xf32, #tpu.memory_space<vmem>>, vector<1x5x64xf32>
    %6 = vector.shape_cast %5 : vector<1x5x64xf32> to vector<5x64xf32>
    %c0_6 = arith.constant 0 : index
    %c0_7 = arith.constant 0 : index
    %c0_8 = arith.constant 0 : index
    %7 = vector.load %arg4[%c0_6, %c0_7, %c0_8] : memref<1x1x64xf32, #tpu.memory_space<vmem>>, vector<1x1x64xf32>
    %8 = vector.shape_cast %7 : vector<1x1x64xf32> to vector<1x64xf32>
    %c0_9 = arith.constant 0 : index
    %c0_10 = arith.constant 0 : index
    %c0_11 = arith.constant 0 : index
    %9 = vector.load %arg5[%c0_9, %c0_10, %c0_11] : memref<1x1x64xf32, #tpu.memory_space<vmem>>, vector<1x1x64xf32>
    %10 = vector.shape_cast %9 : vector<1x1x64xf32> to vector<1x64xf32>
    %cst = arith.constant dense<0.000000e+00> : vector<5xf32>
    %11 = vector.multi_reduction <add>, %4, %cst [1] : vector<5x64xf32> to vector<5xf32>
    %12 = vector.shape_cast %11 : vector<5xf32> to vector<5x1xf32>
    %cst_12 = arith.constant 6.400000e+01 : f32
    %13 = vector.broadcast %cst_12 : f32 to vector<5x1xf32>
    %14 = arith.divf %12, %13 : vector<5x1xf32>
    %15 = vector.broadcast %14 : vector<5x1xf32> to vector<5x64xf32>
    %16 = arith.subf %4, %15 : vector<5x64xf32>
    %17 = arith.mulf %16, %16 : vector<5x64xf32>
    %cst_13 = arith.constant dense<0.000000e+00> : vector<5xf32>
    %18 = vector.multi_reduction <add>, %17, %cst_13 [1] : vector<5x64xf32> to vector<5xf32>
    %19 = vector.shape_cast %18 : vector<5xf32> to vector<5x1xf32>
    %cst_14 = arith.constant 6.400000e+01 : f32
    %20 = vector.broadcast %cst_14 : f32 to vector<5x1xf32>
    %21 = arith.divf %19, %20 : vector<5x1xf32>
    %cst_15 = arith.constant 9.99999997E-7 : f32
    %22 = vector.broadcast %cst_15 : f32 to vector<5x1xf32>
    %23 = arith.addf %21, %22 : vector<5x1xf32>
    %24 = math.rsqrt %23 : vector<5x1xf32>
    %25 = vector.broadcast %24 : vector<5x1xf32> to vector<5x64xf32>
    %26 = arith.mulf %16, %25 : vector<5x64xf32>
    %27 = vector.broadcast %8 : vector<1x64xf32> to vector<5x64xf32>
    %28 = arith.mulf %26, %27 : vector<5x64xf32>
    %29 = vector.broadcast %10 : vector<1x64xf32> to vector<5x64xf32>
    %30 = arith.addf %28, %29 : vector<5x64xf32>
    %c0_16 = arith.constant 0 : index
    %c0_17 = arith.constant 0 : index
    %c0_18 = arith.constant 0 : index
    %31 = vector.load %arg6[%c0_16, %c0_17, %c0_18] : memref<1x1x64xf32, #tpu.memory_space<vmem>>, vector<1x1x64xf32>
    %32 = vector.shape_cast %31 : vector<1x1x64xf32> to vector<1x64xf32>
    %c0_19 = arith.constant 0 : index
    %c0_20 = arith.constant 0 : index
    %c0_21 = arith.constant 0 : index
    %33 = vector.load %arg7[%c0_19, %c0_20, %c0_21] : memref<1x1x64xf32, #tpu.memory_space<vmem>>, vector<1x1x64xf32>
    %34 = vector.shape_cast %33 : vector<1x1x64xf32> to vector<1x64xf32>
    %cst_22 = arith.constant dense<0.000000e+00> : vector<5xf32>
    %35 = vector.multi_reduction <add>, %6, %cst_22 [1] : vector<5x64xf32> to vector<5xf32>
    %36 = vector.shape_cast %35 : vector<5xf32> to vector<5x1xf32>
    %cst_23 = arith.constant 6.400000e+01 : f32
    %37 = vector.broadcast %cst_23 : f32 to vector<5x1xf32>
    %38 = arith.divf %36, %37 : vector<5x1xf32>
    %39 = vector.broadcast %38 : vector<5x1xf32> to vector<5x64xf32>
    %40 = arith.subf %6, %39 : vector<5x64xf32>
    %41 = arith.mulf %40, %40 : vector<5x64xf32>
    %cst_24 = arith.constant dense<0.000000e+00> : vector<5xf32>
    %42 = vector.multi_reduction <add>, %41, %cst_24 [1] : vector<5x64xf32> to vector<5xf32>
    %43 = vector.shape_cast %42 : vector<5xf32> to vector<5x1xf32>
    %cst_25 = arith.constant 6.400000e+01 : f32
    %44 = vector.broadcast %cst_25 : f32 to vector<5x1xf32>
    %45 = arith.divf %43, %44 : vector<5x1xf32>
    %cst_26 = arith.constant 9.99999997E-7 : f32
    %46 = vector.broadcast %cst_26 : f32 to vector<5x1xf32>
    %47 = arith.addf %45, %46 : vector<5x1xf32>
    %48 = math.rsqrt %47 : vector<5x1xf32>
    %49 = vector.broadcast %48 : vector<5x1xf32> to vector<5x64xf32>
    %50 = arith.mulf %40, %49 : vector<5x64xf32>
    %51 = vector.broadcast %32 : vector<1x64xf32> to vector<5x64xf32>
    %52 = arith.mulf %50, %51 : vector<5x64xf32>
    %53 = vector.broadcast %34 : vector<1x64xf32> to vector<5x64xf32>
    %54 = arith.addf %52, %53 : vector<5x64xf32>
    %55 = arith.truncf %54 : vector<5x64xf32> to vector<5x64xbf16>
    %c0_27 = arith.constant 0 : index
    %c0_28 = arith.constant 0 : index
    %c0_29 = arith.constant 0 : index
    %56 = vector.load %arg8[%c0_27, %c0_28, %c0_29] : memref<1x64x64xbf16, #tpu.memory_space<vmem>>, vector<1x64x64xbf16>
    %57 = vector.shape_cast %56 : vector<1x64x64xbf16> to vector<64x64xbf16>
    %cst_30 = arith.constant dense<0.000000e+00> : vector<5x64xf32>
    %58 = tpu.matmul %55, %57, %cst_30 {dimension_numbers = #tpu.dot_dimension_numbers<[1], [0], [0], [1], [0, 0, 1, 1], [], []>} : vector<5x64xbf16>, vector<64x64xbf16>, vector<5x64xf32> -> vector<5x64xf32>
    %c0_31 = arith.constant 0 : index
    %c0_32 = arith.constant 0 : index
    %c0_33 = arith.constant 0 : index
    %59 = vector.load %arg9[%c0_31, %c0_32, %c0_33] : memref<1x1x64xf32, #tpu.memory_space<vmem>>, vector<1x1x64xf32>
    %60 = vector.shape_cast %59 : vector<1x1x64xf32> to vector<1x64xf32>
    %61 = vector.broadcast %60 : vector<1x64xf32> to vector<5x64xf32>
    %62 = arith.addf %58, %61 : vector<5x64xf32>
    %63 = arith.truncf %30 : vector<5x64xf32> to vector<5x64xbf16>
    %c0_34 = arith.constant 0 : index
    %c0_35 = arith.constant 0 : index
    %c0_36 = arith.constant 0 : index
    %64 = vector.load %arg10[%c0_34, %c0_35, %c0_36] : memref<1x64x128xbf16, #tpu.memory_space<vmem>>, vector<1x64x128xbf16>
    %65 = vector.shape_cast %64 : vector<1x64x128xbf16> to vector<64x128xbf16>
    %cst_37 = arith.constant dense<0.000000e+00> : vector<5x128xf32>
    %66 = tpu.matmul %63, %65, %cst_37 {dimension_numbers = #tpu.dot_dimension_numbers<[1], [0], [0], [1], [0, 0, 1, 1], [], []>} : vector<5x64xbf16>, vector<64x128xbf16>, vector<5x128xf32> -> vector<5x128xf32>
    %c0_38 = arith.constant 0 : index
    %c0_39 = arith.constant 0 : index
    %c0_40 = arith.constant 0 : index
    %67 = vector.load %arg11[%c0_38, %c0_39, %c0_40] : memref<1x1x128xf32, #tpu.memory_space<vmem>>, vector<1x1x128xf32>
    %68 = vector.shape_cast %67 : vector<1x1x128xf32> to vector<1x128xf32>
    %69 = vector.broadcast %68 : vector<1x128xf32> to vector<5x128xf32>
    %70 = arith.addf %66, %69 : vector<5x128xf32>
    %71 = vector.extract_strided_slice %70 {offsets = [0, 0], sizes = [5, 64], strides = [1, 1]} : vector<5x128xf32> to vector<5x64xf32>
    %72 = vector.extract_strided_slice %70 {offsets = [0, 64], sizes = [5, 64], strides = [1, 1]} : vector<5x128xf32> to vector<5x64xf32>
    %cst_41 = arith.constant 0.353553385 : f32
    %73 = vector.broadcast %cst_41 : f32 to vector<5x64xf32>
    %74 = arith.mulf %62, %73 : vector<5x64xf32>
    %75 = vector.extract_strided_slice %74 {offsets = [0, 0], sizes = [5, 8], strides = [1, 1]} : vector<5x64xf32> to vector<5x8xf32>
    %76 = vector.extract_strided_slice %74 {offsets = [0, 8], sizes = [5, 8], strides = [1, 1]} : vector<5x64xf32> to vector<5x8xf32>
    %77 = vector.extract_strided_slice %74 {offsets = [0, 16], sizes = [5, 8], strides = [1, 1]} : vector<5x64xf32> to vector<5x8xf32>
    %78 = vector.extract_strided_slice %74 {offsets = [0, 24], sizes = [5, 8], strides = [1, 1]} : vector<5x64xf32> to vector<5x8xf32>
    %79 = vector.extract_strided_slice %74 {offsets = [0, 32], sizes = [5, 8], strides = [1, 1]} : vector<5x64xf32> to vector<5x8xf32>
    %80 = vector.extract_strided_slice %74 {offsets = [0, 40], sizes = [5, 8], strides = [1, 1]} : vector<5x64xf32> to vector<5x8xf32>
    %81 = vector.extract_strided_slice %74 {offsets = [0, 48], sizes = [5, 8], strides = [1, 1]} : vector<5x64xf32> to vector<5x8xf32>
    %82 = vector.extract_strided_slice %74 {offsets = [0, 56], sizes = [5, 8], strides = [1, 1]} : vector<5x64xf32> to vector<5x8xf32>
    %83 = vector.shape_cast %75 : vector<5x8xf32> to vector<1x5x8xf32>
    %84 = vector.shape_cast %76 : vector<5x8xf32> to vector<1x5x8xf32>
    %85 = vector.shape_cast %77 : vector<5x8xf32> to vector<1x5x8xf32>
    %86 = vector.shape_cast %78 : vector<5x8xf32> to vector<1x5x8xf32>
    %87 = vector.shape_cast %79 : vector<5x8xf32> to vector<1x5x8xf32>
    %88 = vector.shape_cast %80 : vector<5x8xf32> to vector<1x5x8xf32>
    %89 = vector.shape_cast %81 : vector<5x8xf32> to vector<1x5x8xf32>
    %90 = vector.shape_cast %82 : vector<5x8xf32> to vector<1x5x8xf32>
    %91 = tpu.concatenate %83, %84, %85, %86, %87, %88, %89, %90 in 0 : vector<1x5x8xf32>, vector<1x5x8xf32>, vector<1x5x8xf32>, vector<1x5x8xf32>, vector<1x5x8xf32>, vector<1x5x8xf32>, vector<1x5x8xf32>, vector<1x5x8xf32> -> vector<8x5x8xf32>
    %92 = arith.truncf %91 : vector<8x5x8xf32> to vector<8x5x8xbf16>
    %93 = vector.extract_strided_slice %71 {offsets = [0, 0], sizes = [5, 8], strides = [1, 1]} : vector<5x64xf32> to vector<5x8xf32>
    %94 = vector.extract_strided_slice %71 {offsets = [0, 8], sizes = [5, 8], strides = [1, 1]} : vector<5x64xf32> to vector<5x8xf32>
    %95 = vector.extract_strided_slice %71 {offsets = [0, 16], sizes = [5, 8], strides = [1, 1]} : vector<5x64xf32> to vector<5x8xf32>
    %96 = vector.extract_strided_slice %71 {offsets = [0, 24], sizes = [5, 8], strides = [1, 1]} : vector<5x64xf32> to vector<5x8xf32>
    %97 = vector.extract_strided_slice %71 {offsets = [0, 32], sizes = [5, 8], strides = [1, 1]} : vector<5x64xf32> to vector<5x8xf32>
    %98 = vector.extract_strided_slice %71 {offsets = [0, 40], sizes = [5, 8], strides = [1, 1]} : vector<5x64xf32> to vector<5x8xf32>
    %99 = vector.extract_strided_slice %71 {offsets = [0, 48], sizes = [5, 8], strides = [1, 1]} : vector<5x64xf32> to vector<5x8xf32>
    %100 = vector.extract_strided_slice %71 {offsets = [0, 56], sizes = [5, 8], strides = [1, 1]} : vector<5x64xf32> to vector<5x8xf32>
    %101 = vector.shape_cast %93 : vector<5x8xf32> to vector<1x5x8xf32>
    %102 = vector.shape_cast %94 : vector<5x8xf32> to vector<1x5x8xf32>
    %103 = vector.shape_cast %95 : vector<5x8xf32> to vector<1x5x8xf32>
    %104 = vector.shape_cast %96 : vector<5x8xf32> to vector<1x5x8xf32>
    %105 = vector.shape_cast %97 : vector<5x8xf32> to vector<1x5x8xf32>
    %106 = vector.shape_cast %98 : vector<5x8xf32> to vector<1x5x8xf32>
    %107 = vector.shape_cast %99 : vector<5x8xf32> to vector<1x5x8xf32>
    %108 = vector.shape_cast %100 : vector<5x8xf32> to vector<1x5x8xf32>
    %109 = tpu.concatenate %101, %102, %103, %104, %105, %106, %107, %108 in 0 : vector<1x5x8xf32>, vector<1x5x8xf32>, vector<1x5x8xf32>, vector<1x5x8xf32>, vector<1x5x8xf32>, vector<1x5x8xf32>, vector<1x5x8xf32>, vector<1x5x8xf32> -> vector<8x5x8xf32>
    %110 = arith.truncf %109 : vector<8x5x8xf32> to vector<8x5x8xbf16>
    %111 = vector.extract_strided_slice %72 {offsets = [0, 0], sizes = [5, 8], strides = [1, 1]} : vector<5x64xf32> to vector<5x8xf32>
    %112 = vector.extract_strided_slice %72 {offsets = [0, 8], sizes = [5, 8], strides = [1, 1]} : vector<5x64xf32> to vector<5x8xf32>
    %113 = vector.extract_strided_slice %72 {offsets = [0, 16], sizes = [5, 8], strides = [1, 1]} : vector<5x64xf32> to vector<5x8xf32>
    %114 = vector.extract_strided_slice %72 {offsets = [0, 24], sizes = [5, 8], strides = [1, 1]} : vector<5x64xf32> to vector<5x8xf32>
    %115 = vector.extract_strided_slice %72 {offsets = [0, 32], sizes = [5, 8], strides = [1, 1]} : vector<5x64xf32> to vector<5x8xf32>
    %116 = vector.extract_strided_slice %72 {offsets = [0, 40], sizes = [5, 8], strides = [1, 1]} : vector<5x64xf32> to vector<5x8xf32>
    %117 = vector.extract_strided_slice %72 {offsets = [0, 48], sizes = [5, 8], strides = [1, 1]} : vector<5x64xf32> to vector<5x8xf32>
    %118 = vector.extract_strided_slice %72 {offsets = [0, 56], sizes = [5, 8], strides = [1, 1]} : vector<5x64xf32> to vector<5x8xf32>
    %119 = vector.shape_cast %111 : vector<5x8xf32> to vector<1x5x8xf32>
    %120 = vector.shape_cast %112 : vector<5x8xf32> to vector<1x5x8xf32>
    %121 = vector.shape_cast %113 : vector<5x8xf32> to vector<1x5x8xf32>
    %122 = vector.shape_cast %114 : vector<5x8xf32> to vector<1x5x8xf32>
    %123 = vector.shape_cast %115 : vector<5x8xf32> to vector<1x5x8xf32>
    %124 = vector.shape_cast %116 : vector<5x8xf32> to vector<1x5x8xf32>
    %125 = vector.shape_cast %117 : vector<5x8xf32> to vector<1x5x8xf32>
    %126 = vector.shape_cast %118 : vector<5x8xf32> to vector<1x5x8xf32>
    %127 = tpu.concatenate %119, %120, %121, %122, %123, %124, %125, %126 in 0 : vector<1x5x8xf32>, vector<1x5x8xf32>, vector<1x5x8xf32>, vector<1x5x8xf32>, vector<1x5x8xf32>, vector<1x5x8xf32>, vector<1x5x8xf32>, vector<1x5x8xf32> -> vector<8x5x8xf32>
    %128 = arith.truncf %127 : vector<8x5x8xf32> to vector<8x5x8xbf16>
    %cst_42 = arith.constant dense<0.000000e+00> : vector<8x5x5xf32>
    %129 = tpu.matmul %92, %110, %cst_42 {dimension_numbers = #tpu.dot_dimension_numbers<[2], [2], [1], [1], [0, 0, 0, 1, 1, 1], [0], [0]>} : vector<8x5x8xbf16>, vector<8x5x8xbf16>, vector<8x5x5xf32> -> vector<8x5x5xf32>
    %cst_43 = arith.constant dense<0xFF800000> : vector<8x5xf32>
    %130 = vector.multi_reduction <maximumf>, %129, %cst_43 [2] : vector<8x5x5xf32> to vector<8x5xf32>
    %131 = vector.shape_cast %130 : vector<8x5xf32> to vector<8x5x1xf32>
    %132 = vector.broadcast %131 : vector<8x5x1xf32> to vector<8x5x5xf32>
    %133 = arith.subf %129, %132 : vector<8x5x5xf32>
    %134 = math.exp %133 : vector<8x5x5xf32>
    %cst_44 = arith.constant dense<0.000000e+00> : vector<8x5xf32>
    %135 = vector.multi_reduction <add>, %134, %cst_44 [2] : vector<8x5x5xf32> to vector<8x5xf32>
    %136 = vector.shape_cast %135 : vector<8x5xf32> to vector<8x5x1xf32>
    %137 = tpu.reciprocal %136 {approx = true} : vector<8x5x1xf32> -> vector<8x5x1xf32>
    %138 = vector.broadcast %137 : vector<8x5x1xf32> to vector<8x5x5xf32>
    %139 = arith.mulf %134, %138 : vector<8x5x5xf32>
    %140 = arith.truncf %139 : vector<8x5x5xf32> to vector<8x5x5xbf16>
    %cst_45 = arith.constant dense<0.000000e+00> : vector<8x5x8xf32>
    %141 = tpu.matmul %140, %128, %cst_45 {dimension_numbers = #tpu.dot_dimension_numbers<[2], [1], [1], [2], [0, 0, 0, 1, 1, 2], [0], [0]>} : vector<8x5x5xbf16>, vector<8x5x8xbf16>, vector<8x5x8xf32> -> vector<8x5x8xf32>
    %142 = vector.extract_strided_slice %141 {offsets = [0, 0, 0], sizes = [1, 5, 8], strides = [1, 1, 1]} : vector<8x5x8xf32> to vector<1x5x8xf32>
    %143 = vector.shape_cast %142 : vector<1x5x8xf32> to vector<5x8xf32>
    %144 = vector.extract_strided_slice %141 {offsets = [1, 0, 0], sizes = [1, 5, 8], strides = [1, 1, 1]} : vector<8x5x8xf32> to vector<1x5x8xf32>
    %145 = vector.shape_cast %144 : vector<1x5x8xf32> to vector<5x8xf32>
    %146 = vector.extract_strided_slice %141 {offsets = [2, 0, 0], sizes = [1, 5, 8], strides = [1, 1, 1]} : vector<8x5x8xf32> to vector<1x5x8xf32>
    %147 = vector.shape_cast %146 : vector<1x5x8xf32> to vector<5x8xf32>
    %148 = vector.extract_strided_slice %141 {offsets = [3, 0, 0], sizes = [1, 5, 8], strides = [1, 1, 1]} : vector<8x5x8xf32> to vector<1x5x8xf32>
    %149 = vector.shape_cast %148 : vector<1x5x8xf32> to vector<5x8xf32>
    %150 = vector.extract_strided_slice %141 {offsets = [4, 0, 0], sizes = [1, 5, 8], strides = [1, 1, 1]} : vector<8x5x8xf32> to vector<1x5x8xf32>
    %151 = vector.shape_cast %150 : vector<1x5x8xf32> to vector<5x8xf32>
    %152 = vector.extract_strided_slice %141 {offsets = [5, 0, 0], sizes = [1, 5, 8], strides = [1, 1, 1]} : vector<8x5x8xf32> to vector<1x5x8xf32>
    %153 = vector.shape_cast %152 : vector<1x5x8xf32> to vector<5x8xf32>
    %154 = vector.extract_strided_slice %141 {offsets = [6, 0, 0], sizes = [1, 5, 8], strides = [1, 1, 1]} : vector<8x5x8xf32> to vector<1x5x8xf32>
    %155 = vector.shape_cast %154 : vector<1x5x8xf32> to vector<5x8xf32>
    %156 = vector.extract_strided_slice %141 {offsets = [7, 0, 0], sizes = [1, 5, 8], strides = [1, 1, 1]} : vector<8x5x8xf32> to vector<1x5x8xf32>
    %157 = vector.shape_cast %156 : vector<1x5x8xf32> to vector<5x8xf32>
    %158 = tpu.concatenate %143, %145, %147, %149, %151, %153, %155, %157 in 1 : vector<5x8xf32>, vector<5x8xf32>, vector<5x8xf32>, vector<5x8xf32>, vector<5x8xf32>, vector<5x8xf32>, vector<5x8xf32>, vector<5x8xf32> -> vector<5x64xf32>
    %159 = arith.truncf %158 : vector<5x64xf32> to vector<5x64xbf16>
    %c0_46 = arith.constant 0 : index
    %c0_47 = arith.constant 0 : index
    %c0_48 = arith.constant 0 : index
    %160 = vector.load %arg12[%c0_46, %c0_47, %c0_48] : memref<1x64x64xbf16, #tpu.memory_space<vmem>>, vector<1x64x64xbf16>
    %161 = vector.shape_cast %160 : vector<1x64x64xbf16> to vector<64x64xbf16>
    %cst_49 = arith.constant dense<0.000000e+00> : vector<5x64xf32>
    %162 = tpu.matmul %159, %161, %cst_49 {dimension_numbers = #tpu.dot_dimension_numbers<[1], [0], [0], [1], [0, 0, 1, 1], [], []>} : vector<5x64xbf16>, vector<64x64xbf16>, vector<5x64xf32> -> vector<5x64xf32>
    %163 = arith.addf %54, %162 : vector<5x64xf32>
    %c0_50 = arith.constant 0 : index
    %c0_51 = arith.constant 0 : index
    %c0_52 = arith.constant 0 : index
    %164 = vector.load %arg13[%c0_50, %c0_51, %c0_52] : memref<1x1x64xf32, #tpu.memory_space<vmem>>, vector<1x1x64xf32>
    %165 = vector.shape_cast %164 : vector<1x1x64xf32> to vector<1x64xf32>
    %166 = vector.broadcast %165 : vector<1x64xf32> to vector<5x64xf32>
    %167 = arith.addf %163, %166 : vector<5x64xf32>
    %c0_53 = arith.constant 0 : index
    %c0_54 = arith.constant 0 : index
    %c0_55 = arith.constant 0 : index
    %168 = vector.load %arg14[%c0_53, %c0_54, %c0_55] : memref<1x1x64xf32, #tpu.memory_space<vmem>>, vector<1x1x64xf32>
    %169 = vector.shape_cast %168 : vector<1x1x64xf32> to vector<1x64xf32>
    %c0_56 = arith.constant 0 : index
    %c0_57 = arith.constant 0 : index
    %c0_58 = arith.constant 0 : index
    %170 = vector.load %arg15[%c0_56, %c0_57, %c0_58] : memref<1x1x64xf32, #tpu.memory_space<vmem>>, vector<1x1x64xf32>
    %171 = vector.shape_cast %170 : vector<1x1x64xf32> to vector<1x64xf32>
    %cst_59 = arith.constant dense<0.000000e+00> : vector<5xf32>
    %172 = vector.multi_reduction <add>, %167, %cst_59 [1] : vector<5x64xf32> to vector<5xf32>
    %173 = vector.shape_cast %172 : vector<5xf32> to vector<5x1xf32>
    %cst_60 = arith.constant 6.400000e+01 : f32
    %174 = vector.broadcast %cst_60 : f32 to vector<5x1xf32>
    %175 = arith.divf %173, %174 : vector<5x1xf32>
    %176 = vector.broadcast %175 : vector<5x1xf32> to vector<5x64xf32>
    %177 = arith.subf %167, %176 : vector<5x64xf32>
    %178 = arith.mulf %177, %177 : vector<5x64xf32>
    %cst_61 = arith.constant dense<0.000000e+00> : vector<5xf32>
    %179 = vector.multi_reduction <add>, %178, %cst_61 [1] : vector<5x64xf32> to vector<5xf32>
    %180 = vector.shape_cast %179 : vector<5xf32> to vector<5x1xf32>
    %cst_62 = arith.constant 6.400000e+01 : f32
    %181 = vector.broadcast %cst_62 : f32 to vector<5x1xf32>
    %182 = arith.divf %180, %181 : vector<5x1xf32>
    %cst_63 = arith.constant 9.99999997E-7 : f32
    %183 = vector.broadcast %cst_63 : f32 to vector<5x1xf32>
    %184 = arith.addf %182, %183 : vector<5x1xf32>
    %185 = math.rsqrt %184 : vector<5x1xf32>
    %186 = vector.broadcast %185 : vector<5x1xf32> to vector<5x64xf32>
    %187 = arith.mulf %177, %186 : vector<5x64xf32>
    %188 = vector.broadcast %169 : vector<1x64xf32> to vector<5x64xf32>
    %189 = arith.mulf %187, %188 : vector<5x64xf32>
    %190 = vector.broadcast %171 : vector<1x64xf32> to vector<5x64xf32>
    %191 = arith.addf %189, %190 : vector<5x64xf32>
    %192 = arith.truncf %191 : vector<5x64xf32> to vector<5x64xbf16>
    %c0_64 = arith.constant 0 : index
    %c0_65 = arith.constant 0 : index
    %c0_66 = arith.constant 0 : index
    %193 = vector.load %arg16[%c0_64, %c0_65, %c0_66] : memref<1x64x256xbf16, #tpu.memory_space<vmem>>, vector<1x64x256xbf16>
    %194 = vector.shape_cast %193 : vector<1x64x256xbf16> to vector<64x256xbf16>
    %cst_67 = arith.constant dense<0.000000e+00> : vector<5x256xf32>
    %195 = tpu.matmul %192, %194, %cst_67 {dimension_numbers = #tpu.dot_dimension_numbers<[1], [0], [0], [1], [0, 0, 1, 1], [], []>} : vector<5x64xbf16>, vector<64x256xbf16>, vector<5x256xf32> -> vector<5x256xf32>
    %c0_68 = arith.constant 0 : index
    %c0_69 = arith.constant 0 : index
    %c0_70 = arith.constant 0 : index
    %196 = vector.load %arg17[%c0_68, %c0_69, %c0_70] : memref<1x1x256xf32, #tpu.memory_space<vmem>>, vector<1x1x256xf32>
    %197 = vector.shape_cast %196 : vector<1x1x256xf32> to vector<1x256xf32>
    %198 = vector.broadcast %197 : vector<1x256xf32> to vector<5x256xf32>
    %199 = arith.addf %195, %198 : vector<5x256xf32>
    %cst_71 = arith.constant 5.000000e-01 : f32
    %200 = vector.broadcast %cst_71 : f32 to vector<5x256xf32>
    %201 = arith.mulf %200, %199 : vector<5x256xf32>
    %cst_72 = arith.constant 4.471500e-02 : f32
    %202 = vector.broadcast %cst_72 : f32 to vector<5x256xf32>
    %203 = arith.mulf %202, %199 : vector<5x256xf32>
    %204 = arith.mulf %203, %199 : vector<5x256xf32>
    %205 = arith.mulf %204, %199 : vector<5x256xf32>
    %206 = arith.addf %199, %205 : vector<5x256xf32>
    %cst_73 = arith.constant 0.797884583 : f32
    %207 = vector.broadcast %cst_73 : f32 to vector<5x256xf32>
    %208 = arith.mulf %207, %206 : vector<5x256xf32>
    %209 = math.tanh %208 : vector<5x256xf32>
    %cst_74 = arith.constant 1.000000e+00 : f32
    %210 = vector.broadcast %cst_74 : f32 to vector<5x256xf32>
    %211 = arith.addf %210, %209 : vector<5x256xf32>
    %212 = arith.mulf %201, %211 : vector<5x256xf32>
    %213 = arith.truncf %212 : vector<5x256xf32> to vector<5x256xbf16>
    %c0_75 = arith.constant 0 : index
    %c0_76 = arith.constant 0 : index
    %c0_77 = arith.constant 0 : index
    %214 = vector.load %arg18[%c0_75, %c0_76, %c0_77] : memref<1x256x64xbf16, #tpu.memory_space<vmem>>, vector<1x256x64xbf16>
    %215 = vector.shape_cast %214 : vector<1x256x64xbf16> to vector<256x64xbf16>
    %cst_78 = arith.constant dense<0.000000e+00> : vector<5x64xf32>
    %216 = tpu.matmul %213, %215, %cst_78 {dimension_numbers = #tpu.dot_dimension_numbers<[1], [0], [0], [1], [0, 0, 1, 1], [], []>} : vector<5x256xbf16>, vector<256x64xbf16>, vector<5x64xf32> -> vector<5x64xf32>
    %217 = arith.addf %167, %216 : vector<5x64xf32>
    %c0_79 = arith.constant 0 : index
    %c0_80 = arith.constant 0 : index
    %c0_81 = arith.constant 0 : index
    %218 = vector.load %arg19[%c0_79, %c0_80, %c0_81] : memref<1x1x64xf32, #tpu.memory_space<vmem>>, vector<1x1x64xf32>
    %219 = vector.shape_cast %218 : vector<1x1x64xf32> to vector<1x64xf32>
    %220 = vector.broadcast %219 : vector<1x64xf32> to vector<5x64xf32>
    %221 = arith.addf %217, %220 : vector<5x64xf32>
    %c5_i32 = arith.constant 5 : i32
    %222 = arith.cmpi slt, %arg1, %c5_i32 : i32
    %223 = arith.extui %222 : i1 to i32
    %c0_i32_82 = arith.constant 0 : i32
    %224 = arith.cmpi ne, %223, %c0_i32_82 : i32
    scf.if %224 {
      %c0_85 = arith.constant 0 : index
      %c0_86 = arith.constant 0 : index
      %c0_87 = arith.constant 0 : index
      %228 = vector.load %arg22[%c0_85, %c0_86, %c0_87] : memref<1x5x64xf32, #tpu.memory_space<vmem>>, vector<1x5x64xf32>
      %229 = vector.shape_cast %228 : vector<1x5x64xf32> to vector<5x64xf32>
      %230 = vector.shape_cast %221 : vector<5x64xf32> to vector<1x5x64xf32>
      tpu.vector_store %arg22[%c0_85, %c0_86, %c0_87], %230 {strides = array<i32>} : memref<1x5x64xf32, #tpu.memory_space<vmem>>, vector<1x5x64xf32>,
    } else {
    }
    %c5_i32_83 = arith.constant 5 : i32
    %225 = arith.cmpi eq, %arg1, %c5_i32_83 : i32
    %226 = arith.extui %225 : i1 to i32
    %c0_i32_84 = arith.constant 0 : i32
    %227 = arith.cmpi ne, %226, %c0_i32_84 : i32
    scf.if %227 {
      %c0_85 = arith.constant 0 : index
      %c0_86 = arith.constant 0 : index
      %228 = vector.load %arg20[%c0_85, %c0_86] : memref<1x64xf32, #tpu.memory_space<vmem>>, vector<1x64xf32>
      %c0_87 = arith.constant 0 : index
      %c0_88 = arith.constant 0 : index
      %229 = vector.load %arg21[%c0_87, %c0_88] : memref<1x64xf32, #tpu.memory_space<vmem>>, vector<1x64xf32>
      %cst_89 = arith.constant dense<0.000000e+00> : vector<5xf32>
      %230 = vector.multi_reduction <add>, %221, %cst_89 [1] : vector<5x64xf32> to vector<5xf32>
      %231 = vector.shape_cast %230 : vector<5xf32> to vector<5x1xf32>
      %cst_90 = arith.constant 6.400000e+01 : f32
      %232 = vector.broadcast %cst_90 : f32 to vector<5x1xf32>
      %233 = arith.divf %231, %232 : vector<5x1xf32>
      %234 = vector.broadcast %233 : vector<5x1xf32> to vector<5x64xf32>
      %235 = arith.subf %221, %234 : vector<5x64xf32>
      %236 = arith.mulf %235, %235 : vector<5x64xf32>
      %cst_91 = arith.constant dense<0.000000e+00> : vector<5xf32>
      %237 = vector.multi_reduction <add>, %236, %cst_91 [1] : vector<5x64xf32> to vector<5xf32>
      %238 = vector.shape_cast %237 : vector<5xf32> to vector<5x1xf32>
      %cst_92 = arith.constant 6.400000e+01 : f32
      %239 = vector.broadcast %cst_92 : f32 to vector<5x1xf32>
      %240 = arith.divf %238, %239 : vector<5x1xf32>
      %cst_93 = arith.constant 9.99999997E-7 : f32
      %241 = vector.broadcast %cst_93 : f32 to vector<5x1xf32>
      %242 = arith.addf %240, %241 : vector<5x1xf32>
      %243 = math.rsqrt %242 : vector<5x1xf32>
      %244 = vector.broadcast %243 : vector<5x1xf32> to vector<5x64xf32>
      %245 = arith.mulf %235, %244 : vector<5x64xf32>
      %246 = vector.broadcast %228 : vector<1x64xf32> to vector<5x64xf32>
      %247 = arith.mulf %245, %246 : vector<5x64xf32>
      %248 = vector.broadcast %229 : vector<1x64xf32> to vector<5x64xf32>
      %249 = arith.addf %247, %248 : vector<5x64xf32>
      %c0_94 = arith.constant 0 : index
      %c0_95 = arith.constant 0 : index
      %c0_96 = arith.constant 0 : index
      %250 = vector.load %arg22[%c0_94, %c0_95, %c0_96] : memref<1x5x64xf32, #tpu.memory_space<vmem>>, vector<1x5x64xf32>
      %251 = vector.shape_cast %250 : vector<1x5x64xf32> to vector<5x64xf32>
      %252 = vector.shape_cast %249 : vector<5x64xf32> to vector<1x5x64xf32>
      tpu.vector_store %arg22[%c0_94, %c0_95, %c0_96], %252 {strides = array<i32>} : memref<1x5x64xf32, #tpu.memory_space<vmem>>, vector<1x5x64xf32>,
    } else {
    }
    return
  }
  func.func @transform_0(%arg0: i32, %arg1: i32) -> (i32, i32, i32) {
    %c0_i32 = arith.constant 0 : i32
    %c0_i32_0 = arith.constant 0 : i32
    %c0_i32_1 = arith.constant 0 : i32
    return %arg0, %c0_i32, %c0_i32_0 : i32, i32, i32
  }
  func.func @transform_1(%arg0: i32, %arg1: i32) -> (i32, i32, i32) {
    %c0_i32 = arith.constant 0 : i32
    %c0_i32_0 = arith.constant 0 : i32
    %c0_i32_1 = arith.constant 0 : i32
    return %arg0, %c0_i32, %c0_i32_0 : i32, i32, i32
  }
  func.func @transform_2(%arg0: i32, %arg1: i32) -> (i32, i32, i32) {
    %c0_i32 = arith.constant 0 : i32
    %c0_i32_0 = arith.constant 0 : i32
    %c0_i32_1 = arith.constant 0 : i32
    return %arg1, %c0_i32, %c0_i32_0 : i32, i32, i32
  }
  func.func @transform_3(%arg0: i32, %arg1: i32) -> (i32, i32, i32) {
    %c0_i32 = arith.constant 0 : i32
    %c0_i32_0 = arith.constant 0 : i32
    %c0_i32_1 = arith.constant 0 : i32
    return %arg1, %c0_i32, %c0_i32_0 : i32, i32, i32
  }
  func.func @transform_4(%arg0: i32, %arg1: i32) -> (i32, i32, i32) {
    %c0_i32 = arith.constant 0 : i32
    %c0_i32_0 = arith.constant 0 : i32
    %c0_i32_1 = arith.constant 0 : i32
    return %arg1, %c0_i32, %c0_i32_0 : i32, i32, i32
  }
  func.func @transform_5(%arg0: i32, %arg1: i32) -> (i32, i32, i32) {
    %c0_i32 = arith.constant 0 : i32
    %c0_i32_0 = arith.constant 0 : i32
    %c0_i32_1 = arith.constant 0 : i32
    return %arg1, %c0_i32, %c0_i32_0 : i32, i32, i32
  }
  func.func @transform_6(%arg0: i32, %arg1: i32) -> (i32, i32, i32) {
    %c0_i32 = arith.constant 0 : i32
    %c0_i32_0 = arith.constant 0 : i32
    %c0_i32_1 = arith.constant 0 : i32
    return %arg1, %c0_i32, %c0_i32_0 : i32, i32, i32
  }
  func.func @transform_7(%arg0: i32, %arg1: i32) -> (i32, i32, i32) {
    %c0_i32 = arith.constant 0 : i32
    %c0_i32_0 = arith.constant 0 : i32
    %c0_i32_1 = arith.constant 0 : i32
    return %arg1, %c0_i32, %c0_i32_0 : i32, i32, i32
  }
  func.func @transform_8(%arg0: i32, %arg1: i32) -> (i32, i32, i32) {
    %c0_i32 = arith.constant 0 : i32
    %c0_i32_0 = arith.constant 0 : i32
    %c0_i32_1 = arith.constant 0 : i32
    return %arg1, %c0_i32, %c0_i32_0 : i32, i32, i32
  }
  func.func @transform_9(%arg0: i32, %arg1: i32) -> (i32, i32, i32) {
    %c0_i32 = arith.constant 0 : i32
    %c0_i32_0 = arith.constant 0 : i32
    %c0_i32_1 = arith.constant 0 : i32
    return %arg1, %c0_i32, %c0_i32_0 : i32, i32, i32
  }
  func.func @transform_10(%arg0: i32, %arg1: i32) -> (i32, i32, i32) {
    %c0_i32 = arith.constant 0 : i32
    %c0_i32_0 = arith.constant 0 : i32
    %c0_i32_1 = arith.constant 0 : i32
    return %arg1, %c0_i32, %c0_i32_0 : i32, i32, i32
  }
  func.func @transform_11(%arg0: i32, %arg1: i32) -> (i32, i32, i32) {
    %c0_i32 = arith.constant 0 : i32
    %c0_i32_0 = arith.constant 0 : i32
    %c0_i32_1 = arith.constant 0 : i32
    return %arg1, %c0_i32, %c0_i32_0 : i32, i32, i32
  }
  func.func @transform_12(%arg0: i32, %arg1: i32) -> (i32, i32, i32) {
    %c0_i32 = arith.constant 0 : i32
    %c0_i32_0 = arith.constant 0 : i32
    %c0_i32_1 = arith.constant 0 : i32
    return %arg1, %c0_i32, %c0_i32_0 : i32, i32, i32
  }
  func.func @transform_13(%arg0: i32, %arg1: i32) -> (i32, i32, i32) {
    %c0_i32 = arith.constant 0 : i32
    %c0_i32_0 = arith.constant 0 : i32
    %c0_i32_1 = arith.constant 0 : i32
    return %arg1, %c0_i32, %c0_i32_0 : i32, i32, i32
  }
  func.func @transform_14(%arg0: i32, %arg1: i32) -> (i32, i32, i32) {
    %c0_i32 = arith.constant 0 : i32
    %c0_i32_0 = arith.constant 0 : i32
    %c0_i32_1 = arith.constant 0 : i32
    return %arg1, %c0_i32, %c0_i32_0 : i32, i32, i32
  }
  func.func @transform_15(%arg0: i32, %arg1: i32) -> (i32, i32, i32) {
    %c0_i32 = arith.constant 0 : i32
    %c0_i32_0 = arith.constant 0 : i32
    %c0_i32_1 = arith.constant 0 : i32
    return %arg1, %c0_i32, %c0_i32_0 : i32, i32, i32
  }
  func.func @transform_16(%arg0: i32, %arg1: i32) -> (i32, i32, i32) {
    %c0_i32 = arith.constant 0 : i32
    %c0_i32_0 = arith.constant 0 : i32
    %c0_i32_1 = arith.constant 0 : i32
    return %arg1, %c0_i32, %c0_i32_0 : i32, i32, i32
  }
  func.func @transform_17(%arg0: i32, %arg1: i32) -> (i32, i32, i32) {
    %c0_i32 = arith.constant 0 : i32
    %c0_i32_0 = arith.constant 0 : i32
    %c0_i32_1 = arith.constant 0 : i32
    return %arg1, %c0_i32, %c0_i32_0 : i32, i32, i32
  }
  func.func @transform_18(%arg0: i32, %arg1: i32) -> (i32, i32) {
    %c0_i32 = arith.constant 0 : i32
    %c0_i32_0 = arith.constant 0 : i32
    %c0_i32_1 = arith.constant 0 : i32
    return %c0_i32, %c0_i32_0 : i32, i32
  }
  func.func @transform_19(%arg0: i32, %arg1: i32) -> (i32, i32) {
    %c0_i32 = arith.constant 0 : i32
    %c0_i32_0 = arith.constant 0 : i32
    %c0_i32_1 = arith.constant 0 : i32
    return %c0_i32, %c0_i32_0 : i32, i32
  }
  func.func @transform_20(%arg0: i32, %arg1: i32) -> (i32, i32, i32) {
    %c0_i32 = arith.constant 0 : i32
    %c0_i32_0 = arith.constant 0 : i32
    %c0_i32_1 = arith.constant 0 : i32
    return %arg0, %c0_i32, %c0_i32_0 : i32, i32, i32
  }
}

module attributes {stable_mosaic.version = 11 : i64} {
  func.func @_heads_kernel(%arg0: i32, %arg1: memref<2x128xf32, #tpu.memory_space<vmem>>, %arg2: memref<128x5xf32, #tpu.memory_space<vmem>>, %arg3: memref<1x5xf32, #tpu.memory_space<vmem>>, %arg4: memref<2x5xf32, #tpu.memory_space<vmem>>) attributes {dimension_semantics = [#tpu.dimension_semantics<arbitrary>], iteration_bounds = array<i64: 1>, scalar_prefetch = 0 : i64, scratch_operands = 0 : i64, tpu.core_type = #tpu.core_type<tc>, window_params = [{pipeline_mode = #tpu.pipeline_mode<synchronous>, transform_indices = @transform_0, window_bounds = array<i64: 2, 128>}, {pipeline_mode = #tpu.pipeline_mode<synchronous>, transform_indices = @transform_1, window_bounds = array<i64: 128, 5>}, {pipeline_mode = #tpu.pipeline_mode<synchronous>, transform_indices = @transform_2, window_bounds = array<i64: 1, 5>}, {pipeline_mode = #tpu.pipeline_mode<synchronous>, transform_indices = @transform_3, window_bounds = array<i64: 2, 5>}]} {
    %c0 = arith.constant 0 : index
    %c0_0 = arith.constant 0 : index
    %0 = vector.load %arg1[%c0, %c0_0] : memref<2x128xf32, #tpu.memory_space<vmem>>, vector<2x128xf32>
    %c0_1 = arith.constant 0 : index
    %c0_2 = arith.constant 0 : index
    %1 = vector.load %arg2[%c0_1, %c0_2] : memref<128x5xf32, #tpu.memory_space<vmem>>, vector<128x5xf32>
    %cst = arith.constant dense<0.000000e+00> : vector<2x5xf32>
    %2 = tpu.matmul %0, %1, %cst {dimension_numbers = #tpu.dot_dimension_numbers<[1], [0], [0], [1], [0, 0, 1, 1], [], []>} : vector<2x128xf32>, vector<128x5xf32>, vector<2x5xf32> -> vector<2x5xf32>
    %c0_3 = arith.constant 0 : index
    %c0_4 = arith.constant 0 : index
    %3 = vector.load %arg3[%c0_3, %c0_4] : memref<1x5xf32, #tpu.memory_space<vmem>>, vector<1x5xf32>
    %4 = vector.broadcast %3 : vector<1x5xf32> to vector<2x5xf32>
    %5 = arith.addf %2, %4 : vector<2x5xf32>
    %6 = vector.extract_strided_slice %5 {offsets = [0, 0], sizes = [2, 3], strides = [1, 1]} : vector<2x5xf32> to vector<2x3xf32>
    %7 = vector.extract_strided_slice %5 {offsets = [0, 3], sizes = [2, 1], strides = [1, 1]} : vector<2x5xf32> to vector<2x1xf32>
    %8 = vector.extract_strided_slice %5 {offsets = [0, 4], sizes = [2, 1], strides = [1, 1]} : vector<2x5xf32> to vector<2x1xf32>
    %cst_5 = arith.constant 0.000000e+00 : f32
    %9 = vector.broadcast %cst_5 : f32 to vector<2x1xf32>
    %10 = arith.subf %9, %7 : vector<2x1xf32>
    %11 = math.exp %10 : vector<2x1xf32>
    %cst_6 = arith.constant 1.000000e+00 : f32
    %12 = vector.broadcast %cst_6 : f32 to vector<2x1xf32>
    %13 = arith.addf %12, %11 : vector<2x1xf32>
    %cst_7 = arith.constant 3.000000e+00 : f32
    %14 = vector.broadcast %cst_7 : f32 to vector<2x1xf32>
    %15 = arith.divf %14, %13 : vector<2x1xf32>
    %cst_8 = arith.constant 4.000000e+00 : f32
    %16 = vector.broadcast %cst_8 : f32 to vector<2x1xf32>
    %17 = arith.subf %16, %15 : vector<2x1xf32>
    %cst_9 = arith.constant 0.000000e+00 : f32
    %18 = vector.broadcast %cst_9 : f32 to vector<2x1xf32>
    %19 = arith.subf %18, %8 : vector<2x1xf32>
    %20 = math.exp %19 : vector<2x1xf32>
    %cst_10 = arith.constant 1.000000e+00 : f32
    %21 = vector.broadcast %cst_10 : f32 to vector<2x1xf32>
    %22 = arith.addf %21, %20 : vector<2x1xf32>
    %23 = arith.divf %17, %22 : vector<2x1xf32>
    %24 = tpu.concatenate %6, %15, %23 in 1 : vector<2x3xf32>, vector<2x1xf32>, vector<2x1xf32> -> vector<2x5xf32>
    %c0_11 = arith.constant 0 : index
    %c0_12 = arith.constant 0 : index
    %25 = vector.load %arg4[%c0_11, %c0_12] : memref<2x5xf32, #tpu.memory_space<vmem>>, vector<2x5xf32>
    tpu.vector_store %arg4[%c0_11, %c0_12], %24 {strides = array<i32>} : memref<2x5xf32, #tpu.memory_space<vmem>>, vector<2x5xf32>,
    return
  }
  func.func @transform_0(%arg0: i32) -> (i32, i32) {
    %c0_i32 = arith.constant 0 : i32
    %c0_i32_0 = arith.constant 0 : i32
    %c0_i32_1 = arith.constant 0 : i32
    return %c0_i32, %c0_i32_0 : i32, i32
  }
  func.func @transform_1(%arg0: i32) -> (i32, i32) {
    %c0_i32 = arith.constant 0 : i32
    %c0_i32_0 = arith.constant 0 : i32
    %c0_i32_1 = arith.constant 0 : i32
    return %c0_i32, %c0_i32_0 : i32, i32
  }
  func.func @transform_2(%arg0: i32) -> (i32, i32) {
    %c0_i32 = arith.constant 0 : i32
    %c0_i32_0 = arith.constant 0 : i32
    %c0_i32_1 = arith.constant 0 : i32
    return %c0_i32, %c0_i32_0 : i32, i32
  }
  func.func @transform_3(%arg0: i32) -> (i32, i32) {
    %c0_i32 = arith.constant 0 : i32
    %c0_i32_0 = arith.constant 0 : i32
    %c0_i32_1 = arith.constant 0 : i32
    return %c0_i32, %c0_i32_0 : i32, i32
  }
}

</mosaic_0001>

<llo_original>
// kernel: model_forward.4
$region0: #{model_forward.4}
  #allocation0 [shape = 'u32[]', space=smem, size = 0x4, offset = 0x4, fixed_abs, tag = 'smem constant byte address 0x4 - core index']
  #allocation1 [shape = 'u32[144,128]{1,0:T(1,128)}', space=vmem, size = 0x12000, scoped, tag = 'internal scratch']
  %s0 = inlined_call_operand.vmem [shape: f32[16,384], index: 0, kind: input, shape index: {}]
  %s1 = inlined_call_operand.vmem [shape: bf16[384,64], index: 1, kind: input, shape index: {}]
  %s2 = inlined_call_operand.vmem [shape: f32[1,64], index: 2, kind: input, shape index: {}]
  %s3 = inlined_call_operand.vmem [shape: f32[16,64], index: 3, kind: output, shape index: {}]
  %s4 = sld [smem:[#allocation0]]
  $region22: #{model_forward.4} parent=0
    _
  %s6 = ssub.s32 1, %s4
  %s7 = scalar_select 0, %s6, %s4
  // Predicated region
  $region2: #{model_forward.4} parent=0 // pred_check
    _
  $region3: #{model_forward.4} parent=0 // pred_check_branch
    %9 = sbr.rel (0) target = $region5
  $region4: #{model_forward.4} parent=0 // pred_region
    _
  $region5: #{model_forward.4} parent=0 // pred_fallthru
    _
  // Predicated region
  $region6: #{model_forward.4} parent=0 // pred_check
    _
  $region7: #{model_forward.4} parent=0 // pred_check_branch
    %11 = sbr.rel (0) target = $region9
  $region8: #{model_forward.4} parent=0 // pred_region
    _
  $region9: #{model_forward.4} parent=0 // pred_fallthru
    _
  // Predicated region
  $region10: #{model_forward.4} parent=0 // pred_check
    _
  $region11: #{model_forward.4} parent=0 // pred_check_branch
    %13 = sbr.rel (0) target = $region13
  $region12: #{model_forward.4} parent=0 // pred_region
    _
  $region13: #{model_forward.4} parent=0 // pred_fallthru
    _
  %v15 = vld [vmem:[%s0] sm:$0xff]
  %v16 = vld [vmem:[%s0 + $0x8] sm:$0xff]
  %v17 = vld [vmem:[%s0 + $0x10] sm:$0xff]
  %v18 = vld [vmem:[%s0 + $0x18] sm:$0xff]
  %v19 = vld [vmem:[%s0 + $0x20] sm:$0xff]
  %v20 = vld [vmem:[%s0 + $0x28] sm:$0xff]
  %v21 = vpack.c.bf16 %v18, %v15
  %v22 = vpack.c.bf16 %v19, %v16
  %v23 = vpack.c.bf16 %v20, %v17
  %v24 = vld [vmem:[%s1] sm:$0xf]
  %v25 = vld [vmem:[%s1 + $0x4] sm:$0xf]
  %v26 = vld [vmem:[%s1 + $0x8] sm:$0xf]
  %v27 = vld [vmem:[%s1 + $0xc] sm:$0xf]
  %v28 = vld [vmem:[%s1 + $0x10] sm:$0xf]
  %v29 = vld [vmem:[%s1 + $0x14] sm:$0xf]
  %v30 = vld [vmem:[%s1 + $0x18] sm:$0xf]
  %v31 = vld [vmem:[%s1 + $0x1c] sm:$0xf]
  %v32 = vld [vmem:[%s1 + $0x20] sm:$0xf]
  %v33 = vld [vmem:[%s1 + $0x24] sm:$0xf]
  %v34 = vld [vmem:[%s1 + $0x28] sm:$0xf]
  %v35 = vld [vmem:[%s1 + $0x2c] sm:$0xf]
  %v36 = vld [vmem:[%s1 + $0x30] sm:$0xf]
  %v37 = vld [vmem:[%s1 + $0x34] sm:$0xf]
  %v38 = vld [vmem:[%s1 + $0x38] sm:$0xf]
  %v39 = vld [vmem:[%s1 + $0x3c] sm:$0xf]
  %v40 = vld [vmem:[%s1 + $0x40] sm:$0xf]
  %v41 = vld [vmem:[%s1 + $0x44] sm:$0xf]
  %v42 = vld [vmem:[%s1 + $0x48] sm:$0xf]
  %v43 = vld [vmem:[%s1 + $0x4c] sm:$0xf]
  %v44 = vld [vmem:[%s1 + $0x50] sm:$0xf]
  %v45 = vld [vmem:[%s1 + $0x54] sm:$0xf]
  %v46 = vld [vmem:[%s1 + $0x58] sm:$0xf]
  %v47 = vld [vmem:[%s1 + $0x5c] sm:$0xf]
  %v48 = vld [vmem:[%s1 + $0x60] sm:$0xf]
  %v49 = vld [vmem:[%s1 + $0x64] sm:$0xf]
  %v50 = vld [vmem:[%s1 + $0x68] sm:$0xf]
  %v51 = vld [vmem:[%s1 + $0x6c] sm:$0xf]
  %v52 = vld [vmem:[%s1 + $0x70] sm:$0xf]
  %v53 = vld [vmem:[%s1 + $0x74] sm:$0xf]
  %v54 = vld [vmem:[%s1 + $0x78] sm:$0xf]
  %v55 = vld [vmem:[%s1 + $0x7c] sm:$0xf]
  %v56 = vld [vmem:[%s1 + $0x80] sm:$0xf]
  %v57 = vld [vmem:[%s1 + $0x84] sm:$0xf]
  %v58 = vld [vmem:[%s1 + $0x88] sm:$0xf]
  %v59 = vld [vmem:[%s1 + $0x8c] sm:$0xf]
  %v60 = vld [vmem:[%s1 + $0x90] sm:$0xf]
  %v61 = vld [vmem:[%s1 + $0x94] sm:$0xf]
  %v62 = vld [vmem:[%s1 + $0x98] sm:$0xf]
  %v63 = vld [vmem:[%s1 + $0x9c] sm:$0xf]
  %v64 = vld [vmem:[%s1 + $0xa0] sm:$0xf]
  %v65 = vld [vmem:[%s1 + $0xa4] sm:$0xf]
  %v66 = vld [vmem:[%s1 + $0xa8] sm:$0xf]
  %v67 = vld [vmem:[%s1 + $0xac] sm:$0xf]
  %v68 = vld [vmem:[%s1 + $0xb0] sm:$0xf]
  %v69 = vld [vmem:[%s1 + $0xb4] sm:$0xf]
  %v70 = vld [vmem:[%s1 + $0xb8] sm:$0xf]
  %v71 = vld [vmem:[%s1 + $0xbc] sm:$0xf]
  %v72 = vld [vmem:[%s2] sm:$0x1]
  %v74 = vlaneseq
  %v75 = vshrl.u32 %v74, 7
  %v76 = vsub.s32 0, %v75
  %v77 = vrot.slane %v72, %v76
  %v127 = vunpack.c.l.b16 %v24
  %v128 = vunpack.c.l.b16 %v25
  %v129 = vunpack.c.l.b16 %v26
  %v130 = vunpack.c.l.b16 %v27
  %v131 = vunpack.c.l.b16 %v28
  %v132 = vunpack.c.l.b16 %v29
  %v133 = vunpack.c.l.b16 %v30
  %v134 = vunpack.c.l.b16 %v31
  %v135 = vunpack.c.l.b16 %v32
  %v136 = vunpack.c.l.b16 %v33
  %v137 = vunpack.c.l.b16 %v34
  %v138 = vunpack.c.l.b16 %v35
  %v139 = vunpack.c.l.b16 %v36
  %v140 = vunpack.c.l.b16 %v37
  %v141 = vunpack.c.l.b16 %v38
  %v142 = vunpack.c.l.b16 %v39
  %v143 = vunpack.c.l.b16 %v40
  %v144 = vunpack.c.l.b16 %v41
  %v145 = vunpack.c.l.b16 %v42
  %v146 = vunpack.c.l.b16 %v43
  %v147 = vunpack.c.l.b16 %v44
  %v148 = vunpack.c.l.b16 %v45
  %v149 = vunpack.c.l.b16 %v46
  %v150 = vunpack.c.l.b16 %v47
  %v151 = vunpack.c.l.b16 %v48
  %v152 = vunpack.c.l.b16 %v49
  %v153 = vunpack.c.l.b16 %v50
  %v154 = vunpack.c.l.b16 %v51
  %v155 = vunpack.c.l.b16 %v52
  %v156 = vunpack.c.l.b16 %v53
  %v157 = vunpack.c.l.b16 %v54
  %v158 = vunpack.c.l.b16 %v55
  %v159 = vunpack.c.l.b16 %v56
  %v160 = vunpack.c.l.b16 %v57
  %v161 = vunpack.c.l.b16 %v58
  %v162 = vunpack.c.l.b16 %v59
  %v163 = vunpack.c.l.b16 %v60
  %v164 = vunpack.c.l.b16 %v61
  %v165 = vunpack.c.l.b16 %v62
  %v166 = vunpack.c.l.b16 %v63
  %v167 = vunpack.c.l.b16 %v64
  %v168 = vunpack.c.l.b16 %v65
  %v169 = vunpack.c.l.b16 %v66
  %v170 = vunpack.c.l.b16 %v67
  %v171 = vunpack.c.l.b16 %v68
  %v172 = vunpack.c.l.b16 %v69
  %v173 = vunpack.c.l.b16 %v70
  %v174 = vunpack.c.l.b16 %v71
  %v175 = vpack.c.b16 %v128, %v127
  %v176 = vpack.c.b16 %v130, %v129
  %v177 = vpack.c.b16 %v132, %v131
  %v178 = vpack.c.b16 %v134, %v133
  %v179 = vpack.c.b16 %v136, %v135
  %v180 = vpack.c.b16 %v138, %v137
  %v181 = vpack.c.b16 %v140, %v139
  %v182 = vpack.c.b16 %v142, %v141
  %v183 = vpack.c.b16 %v144, %v143
  %v184 = vpack.c.b16 %v146, %v145
  %v185 = vpack.c.b16 %v148, %v147
  %v186 = vpack.c.b16 %v150, %v149
  %v187 = vpack.c.b16 %v152, %v151
  %v188 = vpack.c.b16 %v154, %v153
  %v189 = vpack.c.b16 %v156, %v155
  %v190 = vpack.c.b16 %v158, %v157
  %v191 = vpack.c.b16 %v160, %v159
  %v192 = vpack.c.b16 %v162, %v161
  %v193 = vpack.c.b16 %v164, %v163
  %v194 = vpack.c.b16 %v166, %v165
  %v195 = vpack.c.b16 %v168, %v167
  %v196 = vpack.c.b16 %v170, %v169
  %v197 = vpack.c.b16 %v172, %v171
  %v198 = vpack.c.b16 %v174, %v173
  %223 = vmatprep.subr.bf16.mxu0 0
  %224 = vmatpush1.bf16.msra.mxu0 %v175
  %225 = vmatprep.subr.bf16.mxu0 0
  %226 = vmatpush1.bf16.msra.mxu0 %v176
  %227 = vmatprep.subr.bf16.mxu0 0
  %228 = vmatpush1.bf16.msra.mxu0 %v177
  %229 = vmatprep.subr.bf16.mxu0 0
  %230 = vmatpush1.bf16.msra.mxu0 %v178
  %231 = vmatprep.subr.bf16.mxu0 0
  %232 = vmatpush1.bf16.msra.mxu0 %v179
  %233 = vmatprep.subr.bf16.mxu0 0
  %234 = vmatpush1.bf16.msra.mxu0 %v180
  %235 = vmatprep.subr.bf16.mxu0 0
  %236 = vmatpush1.bf16.msra.mxu0 %v181
  %237 = vmatprep.subr.bf16.mxu0 0
  %238 = vmatpush1.bf16.msra.mxu0 %v182
  %239 = vmatprep.subr.bf16.mxu0 0
  %240 = vmatpush1.bf16.msra.mxu0 %v183
  %241 = vmatprep.subr.bf16.mxu0 0
  %242 = vmatpush1.bf16.msra.mxu0 %v184
  %243 = vmatprep.subr.bf16.mxu0 0
  %244 = vmatpush1.bf16.msra.mxu0 %v185
  %245 = vmatprep.subr.bf16.mxu0 0
  %246 = vmatpush1.bf16.msra.mxu0 %v186
  %247 = vmatprep.subr.bf16.mxu0 0
  %248 = vmatpush1.bf16.msra.mxu0 %v187
  %249 = vmatprep.subr.bf16.mxu0 0
  %250 = vmatpush1.bf16.msra.mxu0 %v188
  %251 = vmatprep.subr.bf16.mxu0 0
  %252 = vmatpush1.bf16.msra.mxu0 %v189
  %253 = vmatprep.subr.bf16.mxu0 0
  %254 = vmatpush1.bf16.msra.mxu0 %v190
  %255 = vmatprep.mubr.bf16.mxu0 %v22
  %256 = vmatmul.mubr.bf16.gmra.mrb[0].mxu0 %v21
  %v257 = vpop.f32.mrb[0].mxu0
  %v258 = vadd.f32 %v77, %v257
  %v259 = vpop.f32.mrb[0].mxu0
  %v260 = vpop.f32.mrb[0].mxu0
  %v261 = vadd.f32 %v77, %v260
  %v262 = vpop.f32.mrb[0].mxu0
  %263 = vdwg.mxu0
  %264 = vmatprep.subr.bf16.mxu0 0
  %265 = vmatpush1.bf16.msra.mxu0 %v191
  %266 = vmatprep.subr.bf16.mxu0 0
  %267 = vmatpush1.bf16.msra.mxu0 %v192
  %268 = vmatprep.subr.bf16.mxu0 0
  %269 = vmatpush1.bf16.msra.mxu0 %v193
  %270 = vmatprep.subr.bf16.mxu0 0
  %271 = vmatpush1.bf16.msra.mxu0 %v194
  %272 = vmatprep.subr.bf16.mxu0 0
  %273 = vmatpush1.bf16.msra.mxu0 %v195
  %274 = vmatprep.subr.bf16.mxu0 0
  %275 = vmatpush1.bf16.msra.mxu0 %v196
  %276 = vmatprep.subr.bf16.mxu0 0
  %277 = vmatpush1.bf16.msra.mxu0 %v197
  %278 = vmatprep.subr.bf16.mxu0 0
  %279 = vmatpush1.bf16.msra.mxu0 %v198
  %280 = vmatprep.subr.bf16.mxu0 0
  %281 = vmatpush1.bf16.msra.mxu0 0
  %282 = vmatprep.subr.bf16.mxu0 0
  %283 = vmatpush1.bf16.msra.mxu0 0
  %284 = vmatprep.subr.bf16.mxu0 0
  %285 = vmatpush1.bf16.msra.mxu0 0
  %286 = vmatprep.subr.bf16.mxu0 0
  %287 = vmatpush1.bf16.msra.mxu0 0
  %288 = vmatprep.subr.bf16.mxu0 0
  %289 = vmatpush1.bf16.msra.mxu0 0
  %290 = vmatprep.subr.bf16.mxu0 0
  %291 = vmatpush1.bf16.msra.mxu0 0
  %292 = vmatprep.subr.bf16.mxu0 0
  %293 = vmatpush1.bf16.msra.mxu0 0
  %294 = vmatprep.subr.bf16.mxu0 0
  %295 = vmatpush1.bf16.msra.mxu0 0
  %296 = vmatprep.mubr.bf16.mxu0 0
  %297 = vmatmul.mubr.bf16.gmra.mrb[0].mxu0 %v23
  %v298 = vpop.f32.mrb[0].mxu0
  %v299 = vadd.f32 %v258, %v298
  %v300 = vpop.f32.mrb[0].mxu0
  %v301 = vpop.f32.mrb[0].mxu0
  %v302 = vadd.f32 %v261, %v301
  %v303 = vpop.f32.mrb[0].mxu0
  %304 = vdwg.mxu0
  %vm305 = vcmask 523264
  %306 = vst.msk [vmem:[%s3] sm:$0xff] %vm305, %v299
  %307 = vst.msk [vmem:[%s3 + $0x8] sm:$0xff] %vm305, %v302
  // Predicated region
  $region14: #{model_forward.4} parent=0 // pred_check
    _
  $region15: #{model_forward.4} parent=0 // pred_check_branch
    %309 = sbr.rel (0) target = $region17
  $region16: #{model_forward.4} parent=0 // pred_region
    _
  $region17: #{model_forward.4} parent=0 // pred_fallthru
    _
  // Predicated region
  $region18: #{model_forward.4} parent=0 // pred_check
    _
  $region19: #{model_forward.4} parent=0 // pred_check_branch
    %311 = sbr.rel (0) target = $region21
  $region20: #{model_forward.4} parent=0 // pred_region
    _
  $region21: #{model_forward.4} parent=0 // pred_fallthru
    _

// kernel: model_forward.5
$region0: #{model_forward.5}
  #allocation0 [shape = 'u32[]', space=smem, size = 0x4, offset = 0x4, fixed_abs, tag = 'smem constant byte address 0x4 - core index']
  #allocation1 [shape = 'u32[144,128]{1,0:T(1,128)}', space=vmem, size = 0x12000, scoped, tag = 'internal scratch']
  %s0 = inlined_call_operand.vmem [shape: f32[4,5,64], index: 0, kind: input, shape index: {}]
  %s1 = inlined_call_operand.vmem [shape: f32[1,5,64], index: 1, kind: input, shape index: {}]
  %s2 = inlined_call_operand.vmem [shape: f32[2,1,64], index: 2, kind: input, shape index: {}]
  %s3 = inlined_call_operand.vmem [shape: f32[2,1,64], index: 3, kind: input, shape index: {}]
  %s4 = inlined_call_operand.vmem [shape: bf16[2,64,192], index: 4, kind: input, shape index: {}]
  %s5 = inlined_call_operand.vmem [shape: f32[2,1,192], index: 5, kind: input, shape index: {}]
  %s6 = inlined_call_operand.vmem [shape: bf16[2,64,64], index: 6, kind: input, shape index: {}]
  %s7 = inlined_call_operand.vmem [shape: f32[2,1,64], index: 7, kind: input, shape index: {}]
  %s8 = inlined_call_operand.vmem [shape: f32[2,1,64], index: 8, kind: input, shape index: {}]
  %s9 = inlined_call_operand.vmem [shape: f32[2,1,64], index: 9, kind: input, shape index: {}]
  %s10 = inlined_call_operand.vmem [shape: bf16[2,64,256], index: 10, kind: input, shape index: {}]
  %s11 = inlined_call_operand.vmem [shape: f32[2,1,256], index: 11, kind: input, shape index: {}]
  %s12 = inlined_call_operand.vmem [shape: bf16[2,256,64], index: 12, kind: input, shape index: {}]
  %s13 = inlined_call_operand.vmem [shape: f32[2,1,64], index: 13, kind: input, shape index: {}]
  %s14 = inlined_call_operand.vmem [shape: f32[1,64], index: 14, kind: input, shape index: {}]
  %s15 = inlined_call_operand.vmem [shape: f32[1,64], index: 15, kind: input, shape index: {}]
  %s16 = inlined_call_operand.vmem [shape: f32[4,5,64], index: 16, kind: output, shape index: {}]
  %s17 = sld [smem:[#allocation0]]
  $region109: #{model_forward.5} parent=0
    _
  %s19 = ssub.s32 1, %s17
  %s20 = scalar_select 0, %s19, %s17
  loop: start=0, step=1, limit=10
  $region2: #{model_forward.5} parent=0 // loop_pre_header
    _
  $region3: #{model_forward.5} parent=0 // loop_header
    %s22 = sphi 0, %s26
    %p23 = scmp.ge.s32.totalorder %s22, 10
    %s29 = sphi 0, %s41
    %s30 = sphi 0, %s37
    %s31 = sphi 0, %s29
    %s32 = sphi 0, %s30
    %s33 = sphi 0, %s31
    %s34 = sphi 0, %s32
    %s44 = sphi 0, %s46
    %s47 = sphi 0, %s44
    %s48 = sphi 0, %s47
    %s64 = sphi 0, %s48
    %s68 = sphi 0, %s68
    %s70 = sphi 0, %s68
    %s71 = sphi 0, %s70
    %s85 = sphi 0, %s71
    %s91 = sphi 0, %s93
    %s94 = sphi 0, %s91
    %s95 = sphi 0, %s94
    %s111 = sphi 0, %s95
    %s117 = sphi 0, %s119
    %s120 = sphi 0, %s117
    %s121 = sphi 0, %s120
    %s137 = sphi 0, %s121
    %s143 = sphi 0, %s145
    %s146 = sphi 0, %s143
    %s147 = sphi 0, %s146
    %s163 = sphi 0, %s147
    %s169 = sphi 0, %s171
    %s172 = sphi 0, %s169
    %s173 = sphi 0, %s172
    %s189 = sphi 0, %s173
    %s195 = sphi 0, %s197
    %s198 = sphi 0, %s195
    %s199 = sphi 0, %s198
    %s215 = sphi 0, %s199
    %s221 = sphi 0, %s223
    %s224 = sphi 0, %s221
    %s225 = sphi 0, %s224
    %s241 = sphi 0, %s225
    %s247 = sphi 0, %s249
    %s250 = sphi 0, %s247
    %s251 = sphi 0, %s250
    %s267 = sphi 0, %s251
    %s273 = sphi 0, %s275
    %s276 = sphi 0, %s273
    %s277 = sphi 0, %s276
    %s293 = sphi 0, %s277
    %s299 = sphi 0, %s301
    %s302 = sphi 0, %s299
    %s303 = sphi 0, %s302
    %s319 = sphi 0, %s303
    %s325 = sphi 0, %s327
    %s328 = sphi 0, %s325
    %s329 = sphi 0, %s328
    %s345 = sphi 0, %s329
    %s351 = sphi 0, %s353
    %s354 = sphi 0, %s351
    %s355 = sphi 0, %s354
    %s371 = sphi 0, %s355
    %s377 = sphi 0, %s379
    %s380 = sphi 0, %s377
    %s381 = sphi 0, %s380
    %s397 = sphi 0, %s381
    %s401 = sphi 0, %s401
    %s403 = sphi 0, %s401
    %s404 = sphi 0, %s403
    %s418 = sphi 0, %s404
    %s422 = sphi 0, %s422
    %s424 = sphi 0, %s422
    %s425 = sphi 0, %s424
    %s439 = sphi 0, %s425
    %s445 = sphi 0, %s447
    %s448 = sphi 0, %s445
    %s449 = sphi 0, %s448
    %s465 = sphi 0, %s449
  $region4: #{model_forward.5} parent=0 // loop_header_branch
    %25 = sbr.rel (%p23) target = $region8
  $region5: #{model_forward.5} parent=0 // loop_body
    %s27 = ssub.s32 %s22, 1
    %s28 = ssub.s32 %s22, 2
    %s35 = sadd.s32 1, %s30
    %p36 = scmp.ge.s32.totalorder %s35, 2
    %s37 = scalar_select %p36, 0, %s35
    %s38 = sadd.s32 1, %s29
    %s39 = scalar_select %p36, %s38, %s29
    %p40 = scmp.ge.s32.totalorder %s39, 4
    %s41 = scalar_select %p40, 0, %s39
    %s42 = ssub.s32 %s29, %s41
    %p43 = scmp.eq.s32.totalorder %s42, 0
    %s45 = sadd.s32 %s44, 1
    %s46 = scalar_select %p43, %s44, %s45
    %p49 = pneg %p43
    %p50 = scmp.eq.s32.totalorder %s22, 7
    %p51 = por %p49, %p50
    %p52 = scmp.ne.s32.totalorder %s44, %s47
    %p53 = scmp.eq.s32.totalorder %s22, 0
    %p54 = por %p52, %p53
    %p55 = scmp.ne.s32.totalorder %s44, %s47
    %p56 = scmp.eq.s32.totalorder %s27, 7
    %p57 = por %p55, %p56
    %p58 = scmp.ne.s32.totalorder %s47, %s48
    %p59 = scmp.eq.s32.totalorder %s27, 0
    %p60 = por %p58, %p59
    %p61 = scmp.ne.s32.totalorder %s47, %s48
    %p62 = scmp.eq.s32.totalorder %s28, 7
    %p63 = por %p61, %p62
    %p65 = scmp.ne.s32.totalorder %s48, %s64
    %p66 = scmp.eq.s32.totalorder %s28, 0
    %p67 = por %p65, %p66
    %s69 = sadd.s32 %s68, 1
    %p72 = scmp.eq.s32.totalorder %s22, 7
    %p73 = scmp.ne.s32.totalorder %s68, %s70
    %p74 = scmp.eq.s32.totalorder %s22, 0
    %p75 = por %p73, %p74
    %p76 = scmp.ne.s32.totalorder %s68, %s70
    %p77 = scmp.eq.s32.totalorder %s27, 7
    %p78 = por %p76, %p77
    %p79 = scmp.ne.s32.totalorder %s70, %s71
    %p80 = scmp.eq.s32.totalorder %s27, 0
    %p81 = por %p79, %p80
    %p82 = scmp.ne.s32.totalorder %s70, %s71
    %p83 = scmp.eq.s32.totalorder %s28, 7
    %p84 = por %p82, %p83
    %p86 = scmp.ne.s32.totalorder %s71, %s85
    %p87 = scmp.eq.s32.totalorder %s28, 0
    %p88 = por %p86, %p87
    %s89 = ssub.s32 %s30, %s37
    %p90 = scmp.eq.s32.totalorder %s89, 0
    %s92 = sadd.s32 %s91, 1
    %s93 = scalar_select %p90, %s91, %s92
    %p96 = pneg %p90
    %p97 = scmp.eq.s32.totalorder %s22, 7
    %p98 = por %p96, %p97
    %p99 = scmp.ne.s32.totalorder %s91, %s94
    %p100 = scmp.eq.s32.totalorder %s22, 0
    %p101 = por %p99, %p100
    %p102 = scmp.ne.s32.totalorder %s91, %s94
    %p103 = scmp.eq.s32.totalorder %s27, 7
    %p104 = por %p102, %p103
    %p105 = scmp.ne.s32.totalorder %s94, %s95
    %p106 = scmp.eq.s32.totalorder %s27, 0
    %p107 = por %p105, %p106
    %p108 = scmp.ne.s32.totalorder %s94, %s95
    %p109 = scmp.eq.s32.totalorder %s28, 7
    %p110 = por %p108, %p109
    %p112 = scmp.ne.s32.totalorder %s95, %s111
    %p113 = scmp.eq.s32.totalorder %s28, 0
    %p114 = por %p112, %p113
    %s115 = ssub.s32 %s30, %s37
    %p116 = scmp.eq.s32.totalorder %s115, 0
    %s118 = sadd.s32 %s117, 1
    %s119 = scalar_select %p116, %s117, %s118
    %p122 = pneg %p116
    %p123 = scmp.eq.s32.totalorder %s22, 7
    %p124 = por %p122, %p123
    %p125 = scmp.ne.s32.totalorder %s117, %s120
    %p126 = scmp.eq.s32.totalorder %s22, 0
    %p127 = por %p125, %p126
    %p128 = scmp.ne.s32.totalorder %s117, %s120
    %p129 = scmp.eq.s32.totalorder %s27, 7
    %p130 = por %p128, %p129
    %p131 = scmp.ne.s32.totalorder %s120, %s121
    %p132 = scmp.eq.s32.totalorder %s27, 0
    %p133 = por %p131, %p132
    %p134 = scmp.ne.s32.totalorder %s120, %s121
    %p135 = scmp.eq.s32.totalorder %s28, 7
    %p136 = por %p134, %p135
    %p138 = scmp.ne.s32.totalorder %s121, %s137
    %p139 = scmp.eq.s32.totalorder %s28, 0
    %p140 = por %p138, %p139
    %s141 = ssub.s32 %s30, %s37
    %p142 = scmp.eq.s32.totalorder %s141, 0
    %s144 = sadd.s32 %s143, 1
    %s145 = scalar_select %p142, %s143, %s144
    %p148 = pneg %p142
    %p149 = scmp.eq.s32.totalorder %s22, 7
    %p150 = por %p148, %p149
    %p151 = scmp.ne.s32.totalorder %s143, %s146
    %p152 = scmp.eq.s32.totalorder %s22, 0
    %p153 = por %p151, %p152
    %p154 = scmp.ne.s32.totalorder %s143, %s146
    %p155 = scmp.eq.s32.totalorder %s27, 7
    %p156 = por %p154, %p155
    %p157 = scmp.ne.s32.totalorder %s146, %s147
    %p158 = scmp.eq.s32.totalorder %s27, 0
    %p159 = por %p157, %p158
    %p160 = scmp.ne.s32.totalorder %s146, %s147
    %p161 = scmp.eq.s32.totalorder %s28, 7
    %p162 = por %p160, %p161
    %p164 = scmp.ne.s32.totalorder %s147, %s163
    %p165 = scmp.eq.s32.totalorder %s28, 0
    %p166 = por %p164, %p165
    %s167 = ssub.s32 %s30, %s37
    %p168 = scmp.eq.s32.totalorder %s167, 0
    %s170 = sadd.s32 %s169, 1
    %s171 = scalar_select %p168, %s169, %s170
    %p174 = pneg %p168
    %p175 = scmp.eq.s32.totalorder %s22, 7
    %p176 = por %p174, %p175
    %p177 = scmp.ne.s32.totalorder %s169, %s172
    %p178 = scmp.eq.s32.totalorder %s22, 0
    %p179 = por %p177, %p178
    %p180 = scmp.ne.s32.totalorder %s169, %s172
    %p181 = scmp.eq.s32.totalorder %s27, 7
    %p182 = por %p180, %p181
    %p183 = scmp.ne.s32.totalorder %s172, %s173
    %p184 = scmp.eq.s32.totalorder %s27, 0
    %p185 = por %p183, %p184
    %p186 = scmp.ne.s32.totalorder %s172, %s173
    %p187 = scmp.eq.s32.totalorder %s28, 7
    %p188 = por %p186, %p187
    %p190 = scmp.ne.s32.totalorder %s173, %s189
    %p191 = scmp.eq.s32.totalorder %s28, 0
    %p192 = por %p190, %p191
    %s193 = ssub.s32 %s30, %s37
    %p194 = scmp.eq.s32.totalorder %s193, 0
    %s196 = sadd.s32 %s195, 1
    %s197 = scalar_select %p194, %s195, %s196
    %p200 = pneg %p194
    %p201 = scmp.eq.s32.totalorder %s22, 7
    %p202 = por %p200, %p201
    %p203 = scmp.ne.s32.totalorder %s195, %s198
    %p204 = scmp.eq.s32.totalorder %s22, 0
    %p205 = por %p203, %p204
    %p206 = scmp.ne.s32.totalorder %s195, %s198
    %p207 = scmp.eq.s32.totalorder %s27, 7
    %p208 = por %p206, %p207
    %p209 = scmp.ne.s32.totalorder %s198, %s199
    %p210 = scmp.eq.s32.totalorder %s27, 0
    %p211 = por %p209, %p210
    %p212 = scmp.ne.s32.totalorder %s198, %s199
    %p213 = scmp.eq.s32.totalorder %s28, 7
    %p214 = por %p212, %p213
    %p216 = scmp.ne.s32.totalorder %s199, %s215
    %p217 = scmp.eq.s32.totalorder %s28, 0
    %p218 = por %p216, %p217
    %s219 = ssub.s32 %s30, %s37
    %p220 = scmp.eq.s32.totalorder %s219, 0
    %s222 = sadd.s32 %s221, 1
    %s223 = scalar_select %p220, %s221, %s222
    %p226 = pneg %p220
    %p227 = scmp.eq.s32.totalorder %s22, 7
    %p228 = por %p226, %p227
    %p229 = scmp.ne.s32.totalorder %s221, %s224
    %p230 = scmp.eq.s32.totalorder %s22, 0
    %p231 = por %p229, %p230
    %p232 = scmp.ne.s32.totalorder %s221, %s224
    %p233 = scmp.eq.s32.totalorder %s27, 7
    %p234 = por %p232, %p233
    %p235 = scmp.ne.s32.totalorder %s224, %s225
    %p236 = scmp.eq.s32.totalorder %s27, 0
    %p237 = por %p235, %p236
    %p238 = scmp.ne.s32.totalorder %s224, %s225
    %p239 = scmp.eq.s32.totalorder %s28, 7
    %p240 = por %p238, %p239
    %p242 = scmp.ne.s32.totalorder %s225, %s241
    %p243 = scmp.eq.s32.totalorder %s28, 0
    %p244 = por %p242, %p243
    %s245 = ssub.s32 %s30, %s37
    %p246 = scmp.eq.s32.totalorder %s245, 0
    %s248 = sadd.s32 %s247, 1
    %s249 = scalar_select %p246, %s247, %s248
    %p252 = pneg %p246
    %p253 = scmp.eq.s32.totalorder %s22, 7
    %p254 = por %p252, %p253
    %p255 = scmp.ne.s32.totalorder %s247, %s250
    %p256 = scmp.eq.s32.totalorder %s22, 0
    %p257 = por %p255, %p256
    %p258 = scmp.ne.s32.totalorder %s247, %s250
    %p259 = scmp.eq.s32.totalorder %s27, 7
    %p260 = por %p258, %p259
    %p261 = scmp.ne.s32.totalorder %s250, %s251
    %p262 = scmp.eq.s32.totalorder %s27, 0
    %p263 = por %p261, %p262
    %p264 = scmp.ne.s32.totalorder %s250, %s251
    %p265 = scmp.eq.s32.totalorder %s28, 7
    %p266 = por %p264, %p265
    %p268 = scmp.ne.s32.totalorder %s251, %s267
    %p269 = scmp.eq.s32.totalorder %s28, 0
    %p270 = por %p268, %p269
    %s271 = ssub.s32 %s30, %s37
    %p272 = scmp.eq.s32.totalorder %s271, 0
    %s274 = sadd.s32 %s273, 1
    %s275 = scalar_select %p272, %s273, %s274
    %p278 = pneg %p272
    %p279 = scmp.eq.s32.totalorder %s22, 7
    %p280 = por %p278, %p279
    %p281 = scmp.ne.s32.totalorder %s273, %s276
    %p282 = scmp.eq.s32.totalorder %s22, 0
    %p283 = por %p281, %p282
    %p284 = scmp.ne.s32.totalorder %s273, %s276
    %p285 = scmp.eq.s32.totalorder %s27, 7
    %p286 = por %p284, %p285
    %p287 = scmp.ne.s32.totalorder %s276, %s277
    %p288 = scmp.eq.s32.totalorder %s27, 0
    %p289 = por %p287, %p288
    %p290 = scmp.ne.s32.totalorder %s276, %s277
    %p291 = scmp.eq.s32.totalorder %s28, 7
    %p292 = por %p290, %p291
    %p294 = scmp.ne.s32.totalorder %s277, %s293
    %p295 = scmp.eq.s32.totalorder %s28, 0
    %p296 = por %p294, %p295
    %s297 = ssub.s32 %s30, %s37
    %p298 = scmp.eq.s32.totalorder %s297, 0
    %s300 = sadd.s32 %s299, 1
    %s301 = scalar_select %p298, %s299, %s300
    %p304 = pneg %p298
    %p305 = scmp.eq.s32.totalorder %s22, 7
    %p306 = por %p304, %p305
    %p307 = scmp.ne.s32.totalorder %s299, %s302
    %p308 = scmp.eq.s32.totalorder %s22, 0
    %p309 = por %p307, %p308
    %p310 = scmp.ne.s32.totalorder %s299, %s302
    %p311 = scmp.eq.s32.totalorder %s27, 7
    %p312 = por %p310, %p311
    %p313 = scmp.ne.s32.totalorder %s302, %s303
    %p314 = scmp.eq.s32.totalorder %s27, 0
    %p315 = por %p313, %p314
    %p316 = scmp.ne.s32.totalorder %s302, %s303
    %p317 = scmp.eq.s32.totalorder %s28, 7
    %p318 = por %p316, %p317
    %p320 = scmp.ne.s32.totalorder %s303, %s319
    %p321 = scmp.eq.s32.totalorder %s28, 0
    %p322 = por %p320, %p321
    %s323 = ssub.s32 %s30, %s37
    %p324 = scmp.eq.s32.totalorder %s323, 0
    %s326 = sadd.s32 %s325, 1
    %s327 = scalar_select %p324, %s325, %s326
    %p330 = pneg %p324
    %p331 = scmp.eq.s32.totalorder %s22, 7
    %p332 = por %p330, %p331
    %p333 = scmp.ne.s32.totalorder %s325, %s328
    %p334 = scmp.eq.s32.totalorder %s22, 0
    %p335 = por %p333, %p334
    %p336 = scmp.ne.s32.totalorder %s325, %s328
    %p337 = scmp.eq.s32.totalorder %s27, 7
    %p338 = por %p336, %p337
    %p339 = scmp.ne.s32.totalorder %s328, %s329
    %p340 = scmp.eq.s32.totalorder %s27, 0
    %p341 = por %p339, %p340
    %p342 = scmp.ne.s32.totalorder %s328, %s329
    %p343 = scmp.eq.s32.totalorder %s28, 7
    %p344 = por %p342, %p343
    %p346 = scmp.ne.s32.totalorder %s329, %s345
    %p347 = scmp.eq.s32.totalorder %s28, 0
    %p348 = por %p346, %p347
    %s349 = ssub.s32 %s30, %s37
    %p350 = scmp.eq.s32.totalorder %s349, 0
    %s352 = sadd.s32 %s351, 1
    %s353 = scalar_select %p350, %s351, %s352
    %p356 = pneg %p350
    %p357 = scmp.eq.s32.totalorder %s22, 7
    %p358 = por %p356, %p357
    %p359 = scmp.ne.s32.totalorder %s351, %s354
    %p360 = scmp.eq.s32.totalorder %s22, 0
    %p361 = por %p359, %p360
    %p362 = scmp.ne.s32.totalorder %s351, %s354
    %p363 = scmp.eq.s32.totalorder %s27, 7
    %p364 = por %p362, %p363
    %p365 = scmp.ne.s32.totalorder %s354, %s355
    %p366 = scmp.eq.s32.totalorder %s27, 0
    %p367 = por %p365, %p366
    %p368 = scmp.ne.s32.totalorder %s354, %s355
    %p369 = scmp.eq.s32.totalorder %s28, 7
    %p370 = por %p368, %p369
    %p372 = scmp.ne.s32.totalorder %s355, %s371
    %p373 = scmp.eq.s32.totalorder %s28, 0
    %p374 = por %p372, %p373
    %s375 = ssub.s32 %s30, %s37
    %p376 = scmp.eq.s32.totalorder %s375, 0
    %s378 = sadd.s32 %s377, 1
    %s379 = scalar_select %p376, %s377, %s378
    %p382 = pneg %p376
    %p383 = scmp.eq.s32.totalorder %s22, 7
    %p384 = por %p382, %p383
    %p385 = scmp.ne.s32.totalorder %s377, %s380
    %p386 = scmp.eq.s32.totalorder %s22, 0
    %p387 = por %p385, %p386
    %p388 = scmp.ne.s32.totalorder %s377, %s380
    %p389 = scmp.eq.s32.totalorder %s27, 7
    %p390 = por %p388, %p389
    %p391 = scmp.ne.s32.totalorder %s380, %s381
    %p392 = scmp.eq.s32.totalorder %s27, 0
    %p393 = por %p391, %p392
    %p394 = scmp.ne.s32.totalorder %s380, %s381
    %p395 = scmp.eq.s32.totalorder %s28, 7
    %p396 = por %p394, %p395
    %p398 = scmp.ne.s32.totalorder %s381, %s397
    %p399 = scmp.eq.s32.totalorder %s28, 0
    %p400 = por %p398, %p399
    %s402 = sadd.s32 %s401, 1
    %p405 = scmp.eq.s32.totalorder %s22, 7
    %p406 = scmp.ne.s32.totalorder %s401, %s403
    %p407 = scmp.eq.s32.totalorder %s22, 0
    %p408 = por %p406, %p407
    %p409 = scmp.ne.s32.totalorder %s401, %s403
    %p410 = scmp.eq.s32.totalorder %s27, 7
    %p411 = por %p409, %p410
    %p412 = scmp.ne.s32.totalorder %s403, %s404
    %p413 = scmp.eq.s32.totalorder %s27, 0
    %p414 = por %p412, %p413
    %p415 = scmp.ne.s32.totalorder %s403, %s404
    %p416 = scmp.eq.s32.totalorder %s28, 7
    %p417 = por %p415, %p416
    %p419 = scmp.ne.s32.totalorder %s404, %s418
    %p420 = scmp.eq.s32.totalorder %s28, 0
    %p421 = por %p419, %p420
    %s423 = sadd.s32 %s422, 1
    %p426 = scmp.eq.s32.totalorder %s22, 7
    %p427 = scmp.ne.s32.totalorder %s422, %s424
    %p428 = scmp.eq.s32.totalorder %s22, 0
    %p429 = por %p427, %p428
    %p430 = scmp.ne.s32.totalorder %s422, %s424
    %p431 = scmp.eq.s32.totalorder %s27, 7
    %p432 = por %p430, %p431
    %p433 = scmp.ne.s32.totalorder %s424, %s425
    %p434 = scmp.eq.s32.totalorder %s27, 0
    %p435 = por %p433, %p434
    %p436 = scmp.ne.s32.totalorder %s424, %s425
    %p437 = scmp.eq.s32.totalorder %s28, 7
    %p438 = por %p436, %p437
    %p440 = scmp.ne.s32.totalorder %s425, %s439
    %p441 = scmp.eq.s32.totalorder %s28, 0
    %p442 = por %p440, %p441
    %s443 = ssub.s32 %s29, %s41
    %p444 = scmp.eq.s32.totalorder %s443, 0
    %s446 = sadd.s32 %s445, 1
    %s447 = scalar_select %p444, %s445, %s446
    %p450 = pneg %p444
    %p451 = scmp.eq.s32.totalorder %s22, 7
    %p452 = por %p450, %p451
    %p453 = scmp.ne.s32.totalorder %s445, %s448
    %p454 = scmp.eq.s32.totalorder %s22, 0
    %p455 = por %p453, %p454
    %p456 = scmp.ne.s32.totalorder %s445, %s448
    %p457 = scmp.eq.s32.totalorder %s27, 7
    %p458 = por %p456, %p457
    %p459 = scmp.ne.s32.totalorder %s448, %s449
    %p460 = scmp.eq.s32.totalorder %s27, 0
    %p461 = por %p459, %p460
    %p462 = scmp.ne.s32.totalorder %s448, %s449
    %p463 = scmp.eq.s32.totalorder %s28, 7
    %p464 = por %p462, %p463
    %p466 = scmp.ne.s32.totalorder %s449, %s465
    %p467 = scmp.eq.s32.totalorder %s28, 0
    %p468 = por %p466, %p467
    %p469 = scmp.le.s32.totalorder 1, %s22
    %p470 = scmp.lt.s32.totalorder %s22, 9
    %p471 = pnand %p469, %p470
    %p472 = pneg %p471
    // Predicated region
    $region9: #{model_forward.5} parent=5 // pred_check
      _
    $region10: #{model_forward.5} parent=5 // pred_check_branch
      %474 = sbr.rel (%p471) target = $region12
    $region11: #{model_forward.5} parent=5 // pred_region
      %s475 = ssub.s32 %s22, 1
      // Predicated region
      $region13: #{model_forward.5} parent=11 // pred_check
        %p476 = pneg %p81
      $region14: #{model_forward.5} parent=11 // pred_check_branch
        %478 = sbr.rel (%p476) target = $region16
      $region15: #{model_forward.5} parent=11 // pred_region
        _
      $region16: #{model_forward.5} parent=11 // pred_fallthru
        _
      // Predicated region
      $region17: #{model_forward.5} parent=11 // pred_check
        %p479 = pneg %p414
      $region18: #{model_forward.5} parent=11 // pred_check_branch
        %481 = sbr.rel (%p479) target = $region20
      $region19: #{model_forward.5} parent=11 // pred_region
        _
      $region20: #{model_forward.5} parent=11 // pred_fallthru
        _
      // Predicated region
      $region21: #{model_forward.5} parent=11 // pred_check
        %p482 = pneg %p435
      $region22: #{model_forward.5} parent=11 // pred_check_branch
        %484 = sbr.rel (%p482) target = $region24
      $region23: #{model_forward.5} parent=11 // pred_region
        _
      $region24: #{model_forward.5} parent=11 // pred_fallthru
        _
    $region12: #{model_forward.5} parent=5 // pred_fallthru
      _
    %p485 = scmp.lt.s32.totalorder %s22, 8
    // Predicated region
    $region25: #{model_forward.5} parent=5 // pred_check
      %p486 = pneg %p485
    $region26: #{model_forward.5} parent=5 // pred_check_branch
      %488 = sbr.rel (%p486) target = $region28
    $region27: #{model_forward.5} parent=5 // pred_region
      // Predicated region
      $region29: #{model_forward.5} parent=27 // pred_check
        %p489 = pneg %p54
      $region30: #{model_forward.5} parent=27 // pred_check_branch
        %491 = sbr.rel (%p489) target = $region32
      $region31: #{model_forward.5} parent=27 // pred_region
        %p492 = scmp.lt.s32.totalorder %s29, 3
        %s493 = scalar_select %p492, %s29, 3
        %s494 = smul.addr %s493, 8
        %s495 = scalar_lea.vmem %s0, %s494
      $region32: #{model_forward.5} parent=27 // pred_fallthru
        _
      // Predicated region
      $region33: #{model_forward.5} parent=27 // pred_check
        %p496 = pneg %p101
      $region34: #{model_forward.5} parent=27 // pred_check_branch
        %498 = sbr.rel (%p496) target = $region36
      $region35: #{model_forward.5} parent=27 // pred_region
        %p499 = scmp.lt.s32.totalorder %s30, 1
        %s500 = scalar_select %p499, %s30, 1
        %s501 = scalar_lea.vmem %s2, %s500
      $region36: #{model_forward.5} parent=27 // pred_fallthru
        _
      // Predicated region
      $region37: #{model_forward.5} parent=27 // pred_check
        %p502 = pneg %p127
      $region38: #{model_forward.5} parent=27 // pred_check_branch
        %504 = sbr.rel (%p502) target = $region40
      $region39: #{model_forward.5} parent=27 // pred_region
        %p505 = scmp.lt.s32.totalorder %s30, 1
        %s506 = scalar_select %p505, %s30, 1
        %s507 = scalar_lea.vmem %s3, %s506
      $region40: #{model_forward.5} parent=27 // pred_fallthru
        _
      // Predicated region
      $region41: #{model_forward.5} parent=27 // pred_check
        %p508 = pneg %p153
      $region42: #{model_forward.5} parent=27 // pred_check_branch
        %510 = sbr.rel (%p508) target = $region44
      $region43: #{model_forward.5} parent=27 // pred_region
        %p511 = scmp.lt.s32.totalorder %s30, 1
        %s512 = scalar_select %p511, %s30, 1
        %s513 = smul.addr %s512, 16
        %s514 = smul.addr %s513, 4
        %s515 = scalar_lea.vmem %s4, %s514
      $region44: #{model_forward.5} parent=27 // pred_fallthru
        _
      // Predicated region
      $region45: #{model_forward.5} parent=27 // pred_check
        %p516 = pneg %p179
      $region46: #{model_forward.5} parent=27 // pred_check_branch
        %518 = sbr.rel (%p516) target = $region48
      $region47: #{model_forward.5} parent=27 // pred_region
        %p519 = scmp.lt.s32.totalorder %s30, 1
        %s520 = scalar_select %p519, %s30, 1
        %s521 = smul.addr %s520, 2
        %s522 = scalar_lea.vmem %s5, %s521
      $region48: #{model_forward.5} parent=27 // pred_fallthru
        _
      // Predicated region
      $region49: #{model_forward.5} parent=27 // pred_check
        %p523 = pneg %p205
      $region50: #{model_forward.5} parent=27 // pred_check_branch
        %525 = sbr.rel (%p523) target = $region52
      $region51: #{model_forward.5} parent=27 // pred_region
        %p526 = scmp.lt.s32.totalorder %s30, 1
        %s527 = scalar_select %p526, %s30, 1
        %s528 = smul.addr %s527, 8
        %s529 = smul.addr %s528, 4
        %s530 = scalar_lea.vmem %s6, %s529
      $region52: #{model_forward.5} parent=27 // pred_fallthru
        _
      // Predicated region
      $region53: #{model_forward.5} parent=27 // pred_check
        %p531 = pneg %p231
      $region54: #{model_forward.5} parent=27 // pred_check_branch
        %533 = sbr.rel (%p531) target = $region56
      $region55: #{model_forward.5} parent=27 // pred_region
        %p534 = scmp.lt.s32.totalorder %s30, 1
        %s535 = scalar_select %p534, %s30, 1
        %s536 = scalar_lea.vmem %s7, %s535
      $region56: #{model_forward.5} parent=27 // pred_fallthru
        _
      // Predicated region
      $region57: #{model_forward.5} parent=27 // pred_check
        %p537 = pneg %p257
      $region58: #{model_forward.5} parent=27 // pred_check_branch
        %539 = sbr.rel (%p537) target = $region60
      $region59: #{model_forward.5} parent=27 // pred_region
        %p540 = scmp.lt.s32.totalorder %s30, 1
        %s541 = scalar_select %p540, %s30, 1
        %s542 = scalar_lea.vmem %s8, %s541
      $region60: #{model_forward.5} parent=27 // pred_fallthru
        _
      // Predicated region
      $region61: #{model_forward.5} parent=27 // pred_check
        %p543 = pneg %p283
      $region62: #{model_forward.5} parent=27 // pred_check_branch
        %545 = sbr.rel (%p543) target = $region64
      $region63: #{model_forward.5} parent=27 // pred_region
        %p546 = scmp.lt.s32.totalorder %s30, 1
        %s547 = scalar_select %p546, %s30, 1
        %s548 = scalar_lea.vmem %s9, %s547
      $region64: #{model_forward.5} parent=27 // pred_fallthru
        _
      // Predicated region
      $region65: #{model_forward.5} parent=27 // pred_check
        %p549 = pneg %p309
      $region66: #{model_forward.5} parent=27 // pred_check_branch
        %551 = sbr.rel (%p549) target = $region68
      $region67: #{model_forward.5} parent=27 // pred_region
        %p552 = scmp.lt.s32.totalorder %s30, 1
        %s553 = scalar_select %p552, %s30, 1
        %s554 = smul.addr %s553, 16
        %s555 = smul.addr %s554, 4
        %s556 = scalar_lea.vmem %s10, %s555
      $region68: #{model_forward.5} parent=27 // pred_fallthru
        _
      // Predicated region
      $region69: #{model_forward.5} parent=27 // pred_check
        %p557 = pneg %p335
      $region70: #{model_forward.5} parent=27 // pred_check_branch
        %559 = sbr.rel (%p557) target = $region72
      $region71: #{model_forward.5} parent=27 // pred_region
        %p560 = scmp.lt.s32.totalorder %s30, 1
        %s561 = scalar_select %p560, %s30, 1
        %s562 = smul.addr %s561, 2
        %s563 = scalar_lea.vmem %s11, %s562
      $region72: #{model_forward.5} parent=27 // pred_fallthru
        _
      // Predicated region
      $region73: #{model_forward.5} parent=27 // pred_check
        %p564 = pneg %p361
      $region74: #{model_forward.5} parent=27 // pred_check_branch
        %566 = sbr.rel (%p564) target = $region76
      $region75: #{model_forward.5} parent=27 // pred_region
        %p567 = scmp.lt.s32.totalorder %s30, 1
        %s568 = scalar_select %p567, %s30, 1
        %s569 = smul.addr %s568, 32
        %s570 = smul.addr %s569, 4
        %s571 = scalar_lea.vmem %s12, %s570
      $region76: #{model_forward.5} parent=27 // pred_fallthru
        _
      // Predicated region
      $region77: #{model_forward.5} parent=27 // pred_check
        %p572 = pneg %p387
      $region78: #{model_forward.5} parent=27 // pred_check_branch
        %574 = sbr.rel (%p572) target = $region80
      $region79: #{model_forward.5} parent=27 // pred_region
        %p575 = scmp.lt.s32.totalorder %s30, 1
        %s576 = scalar_select %p575, %s30, 1
        %s577 = scalar_lea.vmem %s13, %s576
      $region80: #{model_forward.5} parent=27 // pred_fallthru
        _
    $region28: #{model_forward.5} parent=5 // pred_fallthru
      _
    %p578 = scmp.le.s32.totalorder 1, %s22
    %p579 = scmp.lt.s32.totalorder %s22, 9
    %p580 = pnand %p578, %p579
    %p581 = pneg %p580
    // Predicated region
    $region81: #{model_forward.5} parent=5 // pred_check
      _
    $region82: #{model_forward.5} parent=5 // pred_check_branch
      %583 = sbr.rel (%p580) target = $region84
    $region83: #{model_forward.5} parent=5 // pred_region
      %s584 = ssub.s32 %s22, 1
      %p585 = scmp.lt.s32.totalorder %s31, 3
      %s586 = scalar_select %p585, %s31, 3
      %s587 = smul.addr %s586, 8
      %s588 = scalar_lea.vmem %s0, %s587
      %p589 = pneg %p60
      %p590 = pneg %p57
      %p591 = pneg %p81
      %p592 = pneg %p78
      %p593 = scmp.lt.s32.totalorder %s32, 1
      %s594 = scalar_select %p593, %s32, 1
      %s595 = scalar_lea.vmem %s2, %s594
      %p596 = pneg %p107
      %p597 = pneg %p104
      %p598 = scmp.lt.s32.totalorder %s32, 1
      %s599 = scalar_select %p598, %s32, 1
      %s600 = scalar_lea.vmem %s3, %s599
      %p601 = pneg %p133
      %p602 = pneg %p130
      %p603 = scmp.lt.s32.totalorder %s32, 1
      %s604 = scalar_select %p603, %s32, 1
      %s605 = smul.addr %s604, 16
      %s606 = smul.addr %s605, 4
      %s607 = scalar_lea.vmem %s4, %s606
      %p608 = pneg %p159
      %p609 = pneg %p156
      %p610 = scmp.lt.s32.totalorder %s32, 1
      %s611 = scalar_select %p610, %s32, 1
      %s612 = smul.addr %s611, 2
      %s613 = scalar_lea.vmem %s5, %s612
      %p614 = pneg %p185
      %p615 = pneg %p182
      %p616 = scmp.lt.s32.totalorder %s32, 1
      %s617 = scalar_select %p616, %s32, 1
      %s618 = smul.addr %s617, 8
      %s619 = smul.addr %s618, 4
      %s620 = scalar_lea.vmem %s6, %s619
      %p621 = pneg %p211
      %p622 = pneg %p208
      %p623 = scmp.lt.s32.totalorder %s32, 1
      %s624 = scalar_select %p623, %s32, 1
      %s625 = scalar_lea.vmem %s7, %s624
      %p626 = pneg %p237
      %p627 = pneg %p234
      %p628 = scmp.lt.s32.totalorder %s32, 1
      %s629 = scalar_select %p628, %s32, 1
      %s630 = scalar_lea.vmem %s8, %s629
      %p631 = pneg %p263
      %p632 = pneg %p260
      %p633 = scmp.lt.s32.totalorder %s32, 1
      %s634 = scalar_select %p633, %s32, 1
      %s635 = scalar_lea.vmem %s9, %s634
      %p636 = pneg %p289
      %p637 = pneg %p286
      %p638 = scmp.lt.s32.totalorder %s32, 1
      %s639 = scalar_select %p638, %s32, 1
      %s640 = smul.addr %s639, 16
      %s641 = smul.addr %s640, 4
      %s642 = scalar_lea.vmem %s10, %s641
      %p643 = pneg %p315
      %p644 = pneg %p312
      %p645 = scmp.lt.s32.totalorder %s32, 1
      %s646 = scalar_select %p645, %s32, 1
      %s647 = smul.addr %s646, 2
      %s648 = scalar_lea.vmem %s11, %s647
      %p649 = pneg %p341
      %p650 = pneg %p338
      %p651 = scmp.lt.s32.totalorder %s32, 1
      %s652 = scalar_select %p651, %s32, 1
      %s653 = smul.addr %s652, 32
      %s654 = smul.addr %s653, 4
      %s655 = scalar_lea.vmem %s12, %s654
      %p656 = pneg %p367
      %p657 = pneg %p364
      %p658 = scmp.lt.s32.totalorder %s32, 1
      %s659 = scalar_select %p658, %s32, 1
      %s660 = scalar_lea.vmem %s13, %s659
      %p661 = pneg %p393
      %p662 = pneg %p390
      %p663 = pneg %p414
      %p664 = pneg %p411
      %p665 = pneg %p435
      %p666 = pneg %p432
      %p667 = pneg %p461
      %p668 = pneg %p458
      %p669 = scmp.lt.s32.totalorder %s31, 3
      %s670 = scalar_select %p669, %s31, 3
      %s671 = smul.addr %s670, 8
      %s672 = scalar_lea.vmem %s16, %s671
      %p673 = scmp.lt.s32.totalorder %s31, 3
      %s674 = scalar_select %p673, %s31, 3
      %s675 = smul.addr %s674, 8
      %s676 = scalar_lea.vmem %s0, %s675
      %p677 = scmp.lt.s32.totalorder %s32, 1
      %s678 = scalar_select %p677, %s32, 1
      %s679 = scalar_lea.vmem %s2, %s678
      %p680 = scmp.lt.s32.totalorder %s32, 1
      %s681 = scalar_select %p680, %s32, 1
      %s682 = scalar_lea.vmem %s3, %s681
      %p683 = scmp.lt.s32.totalorder %s32, 1
      %s684 = scalar_select %p683, %s32, 1
      %s685 = smul.addr %s684, 16
      %s686 = smul.addr %s685, 4
      %s687 = scalar_lea.vmem %s4, %s686
      %p688 = scmp.lt.s32.totalorder %s32, 1
      %s689 = scalar_select %p688, %s32, 1
      %s690 = smul.addr %s689, 2
      %s691 = scalar_lea.vmem %s5, %s690
      %p692 = scmp.lt.s32.totalorder %s32, 1
      %s693 = scalar_select %p692, %s32, 1
      %s694 = smul.addr %s693, 8
      %s695 = smul.addr %s694, 4
      %s696 = scalar_lea.vmem %s6, %s695
      %p697 = scmp.lt.s32.totalorder %s32, 1
      %s698 = scalar_select %p697, %s32, 1
      %s699 = scalar_lea.vmem %s7, %s698
      %p700 = scmp.lt.s32.totalorder %s32, 1
      %s701 = scalar_select %p700, %s32, 1
      %s702 = scalar_lea.vmem %s8, %s701
      %p703 = scmp.lt.s32.totalorder %s32, 1
      %s704 = scalar_select %p703, %s32, 1
      %s705 = scalar_lea.vmem %s9, %s704
      %p706 = scmp.lt.s32.totalorder %s32, 1
      %s707 = scalar_select %p706, %s32, 1
      %s708 = smul.addr %s707, 16
      %s709 = smul.addr %s708, 4
      %s710 = scalar_lea.vmem %s10, %s709
      %p711 = scmp.lt.s32.totalorder %s32, 1
      %s712 = scalar_select %p711, %s32, 1
      %s713 = smul.addr %s712, 2
      %s714 = scalar_lea.vmem %s11, %s713
      %p715 = scmp.lt.s32.totalorder %s32, 1
      %s716 = scalar_select %p715, %s32, 1
      %s717 = smul.addr %s716, 32
      %s718 = smul.addr %s717, 4
      %s719 = scalar_lea.vmem %s12, %s718
      %p720 = scmp.lt.s32.totalorder %s32, 1
      %s721 = scalar_select %p720, %s32, 1
      %s722 = scalar_lea.vmem %s13, %s721
      %p723 = scmp.lt.s32.totalorder %s31, 3
      %s724 = scalar_select %p723, %s31, 3
      %s725 = smul.addr %s724, 8
      %s726 = scalar_lea.vmem %s16, %s725
      %p728 = scmp.eq.s32.totalorder %s32, 0
      // Predicated region
      $region85: #{model_forward.5} parent=83 // pred_check
        %p729 = pneg %p728
      $region86: #{model_forward.5} parent=83 // pred_check_branch
        %731 = sbr.rel (%p729) target = $region88
      $region87: #{model_forward.5} parent=83 // pred_region
        %v732 = vld [vmem:[%s676] sm:$0x1f]
        %v733 = vld [vmem:[%s1] sm:$0x1f]
        %v734 = vadd.f32 %v732, %v733
        %vm735 = vcmask 520192
        %736 = vst.msk [vmem:[%s726] sm:$0x1f] %vm735, %v734
      $region88: #{model_forward.5} parent=83 // pred_fallthru
        _
      %v737 = vld [vmem:[%s726] sm:$0x1f]
      %v738 = vld [vmem:[%s679] sm:$0x1]
      %v739 = vld [vmem:[%s682] sm:$0x1]
      %vm740 = vcmask 520192
      %v741 = vsel %vm740, %v737, 0.0
      %742 = vadd.xlane.f32.xlu0 %v741
      %v743 = vpop.xlane.xlu0 %742
      %v744 = vrcp.pop 64.0
      %v745 = vmul.f32 %v743, %v744
      %v746 = vsub.f32 %v737, %v745
      %v747 = vmul.f32 %v746, %v746
      %v748 = vsel %vm740, %v747, 0.0
      %749 = vadd.xlane.f32.xlu0 %v748
      %v750 = vpop.xlane.xlu0 %749
      %v751 = vmul.f32 %v750, %v744
      %v752 = vadd.f32 %v751, 1e-06
      %v753 = vrsqrt.pop %v752
      %v754 = vmul.f32 %v746, %v753
      %v756 = vlaneseq
      %v757 = vshrl.u32 %v756, 7
      %v758 = vsub.s32 0, %v757
      %v759 = vrot.slane %v738, %v758
      %v761 = vmul.f32 %v754, %v759
      %v763 = vlaneseq
      %v764 = vshrl.u32 %v763, 7
      %v765 = vsub.s32 0, %v764
      %v766 = vrot.slane %v739, %v765
      %v768 = vadd.f32 %v761, %v766
      %v769 = vpack.c.bf16 %v768, %v768
      %v770 = vld [vmem:[%s687] sm:$0xff]
      %v771 = vld [vmem:[%s687 + $0x8] sm:$0xff]
      %v772 = vld [vmem:[%s687 + $0x10] sm:$0xff]
      %v773 = vld [vmem:[%s687 + $0x18] sm:$0xff]
      %v774 = vld [vmem:[%s687 + $0x20] sm:$0xff]
      %v775 = vld [vmem:[%s687 + $0x28] sm:$0xff]
      %v776 = vld [vmem:[%s687 + $0x30] sm:$0xff]
      %v777 = vld [vmem:[%s687 + $0x38] sm:$0xff]
      %v778 = vld [vmem:[%s691] sm:$0x3]
      %v780 = vlaneseq
      %v781 = vshrl.u32 %v780, 7
      %v782 = vsub.s32 0, %v781
      %v783 = vrot.slane %v778, %v782
      %v784 = vlaneseq
      %v785 = vshrl.u32 %v784, 7
      %v786 = vsub.s32 1, %v785
      %v787 = vrot.slane %v778, %v786
      %v798 = vunpack.c.l.b16 %v770
      %v799 = vunpack.c.h.b16 %v770
      %v800 = vunpack.c.l.b16 %v771
      %v801 = vunpack.c.h.b16 %v771
      %v802 = vunpack.c.l.b16 %v772
      %v803 = vunpack.c.h.b16 %v772
      %v804 = vunpack.c.l.b16 %v773
      %v805 = vunpack.c.h.b16 %v773
      %v806 = vunpack.c.l.b16 %v774
      %v807 = vunpack.c.h.b16 %v774
      %v808 = vunpack.c.l.b16 %v775
      %v809 = vunpack.c.h.b16 %v775
      %v810 = vunpack.c.l.b16 %v776
      %v811 = vunpack.c.h.b16 %v776
      %v812 = vunpack.c.l.b16 %v777
      %v813 = vunpack.c.h.b16 %v777
      %v814 = vpack.c.b16 %v800, %v798
      %v815 = vpack.c.b16 %v801, %v799
      %v816 = vpack.c.b16 %v804, %v802
      %v817 = vpack.c.b16 %v805, %v803
      %v818 = vpack.c.b16 %v808, %v806
      %v819 = vpack.c.b16 %v809, %v807
      %v820 = vpack.c.b16 %v812, %v810
      %v821 = vpack.c.b16 %v813, %v811
      %vm830 = vcmask 523264
      %v832 = vsel %vm830, %v769, 0
      %834 = vmatprep.subr.bf16.mxu0 %v815
      %835 = vmatpush1.bf16.msra.mxu0 %v814
      %836 = vmatprep.subr.bf16.mxu0 %v817
      %837 = vmatpush1.bf16.msra.mxu0 %v816
      %838 = vmatprep.subr.bf16.mxu0 %v819
      %839 = vmatpush1.bf16.msra.mxu0 %v818
      %840 = vmatprep.subr.bf16.mxu0 %v821
      %841 = vmatpush1.bf16.msra.mxu0 %v820
      %842 = vmatprep.subr.bf16.mxu0 0
      %843 = vmatpush1.bf16.msra.mxu0 0
      %844 = vmatprep.subr.bf16.mxu0 0
      %845 = vmatpush1.bf16.msra.mxu0 0
      %846 = vmatprep.subr.bf16.mxu0 0
      %847 = vmatpush1.bf16.msra.mxu0 0
      %848 = vmatprep.subr.bf16.mxu0 0
      %849 = vmatpush1.bf16.msra.mxu0 0
      %850 = vmatprep.subr.bf16.mxu0 0
      %851 = vmatpush1.bf16.msra.mxu0 0
      %852 = vmatprep.subr.bf16.mxu0 0
      %853 = vmatpush1.bf16.msra.mxu0 0
      %854 = vmatprep.subr.bf16.mxu0 0
      %855 = vmatpush1.bf16.msra.mxu0 0
      %856 = vmatprep.subr.bf16.mxu0 0
      %857 = vmatpush1.bf16.msra.mxu0 0
      %858 = vmatprep.subr.bf16.mxu0 0
      %859 = vmatpush1.bf16.msra.mxu0 0
      %860 = vmatprep.subr.bf16.mxu0 0
      %861 = vmatpush1.bf16.msra.mxu0 0
      %862 = vmatprep.subr.bf16.mxu0 0
      %863 = vmatpush1.bf16.msra.mxu0 0
      %864 = vmatprep.subr.bf16.mxu0 0
      %865 = vmatpush1.bf16.msra.mxu0 0
      %866 = vmatprep.mubr.bf16.mxu0 0
      %867 = vmatmul.mubr.bf16.gmra.mrb[0].mxu0 %v832
      %v868 = vpop.f32.mrb[0].mxu0
      %v869 = vadd.f32 %v783, %v868
      %v870 = vpop.f32.mrb[0].mxu0
      %v871 = vadd.f32 %v787, %v870
      %v872 = vpop.f32.mrb[0].mxu0
      %v873 = vpop.f32.mrb[0].mxu0
      %874 = vdwg.mxu0
      %v875 = vmul.f32 %v869, 0.25
      %877 = vrot.lane.b32.xlu0 %v875, 112
      %v878 = vpop.permute.xlu0 %877
      %880 = vrot.lane.b32.xlu0 %v875, 96
      %v881 = vpop.permute.xlu0 %880
      %883 = vrot.lane.b32.xlu0 %v875, 80
      %v884 = vpop.permute.xlu0 %883
      %v886 = vpack.c.bf16 %v875, %v875
      %v887 = vpack.c.bf16 %v878, %v878
      %v888 = vpack.c.bf16 %v881, %v881
      %v889 = vpack.c.bf16 %v884, %v884
      %891 = vrot.lane.b32.xlu0 %v869, 112
      %v892 = vpop.permute.xlu0 %891
      %894 = vrot.lane.b32.xlu0 %v869, 96
      %v895 = vpop.permute.xlu0 %894
      %897 = vrot.lane.b32.xlu0 %v869, 80
      %v898 = vpop.permute.xlu0 %897
      %v900 = vpack.c.bf16 %v869, %v869
      %v901 = vpack.c.bf16 %v892, %v892
      %v902 = vpack.c.bf16 %v895, %v895
      %v903 = vpack.c.bf16 %v898, %v898
      %905 = vrot.lane.b32.xlu0 %v871, 112
      %v906 = vpop.permute.xlu0 %905
      %908 = vrot.lane.b32.xlu0 %v871, 96
      %v909 = vpop.permute.xlu0 %908
      %911 = vrot.lane.b32.xlu0 %v871, 80
      %v912 = vpop.permute.xlu0 %911
      %v914 = vpack.c.bf16 %v871, %v871
      %v915 = vpack.c.bf16 %v906, %v906
      %v916 = vpack.c.bf16 %v909, %v909
      %v917 = vpack.c.bf16 %v912, %v912
      %919 = vrot.lane.b32.xlu0 %v900, 64
      %v920 = vpop.permute.xlu0 %919
      %vm921 = vcmask 130048
      %v923 = vsel %vm921, %v886, 0
      %v926 = vsel %vm921, %v920, 0
      %928 = vmatprep.subr.bf16.mxu0 0
      %929 = vmatpush1.bf16.xpose.msra.mxu0 %v926
      %930 = vmatprep.subr.bf16.mxu0 0
      %931 = vmatpush1.bf16.xpose.msra.mxu0 0
      %932 = vmatprep.subr.bf16.mxu0 0
      %933 = vmatpush1.bf16.xpose.msra.mxu0 0
      %934 = vmatprep.subr.bf16.mxu0 0
      %935 = vmatpush1.bf16.xpose.msra.mxu0 0
      %936 = vmatprep.subr.bf16.mxu0 0
      %937 = vmatpush1.bf16.xpose.msra.mxu0 0
      %938 = vmatprep.subr.bf16.mxu0 0
      %939 = vmatpush1.bf16.xpose.msra.mxu0 0
      %940 = vmatprep.subr.bf16.mxu0 0
      %941 = vmatpush1.bf16.xpose.msra.mxu0 0
      %942 = vmatprep.subr.bf16.mxu0 0
      %943 = vmatpush1.bf16.xpose.msra.mxu0 0
      %944 = vmatprep.subr.bf16.mxu0 0
      %945 = vmatpush1.bf16.xpose.msra.mxu0 0
      %946 = vmatprep.subr.bf16.mxu0 0
      %947 = vmatpush1.bf16.xpose.msra.mxu0 0
      %948 = vmatprep.subr.bf16.mxu0 0
      %949 = vmatpush1.bf16.xpose.msra.mxu0 0
      %950 = vmatprep.subr.bf16.mxu0 0
      %951 = vmatpush1.bf16.xpose.msra.mxu0 0
      %952 = vmatprep.subr.bf16.mxu0 0
      %953 = vmatpush1.bf16.xpose.msra.mxu0 0
      %954 = vmatprep.subr.bf16.mxu0 0
      %955 = vmatpush1.bf16.xpose.msra.mxu0 0
      %956 = vmatprep.subr.bf16.mxu0 0
      %957 = vmatpush1.bf16.xpose.msra.mxu0 0
      %958 = vmatprep.subr.bf16.mxu0 0
      %959 = vmatpush1.bf16.xpose.msra.mxu0 0
      %960 = vmatprep.mubr.bf16.mxu0 0
      %961 = vmatmul.mubr.bf16.gmra.mrb[0].mxu0 %v923
      %v962 = vpop.f32.mrb[0].mxu0
      %v963 = vadd.f32 0.0, %v962
      %v964 = vpop.f32.mrb[0].mxu0
      %v965 = vpop.f32.mrb[0].mxu0
      %v966 = vpop.f32.mrb[0].mxu0
      %967 = vdwg.mxu0
      %969 = vrot.lane.b32.xlu0 %v901, 64
      %v970 = vpop.permute.xlu0 %969
      %v972 = vsel %vm921, %v887, 0
      %v975 = vsel %vm921, %v970, 0
      %977 = vmatprep.subr.bf16.mxu0 0
      %978 = vmatpush1.bf16.xpose.msra.mxu0 %v975
      %979 = vmatprep.subr.bf16.mxu0 0
      %980 = vmatpush1.bf16.xpose.msra.mxu0 0
      %981 = vmatprep.subr.bf16.mxu0 0
      %982 = vmatpush1.bf16.xpose.msra.mxu0 0
      %983 = vmatprep.subr.bf16.mxu0 0
      %984 = vmatpush1.bf16.xpose.msra.mxu0 0
      %985 = vmatprep.subr.bf16.mxu0 0
      %986 = vmatpush1.bf16.xpose.msra.mxu0 0
      %987 = vmatprep.subr.bf16.mxu0 0
      %988 = vmatpush1.bf16.xpose.msra.mxu0 0
      %989 = vmatprep.subr.bf16.mxu0 0
      %990 = vmatpush1.bf16.xpose.msra.mxu0 0
      %991 = vmatprep.subr.bf16.mxu0 0
      %992 = vmatpush1.bf16.xpose.msra.mxu0 0
      %993 = vmatprep.subr.bf16.mxu0 0
      %994 = vmatpush1.bf16.xpose.msra.mxu0 0
      %995 = vmatprep.subr.bf16.mxu0 0
      %996 = vmatpush1.bf16.xpose.msra.mxu0 0
      %997 = vmatprep.subr.bf16.mxu0 0
      %998 = vmatpush1.bf16.xpose.msra.mxu0 0
      %999 = vmatprep.subr.bf16.mxu0 0
      %1000 = vmatpush1.bf16.xpose.msra.mxu0 0
      %1001 = vmatprep.subr.bf16.mxu0 0
      %1002 = vmatpush1.bf16.xpose.msra.mxu0 0
      %1003 = vmatprep.subr.bf16.mxu0 0
      %1004 = vmatpush1.bf16.xpose.msra.mxu0 0
      %1005 = vmatprep.subr.bf16.mxu0 0
      %1006 = vmatpush1.bf16.xpose.msra.mxu0 0
      %1007 = vmatprep.subr.bf16.mxu0 0
      %1008 = vmatpush1.bf16.xpose.msra.mxu0 0
      %1009 = vmatprep.mubr.bf16.mxu0 0
      %1010 = vmatmul.mubr.bf16.gmra.mrb[0].mxu0 %v972
      %v1011 = vpop.f32.mrb[0].mxu0
      %v1012 = vadd.f32 0.0, %v1011
      %v1013 = vpop.f32.mrb[0].mxu0
      %v1014 = vpop.f32.mrb[0].mxu0
      %v1015 = vpop.f32.mrb[0].mxu0
      %1016 = vdwg.mxu0
      %1018 = vrot.lane.b32.xlu0 %v902, 64
      %v1019 = vpop.permute.xlu0 %1018
      %v1021 = vsel %vm921, %v888, 0
      %v1024 = vsel %vm921, %v1019, 0
      %1026 = vmatprep.subr.bf16.mxu0 0
      %1027 = vmatpush1.bf16.xpose.msra.mxu0 %v1024
      %1028 = vmatprep.subr.bf16.mxu0 0
      %1029 = vmatpush1.bf16.xpose.msra.mxu0 0
      %1030 = vmatprep.subr.bf16.mxu0 0
      %1031 = vmatpush1.bf16.xpose.msra.mxu0 0
      %1032 = vmatprep.subr.bf16.mxu0 0
      %1033 = vmatpush1.bf16.xpose.msra.mxu0 0
      %1034 = vmatprep.subr.bf16.mxu0 0
      %1035 = vmatpush1.bf16.xpose.msra.mxu0 0
      %1036 = vmatprep.subr.bf16.mxu0 0
      %1037 = vmatpush1.bf16.xpose.msra.mxu0 0
      %1038 = vmatprep.subr.bf16.mxu0 0
      %1039 = vmatpush1.bf16.xpose.msra.mxu0 0
      %1040 = vmatprep.subr.bf16.mxu0 0
      %1041 = vmatpush1.bf16.xpose.msra.mxu0 0
      %1042 = vmatprep.subr.bf16.mxu0 0
      %1043 = vmatpush1.bf16.xpose.msra.mxu0 0
      %1044 = vmatprep.subr.bf16.mxu0 0
      %1045 = vmatpush1.bf16.xpose.msra.mxu0 0
      %1046 = vmatprep.subr.bf16.mxu0 0
      %1047 = vmatpush1.bf16.xpose.msra.mxu0 0
      %1048 = vmatprep.subr.bf16.mxu0 0
      %1049 = vmatpush1.bf16.xpose.msra.mxu0 0
      %1050 = vmatprep.subr.bf16.mxu0 0
      %1051 = vmatpush1.bf16.xpose.msra.mxu0 0
      %1052 = vmatprep.subr.bf16.mxu0 0
      %1053 = vmatpush1.bf16.xpose.msra.mxu0 0
      %1054 = vmatprep.subr.bf16.mxu0 0
      %1055 = vmatpush1.bf16.xpose.msra.mxu0 0
      %1056 = vmatprep.subr.bf16.mxu0 0
      %1057 = vmatpush1.bf16.xpose.msra.mxu0 0
      %1058 = vmatprep.mubr.bf16.mxu0 0
      %1059 = vmatmul.mubr.bf16.gmra.mrb[0].mxu0 %v1021
      %v1060 = vpop.f32.mrb[0].mxu0
      %v1061 = vadd.f32 0.0, %v1060
      %v1062 = vpop.f32.mrb[0].mxu0
      %v1063 = vpop.f32.mrb[0].mxu0
      %v1064 = vpop.f32.mrb[0].mxu0
      %1065 = vdwg.mxu0
      %1067 = vrot.lane.b32.xlu0 %v903, 64
      %v1068 = vpop.permute.xlu0 %1067
      %v1070 = vsel %vm921, %v889, 0
      %v1073 = vsel %vm921, %v1068, 0
      %1075 = vmatprep.subr.bf16.mxu0 0
      %1076 = vmatpush1.bf16.xpose.msra.mxu0 %v1073
      %1077 = vmatprep.subr.bf16.mxu0 0
      %1078 = vmatpush1.bf16.xpose.msra.mxu0 0
      %1079 = vmatprep.subr.bf16.mxu0 0
      %1080 = vmatpush1.bf16.xpose.msra.mxu0 0
      %1081 = vmatprep.subr.bf16.mxu0 0
      %1082 = vmatpush1.bf16.xpose.msra.mxu0 0
      %1083 = vmatprep.subr.bf16.mxu0 0
      %1084 = vmatpush1.bf16.xpose.msra.mxu0 0
      %1085 = vmatprep.subr.bf16.mxu0 0
      %1086 = vmatpush1.bf16.xpose.msra.mxu0 0
      %1087 = vmatprep.subr.bf16.mxu0 0
      %1088 = vmatpush1.bf16.xpose.msra.mxu0 0
      %1089 = vmatprep.subr.bf16.mxu0 0
      %1090 = vmatpush1.bf16.xpose.msra.mxu0 0
      %1091 = vmatprep.subr.bf16.mxu0 0
      %1092 = vmatpush1.bf16.xpose.msra.mxu0 0
      %1093 = vmatprep.subr.bf16.mxu0 0
      %1094 = vmatpush1.bf16.xpose.msra.mxu0 0
      %1095 = vmatprep.subr.bf16.mxu0 0
      %1096 = vmatpush1.bf16.xpose.msra.mxu0 0
      %1097 = vmatprep.subr.bf16.mxu0 0
      %1098 = vmatpush1.bf16.xpose.msra.mxu0 0
      %1099 = vmatprep.subr.bf16.mxu0 0
      %1100 = vmatpush1.bf16.xpose.msra.mxu0 0
      %1101 = vmatprep.subr.bf16.mxu0 0
      %1102 = vmatpush1.bf16.xpose.msra.mxu0 0
      %1103 = vmatprep.subr.bf16.mxu0 0
      %1104 = vmatpush1.bf16.xpose.msra.mxu0 0
      %1105 = vmatprep.subr.bf16.mxu0 0
      %1106 = vmatpush1.bf16.xpose.msra.mxu0 0
      %1107 = vmatprep.mubr.bf16.mxu0 0
      %1108 = vmatmul.mubr.bf16.gmra.mrb[0].mxu0 %v1070
      %v1109 = vpop.f32.mrb[0].mxu0
      %v1110 = vadd.f32 0.0, %v1109
      %v1111 = vpop.f32.mrb[0].mxu0
      %v1112 = vpop.f32.mrb[0].mxu0
      %v1113 = vpop.f32.mrb[0].mxu0
      %1114 = vdwg.mxu0
      %vm1115 = vcmask 36864
      %v1116 = vsel %vm1115, %v963, -inf
      %1117 = vmax.xlane.f32.xlu0 %v1116
      %v1118 = vpop.xlane.xlu0 %1117
      %v1119 = vsel %vm1115, %v1012, -inf
      %1120 = vmax.xlane.f32.xlu0 %v1119
      %v1121 = vpop.xlane.xlu0 %1120
      %v1122 = vsel %vm1115, %v1061, -inf
      %1123 = vmax.xlane.f32.xlu0 %v1122
      %v1124 = vpop.xlane.xlu0 %1123
      %v1125 = vsel %vm1115, %v1110, -inf
      %1126 = vmax.xlane.f32.xlu0 %v1125
      %v1127 = vpop.xlane.xlu0 %1126
      %v1128 = vsub.f32 %v963, %v1118
      %v1129 = vsub.f32 %v1012, %v1121
      %v1130 = vsub.f32 %v1061, %v1124
      %v1131 = vsub.f32 %v1110, %v1127
      %v1132 = vmul.f32 %v1128, 1.442695
      %v1133 = vpow.pop %v1132
      %v1134 = vmul.f32 %v1129, 1.442695
      %v1135 = vpow.pop %v1134
      %v1136 = vmul.f32 %v1130, 1.442695
      %v1137 = vpow.pop %v1136
      %v1138 = vmul.f32 %v1131, 1.442695
      %v1139 = vpow.pop %v1138
      %v1140 = vsel %vm1115, %v1133, 0.0
      %1141 = vadd.xlane.f32.xlu0 %v1140
      %v1142 = vpop.xlane.xlu0 %1141
      %v1143 = vsel %vm1115, %v1135, 0.0
      %1144 = vadd.xlane.f32.xlu0 %v1143
      %v1145 = vpop.xlane.xlu0 %1144
      %v1146 = vsel %vm1115, %v1137, 0.0
      %1147 = vadd.xlane.f32.xlu0 %v1146
      %v1148 = vpop.xlane.xlu0 %1147
      %v1149 = vsel %vm1115, %v1139, 0.0
      %1150 = vadd.xlane.f32.xlu0 %v1149
      %v1151 = vpop.xlane.xlu0 %1150
      %v1152 = vrcp.pop %v1142
      %v1153 = vrcp.pop %v1145
      %v1154 = vrcp.pop %v1148
      %v1155 = vrcp.pop %v1151
      %v1156 = vmul.f32 %v1133, %v1152
      %v1157 = vmul.f32 %v1135, %v1153
      %v1158 = vmul.f32 %v1137, %v1154
      %v1159 = vmul.f32 %v1139, %v1155
      %v1160 = vpack.c.bf16 %v1156, %v1156
      %v1161 = vpack.c.bf16 %v1157, %v1157
      %v1162 = vpack.c.bf16 %v1158, %v1158
      %v1163 = vpack.c.bf16 %v1159, %v1159
      %vm1164 = vcmask 39936
      %v1166 = vsel %vm1164, %v1160, 0
      %vm1168 = vcmask 1041408
      %vm1169 = vcmask 1042432
      %v1170 = vsel %vm1168, 4294967295, 65535
      %v1171 = vsel %vm1169, %v1170, 0
      %v1173 = vand.u32 %v914, %v1171
      %1175 = vmatprep.subr.bf16.mxu0 0
      %1176 = vmatpush1.bf16.msra.mxu0 %v1173
      %1177 = vmatprep.subr.bf16.mxu0 0
      %1178 = vmatpush1.bf16.msra.mxu0 0
      %1179 = vmatprep.subr.bf16.mxu0 0
      %1180 = vmatpush1.bf16.msra.mxu0 0
      %1181 = vmatprep.subr.bf16.mxu0 0
      %1182 = vmatpush1.bf16.msra.mxu0 0
      %1183 = vmatprep.subr.bf16.mxu0 0
      %1184 = vmatpush1.bf16.msra.mxu0 0
      %1185 = vmatprep.subr.bf16.mxu0 0
      %1186 = vmatpush1.bf16.msra.mxu0 0
      %1187 = vmatprep.subr.bf16.mxu0 0
      %1188 = vmatpush1.bf16.msra.mxu0 0
      %1189 = vmatprep.subr.bf16.mxu0 0
      %1190 = vmatpush1.bf16.msra.mxu0 0
      %1191 = vmatprep.subr.bf16.mxu0 0
      %1192 = vmatpush1.bf16.msra.mxu0 0
      %1193 = vmatprep.subr.bf16.mxu0 0
      %1194 = vmatpush1.bf16.msra.mxu0 0
      %1195 = vmatprep.subr.bf16.mxu0 0
      %1196 = vmatpush1.bf16.msra.mxu0 0
      %1197 = vmatprep.subr.bf16.mxu0 0
      %1198 = vmatpush1.bf16.msra.mxu0 0
      %1199 = vmatprep.subr.bf16.mxu0 0
      %1200 = vmatpush1.bf16.msra.mxu0 0
      %1201 = vmatprep.subr.bf16.mxu0 0
      %1202 = vmatpush1.bf16.msra.mxu0 0
      %1203 = vmatprep.subr.bf16.mxu0 0
      %1204 = vmatpush1.bf16.msra.mxu0 0
      %1205 = vmatprep.subr.bf16.mxu0 0
      %1206 = vmatpush1.bf16.msra.mxu0 0
      %1207 = vmatprep.mubr.bf16.mxu0 0
      %1208 = vmatmul.mubr.bf16.gmra.mrb[0].mxu0 %v1166
      %v1209 = vpop.f32.mrb[0].mxu0
      %v1210 = vadd.f32 0.0, %v1209
      %v1211 = vpop.f32.mrb[0].mxu0
      %v1212 = vpop.f32.mrb[0].mxu0
      %v1213 = vpop.f32.mrb[0].mxu0
      %1214 = vdwg.mxu0
      %v1216 = vsel %vm1164, %v1161, 0
      %v1219 = vand.u32 %v915, %v1171
      %1221 = vmatprep.subr.bf16.mxu0 0
      %1222 = vmatpush1.bf16.msra.mxu0 %v1219
      %1223 = vmatprep.subr.bf16.mxu0 0
      %1224 = vmatpush1.bf16.msra.mxu0 0
      %1225 = vmatprep.subr.bf16.mxu0 0
      %1226 = vmatpush1.bf16.msra.mxu0 0
      %1227 = vmatprep.subr.bf16.mxu0 0
      %1228 = vmatpush1.bf16.msra.mxu0 0
      %1229 = vmatprep.subr.bf16.mxu0 0
      %1230 = vmatpush1.bf16.msra.mxu0 0
      %1231 = vmatprep.subr.bf16.mxu0 0
      %1232 = vmatpush1.bf16.msra.mxu0 0
      %1233 = vmatprep.subr.bf16.mxu0 0
      %1234 = vmatpush1.bf16.msra.mxu0 0
      %1235 = vmatprep.subr.bf16.mxu0 0
      %1236 = vmatpush1.bf16.msra.mxu0 0
      %1237 = vmatprep.subr.bf16.mxu0 0
      %1238 = vmatpush1.bf16.msra.mxu0 0
      %1239 = vmatprep.subr.bf16.mxu0 0
      %1240 = vmatpush1.bf16.msra.mxu0 0
      %1241 = vmatprep.subr.bf16.mxu0 0
      %1242 = vmatpush1.bf16.msra.mxu0 0
      %1243 = vmatprep.subr.bf16.mxu0 0
      %1244 = vmatpush1.bf16.msra.mxu0 0
      %1245 = vmatprep.subr.bf16.mxu0 0
      %1246 = vmatpush1.bf16.msra.mxu0 0
      %1247 = vmatprep.subr.bf16.mxu0 0
      %1248 = vmatpush1.bf16.msra.mxu0 0
      %1249 = vmatprep.subr.bf16.mxu0 0
      %1250 = vmatpush1.bf16.msra.mxu0 0
      %1251 = vmatprep.subr.bf16.mxu0 0
      %1252 = vmatpush1.bf16.msra.mxu0 0
      %1253 = vmatprep.mubr.bf16.mxu0 0
      %1254 = vmatmul.mubr.bf16.gmra.mrb[0].mxu0 %v1216
      %v1255 = vpop.f32.mrb[0].mxu0
      %v1256 = vadd.f32 0.0, %v1255
      %v1257 = vpop.f32.mrb[0].mxu0
      %v1258 = vpop.f32.mrb[0].mxu0
      %v1259 = vpop.f32.mrb[0].mxu0
      %1260 = vdwg.mxu0
      %v1262 = vsel %vm1164, %v1162, 0
      %v1265 = vand.u32 %v916, %v1171
      %1267 = vmatprep.subr.bf16.mxu0 0
      %1268 = vmatpush1.bf16.msra.mxu0 %v1265
      %1269 = vmatprep.subr.bf16.mxu0 0
      %1270 = vmatpush1.bf16.msra.mxu0 0
      %1271 = vmatprep.subr.bf16.mxu0 0
      %1272 = vmatpush1.bf16.msra.mxu0 0
      %1273 = vmatprep.subr.bf16.mxu0 0
      %1274 = vmatpush1.bf16.msra.mxu0 0
      %1275 = vmatprep.subr.bf16.mxu0 0
      %1276 = vmatpush1.bf16.msra.mxu0 0
      %1277 = vmatprep.subr.bf16.mxu0 0
      %1278 = vmatpush1.bf16.msra.mxu0 0
      %1279 = vmatprep.subr.bf16.mxu0 0
      %1280 = vmatpush1.bf16.msra.mxu0 0
      %1281 = vmatprep.subr.bf16.mxu0 0
      %1282 = vmatpush1.bf16.msra.mxu0 0
      %1283 = vmatprep.subr.bf16.mxu0 0
      %1284 = vmatpush1.bf16.msra.mxu0 0
      %1285 = vmatprep.subr.bf16.mxu0 0
      %1286 = vmatpush1.bf16.msra.mxu0 0
      %1287 = vmatprep.subr.bf16.mxu0 0
      %1288 = vmatpush1.bf16.msra.mxu0 0
      %1289 = vmatprep.subr.bf16.mxu0 0
      %1290 = vmatpush1.bf16.msra.mxu0 0
      %1291 = vmatprep.subr.bf16.mxu0 0
      %1292 = vmatpush1.bf16.msra.mxu0 0
      %1293 = vmatprep.subr.bf16.mxu0 0
      %1294 = vmatpush1.bf16.msra.mxu0 0
      %1295 = vmatprep.subr.bf16.mxu0 0
      %1296 = vmatpush1.bf16.msra.mxu0 0
      %1297 = vmatprep.subr.bf16.mxu0 0
      %1298 = vmatpush1.bf16.msra.mxu0 0
      %1299 = vmatprep.mubr.bf16.mxu0 0
      %1300 = vmatmul.mubr.bf16.gmra.mrb[0].mxu0 %v1262
      %v1301 = vpop.f32.mrb[0].mxu0
      %v1302 = vadd.f32 0.0, %v1301
      %v1303 = vpop.f32.mrb[0].mxu0
      %v1304 = vpop.f32.mrb[0].mxu0
      %v1305 = vpop.f32.mrb[0].mxu0
      %1306 = vdwg.mxu0
      %v1308 = vsel %vm1164, %v1163, 0
      %v1311 = vand.u32 %v917, %v1171
      %1313 = vmatprep.subr.bf16.mxu0 0
      %1314 = vmatpush1.bf16.msra.mxu0 %v1311
      %1315 = vmatprep.subr.bf16.mxu0 0
      %1316 = vmatpush1.bf16.msra.mxu0 0
      %1317 = vmatprep.subr.bf16.mxu0 0
      %1318 = vmatpush1.bf16.msra.mxu0 0
      %1319 = vmatprep.subr.bf16.mxu0 0
      %1320 = vmatpush1.bf16.msra.mxu0 0
      %1321 = vmatprep.subr.bf16.mxu0 0
      %1322 = vmatpush1.bf16.msra.mxu0 0
      %1323 = vmatprep.subr.bf16.mxu0 0
      %1324 = vmatpush1.bf16.msra.mxu0 0
      %1325 = vmatprep.subr.bf16.mxu0 0
      %1326 = vmatpush1.bf16.msra.mxu0 0
      %1327 = vmatprep.subr.bf16.mxu0 0
      %1328 = vmatpush1.bf16.msra.mxu0 0
      %1329 = vmatprep.subr.bf16.mxu0 0
      %1330 = vmatpush1.bf16.msra.mxu0 0
      %1331 = vmatprep.subr.bf16.mxu0 0
      %1332 = vmatpush1.bf16.msra.mxu0 0
      %1333 = vmatprep.subr.bf16.mxu0 0
      %1334 = vmatpush1.bf16.msra.mxu0 0
      %1335 = vmatprep.subr.bf16.mxu0 0
      %1336 = vmatpush1.bf16.msra.mxu0 0
      %1337 = vmatprep.subr.bf16.mxu0 0
      %1338 = vmatpush1.bf16.msra.mxu0 0
      %1339 = vmatprep.subr.bf16.mxu0 0
      %1340 = vmatpush1.bf16.msra.mxu0 0
      %1341 = vmatprep.subr.bf16.mxu0 0
      %1342 = vmatpush1.bf16.msra.mxu0 0
      %1343 = vmatprep.subr.bf16.mxu0 0
      %1344 = vmatpush1.bf16.msra.mxu0 0
      %1345 = vmatprep.mubr.bf16.mxu0 0
      %1346 = vmatmul.mubr.bf16.gmra.mrb[0].mxu0 %v1308
      %v1347 = vpop.f32.mrb[0].mxu0
      %v1348 = vadd.f32 0.0, %v1347
      %v1349 = vpop.f32.mrb[0].mxu0
      %v1350 = vpop.f32.mrb[0].mxu0
      %v1351 = vpop.f32.mrb[0].mxu0
      %1352 = vdwg.mxu0
      %1354 = vrot.lane.b32.xlu0 %v1256, 16
      %v1355 = vpop.permute.xlu0 %1354
      %1358 = vrot.lane.b32.xlu0 %v1302, 32
      %v1359 = vpop.permute.xlu0 %1358
      %1362 = vrot.lane.b32.xlu0 %v1348, 48
      %v1363 = vpop.permute.xlu0 %1362
      %v1365 = vsel %vm921, %v1210, %v1355
      %vm1366 = vcmask 261120
      %v1367 = vsel %vm1366, %v1365, %v1359
      %vm1368 = vcmask 392192
      %v1369 = vsel %vm1368, %v1367, %v1363
      %v1370 = vpack.c.bf16 %v1369, %v1369
      %v1371 = vld [vmem:[%s696] sm:$0xf]
      %v1372 = vld [vmem:[%s696 + $0x4] sm:$0xf]
      %v1373 = vld [vmem:[%s696 + $0x8] sm:$0xf]
      %v1374 = vld [vmem:[%s696 + $0xc] sm:$0xf]
      %v1375 = vld [vmem:[%s696 + $0x10] sm:$0xf]
      %v1376 = vld [vmem:[%s696 + $0x14] sm:$0xf]
      %v1377 = vld [vmem:[%s696 + $0x18] sm:$0xf]
      %v1378 = vld [vmem:[%s696 + $0x1c] sm:$0xf]
      %v1387 = vunpack.c.l.b16 %v1371
      %v1388 = vunpack.c.l.b16 %v1372
      %v1389 = vunpack.c.l.b16 %v1373
      %v1390 = vunpack.c.l.b16 %v1374
      %v1391 = vunpack.c.l.b16 %v1375
      %v1392 = vunpack.c.l.b16 %v1376
      %v1393 = vunpack.c.l.b16 %v1377
      %v1394 = vunpack.c.l.b16 %v1378
      %v1395 = vpack.c.b16 %v1388, %v1387
      %v1396 = vpack.c.b16 %v1390, %v1389
      %v1397 = vpack.c.b16 %v1392, %v1391
      %v1398 = vpack.c.b16 %v1394, %v1393
      %v1404 = vsel %vm830, %v1370, 0
      %1406 = vmatprep.subr.bf16.mxu0 0
      %1407 = vmatpush1.bf16.msra.mxu0 %v1395
      %1408 = vmatprep.subr.bf16.mxu0 0
      %1409 = vmatpush1.bf16.msra.mxu0 %v1396
      %1410 = vmatprep.subr.bf16.mxu0 0
      %1411 = vmatpush1.bf16.msra.mxu0 %v1397
      %1412 = vmatprep.subr.bf16.mxu0 0
      %1413 = vmatpush1.bf16.msra.mxu0 %v1398
      %1414 = vmatprep.subr.bf16.mxu0 0
      %1415 = vmatpush1.bf16.msra.mxu0 0
      %1416 = vmatprep.subr.bf16.mxu0 0
      %1417 = vmatpush1.bf16.msra.mxu0 0
      %1418 = vmatprep.subr.bf16.mxu0 0
      %1419 = vmatpush1.bf16.msra.mxu0 0
      %1420 = vmatprep.subr.bf16.mxu0 0
      %1421 = vmatpush1.bf16.msra.mxu0 0
      %1422 = vmatprep.subr.bf16.mxu0 0
      %1423 = vmatpush1.bf16.msra.mxu0 0
      %1424 = vmatprep.subr.bf16.mxu0 0
      %1425 = vmatpush1.bf16.msra.mxu0 0
      %1426 = vmatprep.subr.bf16.mxu0 0
      %1427 = vmatpush1.bf16.msra.mxu0 0
      %1428 = vmatprep.subr.bf16.mxu0 0
      %1429 = vmatpush1.bf16.msra.mxu0 0
      %1430 = vmatprep.subr.bf16.mxu0 0
      %1431 = vmatpush1.bf16.msra.mxu0 0
      %1432 = vmatprep.subr.bf16.mxu0 0
      %1433 = vmatpush1.bf16.msra.mxu0 0
      %1434 = vmatprep.subr.bf16.mxu0 0
      %1435 = vmatpush1.bf16.msra.mxu0 0
      %1436 = vmatprep.subr.bf16.mxu0 0
      %1437 = vmatpush1.bf16.msra.mxu0 0
      %1438 = vmatprep.mubr.bf16.mxu0 0
      %1439 = vmatmul.mubr.bf16.gmra.mrb[0].mxu0 %v1404
      %v1440 = vpop.f32.mrb[0].mxu0
      %v1441 = vadd.f32 0.0, %v1440
      %v1442 = vpop.f32.mrb[0].mxu0
      %v1443 = vpop.f32.mrb[0].mxu0
      %v1444 = vpop.f32.mrb[0].mxu0
      %1445 = vdwg.mxu0
      %v1446 = vadd.f32 %v737, %v1441
      %v1447 = vld [vmem:[%s699] sm:$0x1]
      %v1449 = vlaneseq
      %v1450 = vshrl.u32 %v1449, 7
      %v1451 = vsub.s32 0, %v1450
      %v1452 = vrot.slane %v1447, %v1451
      %v1454 = vadd.f32 %v1446, %v1452
      %v1455 = vld [vmem:[%s702] sm:$0x1]
      %v1456 = vld [vmem:[%s705] sm:$0x1]
      %v1457 = vsel %vm740, %v1454, 0.0
      %1458 = vadd.xlane.f32.xlu0 %v1457
      %v1459 = vpop.xlane.xlu0 %1458
      %v1460 = vmul.f32 %v1459, %v744
      %v1461 = vsub.f32 %v1454, %v1460
      %v1462 = vmul.f32 %v1461, %v1461
      %v1463 = vsel %vm740, %v1462, 0.0
      %1464 = vadd.xlane.f32.xlu0 %v1463
      %v1465 = vpop.xlane.xlu0 %1464
      %v1466 = vmul.f32 %v1465, %v744
      %v1467 = vadd.f32 %v1466, 1e-06
      %v1468 = vrsqrt.pop %v1467
      %v1469 = vmul.f32 %v1461, %v1468
      %v1471 = vlaneseq
      %v1472 = vshrl.u32 %v1471, 7
      %v1473 = vsub.s32 0, %v1472
      %v1474 = vrot.slane %v1455, %v1473
      %v1476 = vmul.f32 %v1469, %v1474
      %v1478 = vlaneseq
      %v1479 = vshrl.u32 %v1478, 7
      %v1480 = vsub.s32 0, %v1479
      %v1481 = vrot.slane %v1456, %v1480
      %v1483 = vadd.f32 %v1476, %v1481
      %v1484 = vpack.c.bf16 %v1483, %v1483
      %v1485 = vld [vmem:[%s710] sm:$0xff]
      %v1486 = vld [vmem:[%s710 + $0x8] sm:$0xff]
      %v1487 = vld [vmem:[%s710 + $0x10] sm:$0xff]
      %v1488 = vld [vmem:[%s710 + $0x18] sm:$0xff]
      %v1489 = vld [vmem:[%s710 + $0x20] sm:$0xff]
      %v1490 = vld [vmem:[%s710 + $0x28] sm:$0xff]
      %v1491 = vld [vmem:[%s710 + $0x30] sm:$0xff]
      %v1492 = vld [vmem:[%s710 + $0x38] sm:$0xff]
      %v1493 = vld [vmem:[%s714] sm:$0x3]
      %v1495 = vlaneseq
      %v1496 = vshrl.u32 %v1495, 7
      %v1497 = vsub.s32 0, %v1496
      %v1498 = vrot.slane %v1493, %v1497
      %v1499 = vlaneseq
      %v1500 = vshrl.u32 %v1499, 7
      %v1501 = vsub.s32 1, %v1500
      %v1502 = vrot.slane %v1493, %v1501
      %v1513 = vunpack.c.l.b16 %v1485
      %v1514 = vunpack.c.h.b16 %v1485
      %v1515 = vunpack.c.l.b16 %v1486
      %v1516 = vunpack.c.h.b16 %v1486
      %v1517 = vunpack.c.l.b16 %v1487
      %v1518 = vunpack.c.h.b16 %v1487
      %v1519 = vunpack.c.l.b16 %v1488
      %v1520 = vunpack.c.h.b16 %v1488
      %v1521 = vunpack.c.l.b16 %v1489
      %v1522 = vunpack.c.h.b16 %v1489
      %v1523 = vunpack.c.l.b16 %v1490
      %v1524 = vunpack.c.h.b16 %v1490
      %v1525 = vunpack.c.l.b16 %v1491
      %v1526 = vunpack.c.h.b16 %v1491
      %v1527 = vunpack.c.l.b16 %v1492
      %v1528 = vunpack.c.h.b16 %v1492
      %v1529 = vpack.c.b16 %v1515, %v1513
      %v1530 = vpack.c.b16 %v1516, %v1514
      %v1531 = vpack.c.b16 %v1519, %v1517
      %v1532 = vpack.c.b16 %v1520, %v1518
      %v1533 = vpack.c.b16 %v1523, %v1521
      %v1534 = vpack.c.b16 %v1524, %v1522
      %v1535 = vpack.c.b16 %v1527, %v1525
      %v1536 = vpack.c.b16 %v1528, %v1526
      %v1546 = vsel %vm830, %v1484, 0
      %1548 = vmatprep.subr.bf16.mxu0 %v1530
      %1549 = vmatpush1.bf16.msra.mxu0 %v1529
      %1550 = vmatprep.subr.bf16.mxu0 %v1532
      %1551 = vmatpush1.bf16.msra.mxu0 %v1531
      %1552 = vmatprep.subr.bf16.mxu0 %v1534
      %1553 = vmatpush1.bf16.msra.mxu0 %v1533
      %1554 = vmatprep.subr.bf16.mxu0 %v1536
      %1555 = vmatpush1.bf16.msra.mxu0 %v1535
      %1556 = vmatprep.subr.bf16.mxu0 0
      %1557 = vmatpush1.bf16.msra.mxu0 0
      %1558 = vmatprep.subr.bf16.mxu0 0
      %1559 = vmatpush1.bf16.msra.mxu0 0
      %1560 = vmatprep.subr.bf16.mxu0 0
      %1561 = vmatpush1.bf16.msra.mxu0 0
      %1562 = vmatprep.subr.bf16.mxu0 0
      %1563 = vmatpush1.bf16.msra.mxu0 0
      %1564 = vmatprep.subr.bf16.mxu0 0
      %1565 = vmatpush1.bf16.msra.mxu0 0
      %1566 = vmatprep.subr.bf16.mxu0 0
      %1567 = vmatpush1.bf16.msra.mxu0 0
      %1568 = vmatprep.subr.bf16.mxu0 0
      %1569 = vmatpush1.bf16.msra.mxu0 0
      %1570 = vmatprep.subr.bf16.mxu0 0
      %1571 = vmatpush1.bf16.msra.mxu0 0
      %1572 = vmatprep.subr.bf16.mxu0 0
      %1573 = vmatpush1.bf16.msra.mxu0 0
      %1574 = vmatprep.subr.bf16.mxu0 0
      %1575 = vmatpush1.bf16.msra.mxu0 0
      %1576 = vmatprep.subr.bf16.mxu0 0
      %1577 = vmatpush1.bf16.msra.mxu0 0
      %1578 = vmatprep.subr.bf16.mxu0 0
      %1579 = vmatpush1.bf16.msra.mxu0 0
      %1580 = vmatprep.mubr.bf16.mxu0 0
      %1581 = vmatmul.mubr.bf16.gmra.mrb[0].mxu0 %v1546
      %v1582 = vpop.f32.mrb[0].mxu0
      %v1583 = vadd.f32 %v1498, %v1582
      %v1584 = vpop.f32.mrb[0].mxu0
      %v1585 = vadd.f32 %v1502, %v1584
      %v1586 = vpop.f32.mrb[0].mxu0
      %v1587 = vpop.f32.mrb[0].mxu0
      %1588 = vdwg.mxu0
      %v1589 = vmul.f32 %v1583, 0.5
      %v1590 = vmul.f32 %v1585, 0.5
      %v1591 = vmul.f32 %v1583, 0.044715
      %v1592 = vmul.f32 %v1585, 0.044715
      %v1593 = vmul.f32 %v1591, %v1583
      %v1594 = vmul.f32 %v1592, %v1585
      %v1595 = vmul.f32 %v1593, %v1583
      %v1596 = vmul.f32 %v1594, %v1585
      %v1597 = vadd.f32 %v1583, %v1595
      %v1598 = vadd.f32 %v1585, %v1596
      %v1599 = vmul.f32 %v1597, 0.7978846
      %v1600 = vmul.f32 %v1598, 0.7978846
      %v1601 = vtanh.pop %v1599
      %v1602 = vtanh.pop %v1600
      %v1603 = vadd.f32 %v1601, 1.0
      %v1604 = vadd.f32 %v1602, 1.0
      %v1605 = vmul.f32 %v1589, %v1603
      %v1606 = vmul.f32 %v1590, %v1604
      %v1607 = vpack.c.bf16 %v1605, %v1605
      %v1608 = vpack.c.bf16 %v1606, %v1606
      %v1609 = vld [vmem:[%s719] sm:$0xf]
      %v1610 = vld [vmem:[%s719 + $0x4] sm:$0xf]
      %v1611 = vld [vmem:[%s719 + $0x8] sm:$0xf]
      %v1612 = vld [vmem:[%s719 + $0xc] sm:$0xf]
      %v1613 = vld [vmem:[%s719 + $0x10] sm:$0xf]
      %v1614 = vld [vmem:[%s719 + $0x14] sm:$0xf]
      %v1615 = vld [vmem:[%s719 + $0x18] sm:$0xf]
      %v1616 = vld [vmem:[%s719 + $0x1c] sm:$0xf]
      %v1617 = vld [vmem:[%s719 + $0x20] sm:$0xf]
      %v1618 = vld [vmem:[%s719 + $0x24] sm:$0xf]
      %v1619 = vld [vmem:[%s719 + $0x28] sm:$0xf]
      %v1620 = vld [vmem:[%s719 + $0x2c] sm:$0xf]
      %v1621 = vld [vmem:[%s719 + $0x30] sm:$0xf]
      %v1622 = vld [vmem:[%s719 + $0x34] sm:$0xf]
      %v1623 = vld [vmem:[%s719 + $0x38] sm:$0xf]
      %v1624 = vld [vmem:[%s719 + $0x3c] sm:$0xf]
      %v1625 = vld [vmem:[%s719 + $0x40] sm:$0xf]
      %v1626 = vld [vmem:[%s719 + $0x44] sm:$0xf]
      %v1627 = vld [vmem:[%s719 + $0x48] sm:$0xf]
      %v1628 = vld [vmem:[%s719 + $0x4c] sm:$0xf]
      %v1629 = vld [vmem:[%s719 + $0x50] sm:$0xf]
      %v1630 = vld [vmem:[%s719 + $0x54] sm:$0xf]
      %v1631 = vld [vmem:[%s719 + $0x58] sm:$0xf]
      %v1632 = vld [vmem:[%s719 + $0x5c] sm:$0xf]
      %v1633 = vld [vmem:[%s719 + $0x60] sm:$0xf]
      %v1634 = vld [vmem:[%s719 + $0x64] sm:$0xf]
      %v1635 = vld [vmem:[%s719 + $0x68] sm:$0xf]
      %v1636 = vld [vmem:[%s719 + $0x6c] sm:$0xf]
      %v1637 = vld [vmem:[%s719 + $0x70] sm:$0xf]
      %v1638 = vld [vmem:[%s719 + $0x74] sm:$0xf]
      %v1639 = vld [vmem:[%s719 + $0x78] sm:$0xf]
      %v1640 = vld [vmem:[%s719 + $0x7c] sm:$0xf]
      %v1673 = vunpack.c.l.b16 %v1609
      %v1674 = vunpack.c.l.b16 %v1610
      %v1675 = vunpack.c.l.b16 %v1611
      %v1676 = vunpack.c.l.b16 %v1612
      %v1677 = vunpack.c.l.b16 %v1613
      %v1678 = vunpack.c.l.b16 %v1614
      %v1679 = vunpack.c.l.b16 %v1615
      %v1680 = vunpack.c.l.b16 %v1616
      %v1681 = vunpack.c.l.b16 %v1617
      %v1682 = vunpack.c.l.b16 %v1618
      %v1683 = vunpack.c.l.b16 %v1619
      %v1684 = vunpack.c.l.b16 %v1620
      %v1685 = vunpack.c.l.b16 %v1621
      %v1686 = vunpack.c.l.b16 %v1622
      %v1687 = vunpack.c.l.b16 %v1623
      %v1688 = vunpack.c.l.b16 %v1624
      %v1689 = vunpack.c.l.b16 %v1625
      %v1690 = vunpack.c.l.b16 %v1626
      %v1691 = vunpack.c.l.b16 %v1627
      %v1692 = vunpack.c.l.b16 %v1628
      %v1693 = vunpack.c.l.b16 %v1629
      %v1694 = vunpack.c.l.b16 %v1630
      %v1695 = vunpack.c.l.b16 %v1631
      %v1696 = vunpack.c.l.b16 %v1632
      %v1697 = vunpack.c.l.b16 %v1633
      %v1698 = vunpack.c.l.b16 %v1634
      %v1699 = vunpack.c.l.b16 %v1635
      %v1700 = vunpack.c.l.b16 %v1636
      %v1701 = vunpack.c.l.b16 %v1637
      %v1702 = vunpack.c.l.b16 %v1638
      %v1703 = vunpack.c.l.b16 %v1639
      %v1704 = vunpack.c.l.b16 %v1640
      %v1705 = vpack.c.b16 %v1674, %v1673
      %v1706 = vpack.c.b16 %v1676, %v1675
      %v1707 = vpack.c.b16 %v1678, %v1677
      %v1708 = vpack.c.b16 %v1680, %v1679
      %v1709 = vpack.c.b16 %v1682, %v1681
      %v1710 = vpack.c.b16 %v1684, %v1683
      %v1711 = vpack.c.b16 %v1686, %v1685
      %v1712 = vpack.c.b16 %v1688, %v1687
      %v1713 = vpack.c.b16 %v1690, %v1689
      %v1714 = vpack.c.b16 %v1692, %v1691
      %v1715 = vpack.c.b16 %v1694, %v1693
      %v1716 = vpack.c.b16 %v1696, %v1695
      %v1717 = vpack.c.b16 %v1698, %v1697
      %v1718 = vpack.c.b16 %v1700, %v1699
      %v1719 = vpack.c.b16 %v1702, %v1701
      %v1720 = vpack.c.b16 %v1704, %v1703
      %1737 = vmatprep.subr.bf16.mxu0 0
      %1738 = vmatpush1.bf16.msra.mxu0 %v1705
      %1739 = vmatprep.subr.bf16.mxu0 0
      %1740 = vmatpush1.bf16.msra.mxu0 %v1706
      %1741 = vmatprep.subr.bf16.mxu0 0
      %1742 = vmatpush1.bf16.msra.mxu0 %v1707
      %1743 = vmatprep.subr.bf16.mxu0 0
      %1744 = vmatpush1.bf16.msra.mxu0 %v1708
      %1745 = vmatprep.subr.bf16.mxu0 0
      %1746 = vmatpush1.bf16.msra.mxu0 %v1709
      %1747 = vmatprep.subr.bf16.mxu0 0
      %1748 = vmatpush1.bf16.msra.mxu0 %v1710
      %1749 = vmatprep.subr.bf16.mxu0 0
      %1750 = vmatpush1.bf16.msra.mxu0 %v1711
      %1751 = vmatprep.subr.bf16.mxu0 0
      %1752 = vmatpush1.bf16.msra.mxu0 %v1712
      %1753 = vmatprep.subr.bf16.mxu0 0
      %1754 = vmatpush1.bf16.msra.mxu0 %v1713
      %1755 = vmatprep.subr.bf16.mxu0 0
      %1756 = vmatpush1.bf16.msra.mxu0 %v1714
      %1757 = vmatprep.subr.bf16.mxu0 0
      %1758 = vmatpush1.bf16.msra.mxu0 %v1715
      %1759 = vmatprep.subr.bf16.mxu0 0
      %1760 = vmatpush1.bf16.msra.mxu0 %v1716
      %1761 = vmatprep.subr.bf16.mxu0 0
      %1762 = vmatpush1.bf16.msra.mxu0 %v1717
      %1763 = vmatprep.subr.bf16.mxu0 0
      %1764 = vmatpush1.bf16.msra.mxu0 %v1718
      %1765 = vmatprep.subr.bf16.mxu0 0
      %1766 = vmatpush1.bf16.msra.mxu0 %v1719
      %1767 = vmatprep.subr.bf16.mxu0 0
      %1768 = vmatpush1.bf16.msra.mxu0 %v1720
      %1769 = vmatprep.mubr.bf16.mxu0 %v1608
      %1770 = vmatmul.mubr.bf16.gmra.mrb[0].mxu0 %v1607
      %v1771 = vpop.f32.mrb[0].mxu0
      %v1772 = vadd.f32 0.0, %v1771
      %v1773 = vpop.f32.mrb[0].mxu0
      %v1774 = vpop.f32.mrb[0].mxu0
      %v1775 = vpop.f32.mrb[0].mxu0
      %1776 = vdwg.mxu0
      %v1777 = vadd.f32 %v1454, %v1772
      %v1778 = vld [vmem:[%s722] sm:$0x1]
      %v1780 = vlaneseq
      %v1781 = vshrl.u32 %v1780, 7
      %v1782 = vsub.s32 0, %v1781
      %v1783 = vrot.slane %v1778, %v1782
      %v1785 = vadd.f32 %v1777, %v1783
      %p1786 = scmp.lt.s32.totalorder %s32, 1
      // Predicated region
      $region89: #{model_forward.5} parent=83 // pred_check
        %p1787 = pneg %p1786
      $region90: #{model_forward.5} parent=83 // pred_check_branch
        %1789 = sbr.rel (%p1787) target = $region92
      $region91: #{model_forward.5} parent=83 // pred_region
        %1790 = vst.msk [vmem:[%s726] sm:$0x1f] %vm740, %v1785
      $region92: #{model_forward.5} parent=83 // pred_fallthru
        _
      %p1791 = scmp.eq.s32.totalorder %s32, 1
      // Predicated region
      $region93: #{model_forward.5} parent=83 // pred_check
        %p1792 = pneg %p1791
      $region94: #{model_forward.5} parent=83 // pred_check_branch
        %1794 = sbr.rel (%p1792) target = $region96
      $region95: #{model_forward.5} parent=83 // pred_region
        %v1795 = vld [vmem:[%s14] sm:$0x1]
        %v1796 = vld [vmem:[%s15] sm:$0x1]
        %v1797 = vsel %vm740, %v1785, 0.0
        %1798 = vadd.xlane.f32.xlu0 %v1797
        %v1799 = vpop.xlane.xlu0 %1798
        %v1800 = vmul.f32 %v1799, %v744
        %v1801 = vsub.f32 %v1785, %v1800
        %v1802 = vmul.f32 %v1801, %v1801
        %v1803 = vsel %vm740, %v1802, 0.0
        %1804 = vadd.xlane.f32.xlu0 %v1803
        %v1805 = vpop.xlane.xlu0 %1804
        %v1806 = vmul.f32 %v1805, %v744
        %v1807 = vadd.f32 %v1806, 1e-06
        %v1808 = vrsqrt.pop %v1807
        %v1809 = vmul.f32 %v1801, %v1808
        %v1811 = vlaneseq
        %v1812 = vshrl.u32 %v1811, 7
        %v1813 = vsub.s32 0, %v1812
        %v1814 = vrot.slane %v1795, %v1813
        %v1816 = vmul.f32 %v1809, %v1814
        %v1818 = vlaneseq
        %v1819 = vshrl.u32 %v1818, 7
        %v1820 = vsub.s32 0, %v1819
        %v1821 = vrot.slane %v1796, %v1820
        %v1823 = vadd.f32 %v1816, %v1821
        %1824 = vst.msk [vmem:[%s726] sm:$0x1f] %vm740, %v1823
      $region96: #{model_forward.5} parent=83 // pred_fallthru
        _
      %p1825 = scmp.lt.s32.totalorder %s31, 3
      %s1826 = scalar_select %p1825, %s31, 3
      %s1827 = smul.addr %s1826, 8
      %s1828 = scalar_lea.vmem %s16, %s1827
      // Predicated region
      $region97: #{model_forward.5} parent=83 // pred_check
        %p1829 = pneg %p458
      $region98: #{model_forward.5} parent=83 // pred_check_branch
        %1831 = sbr.rel (%p1829) target = $region100
      $region99: #{model_forward.5} parent=83 // pred_region
        _
      $region100: #{model_forward.5} parent=83 // pred_fallthru
        _
    $region84: #{model_forward.5} parent=5 // pred_fallthru
      _
    %p1832 = scmp.le.s32.totalorder 2, %s22
    // Predicated region
    $region101: #{model_forward.5} parent=5 // pred_check
      %p1833 = pneg %p1832
    $region102: #{model_forward.5} parent=5 // pred_check_branch
      %1835 = sbr.rel (%p1833) target = $region104
    $region103: #{model_forward.5} parent=5 // pred_region
      %s1836 = ssub.s32 %s22, 2
      // Predicated region
      $region105: #{model_forward.5} parent=103 // pred_check
        %p1837 = pneg %p464
      $region106: #{model_forward.5} parent=103 // pred_check_branch
        %1839 = sbr.rel (%p1837) target = $region108
      $region107: #{model_forward.5} parent=103 // pred_region
        %p1840 = scmp.lt.s32.totalorder %s33, 3
        %s1841 = scalar_select %p1840, %s33, 3
        %s1842 = smul.addr %s1841, 8
        %s1843 = scalar_lea.vmem %s16, %s1842
      $region108: #{model_forward.5} parent=103 // pred_fallthru
        _
    $region104: #{model_forward.5} parent=5 // pred_fallthru
      _
  $region6: #{model_forward.5} parent=0 // loop_footer
    %s26 = sadd.s32 1, %s22
  $region7: #{model_forward.5} parent=0 // loop_footer_branch
    %21 = sbr.rel target = $region3
  $region8: #{model_forward.5} parent=0 // loop_exit
    _

// kernel: model_forward.7
$region0: #{model_forward.7}
  #allocation0 [shape = 'u32[]', space=smem, size = 0x4, offset = 0x4, fixed_abs, tag = 'smem constant byte address 0x4 - core index']
  #allocation1 [shape = 'u32[144,128]{1,0:T(1,128)}', space=vmem, size = 0x12000, scoped, tag = 'internal scratch']
  %s0 = inlined_call_operand.vmem [shape: f32[2,128], index: 0, kind: input, shape index: {}]
  %s1 = inlined_call_operand.vmem [shape: f32[128,5], index: 1, kind: input, shape index: {}]
  %s2 = inlined_call_operand.vmem [shape: f32[1,5], index: 2, kind: input, shape index: {}]
  %s3 = inlined_call_operand.vmem [shape: f32[2,5], index: 3, kind: output, shape index: {}]
  %s4 = sld [smem:[#allocation0]]
  $region22: #{model_forward.7} parent=0
    _
  %s6 = ssub.s32 1, %s4
  %s7 = scalar_select 0, %s6, %s4
  // Predicated region
  $region2: #{model_forward.7} parent=0 // pred_check
    _
  $region3: #{model_forward.7} parent=0 // pred_check_branch
    %9 = sbr.rel (0) target = $region5
  $region4: #{model_forward.7} parent=0 // pred_region
    _
  $region5: #{model_forward.7} parent=0 // pred_fallthru
    _
  // Predicated region
  $region6: #{model_forward.7} parent=0 // pred_check
    _
  $region7: #{model_forward.7} parent=0 // pred_check_branch
    %11 = sbr.rel (0) target = $region9
  $region8: #{model_forward.7} parent=0 // pred_region
    _
  $region9: #{model_forward.7} parent=0 // pred_fallthru
    _
  // Predicated region
  $region10: #{model_forward.7} parent=0 // pred_check
    _
  $region11: #{model_forward.7} parent=0 // pred_check_branch
    %13 = sbr.rel (0) target = $region13
  $region12: #{model_forward.7} parent=0 // pred_region
    _
  $region13: #{model_forward.7} parent=0 // pred_fallthru
    _
  %v14 = vld [vmem:[%s0] sm:$0x3]
  %v15 = vld [vmem:[%s1] sm:$0xff]
  %v16 = vld [vmem:[%s1 + $0x8] sm:$0xff]
  %v17 = vld [vmem:[%s1 + $0x10] sm:$0xff]
  %v18 = vld [vmem:[%s1 + $0x18] sm:$0xff]
  %v19 = vld [vmem:[%s1 + $0x20] sm:$0xff]
  %v20 = vld [vmem:[%s1 + $0x28] sm:$0xff]
  %v21 = vld [vmem:[%s1 + $0x30] sm:$0xff]
  %v22 = vld [vmem:[%s1 + $0x38] sm:$0xff]
  %v23 = vld [vmem:[%s1 + $0x40] sm:$0xff]
  %v24 = vld [vmem:[%s1 + $0x48] sm:$0xff]
  %v25 = vld [vmem:[%s1 + $0x50] sm:$0xff]
  %v26 = vld [vmem:[%s1 + $0x58] sm:$0xff]
  %v27 = vld [vmem:[%s1 + $0x60] sm:$0xff]
  %v28 = vld [vmem:[%s1 + $0x68] sm:$0xff]
  %v29 = vld [vmem:[%s1 + $0x70] sm:$0xff]
  %v30 = vld [vmem:[%s1 + $0x78] sm:$0xff]
  %v31 = vld [vmem:[%s2] sm:$0x1]
  %v33 = vlaneseq
  %v34 = vshrl.u32 %v33, 7
  %v35 = vsub.s32 0, %v34
  %v36 = vrot.slane %v31, %v35
  %38 = vmatprep.subr.mxu0 0.0
  %39 = vmatpush1.msra.mxu0 %v15
  %40 = vmatprep.subr.mxu0 0.0
  %41 = vmatpush1.msra.mxu0 %v16
  %42 = vmatprep.subr.mxu0 0.0
  %43 = vmatpush1.msra.mxu0 %v17
  %44 = vmatprep.subr.mxu0 0.0
  %45 = vmatpush1.msra.mxu0 %v18
  %46 = vmatprep.subr.mxu0 0.0
  %47 = vmatpush1.msra.mxu0 %v19
  %48 = vmatprep.subr.mxu0 0.0
  %49 = vmatpush1.msra.mxu0 %v20
  %50 = vmatprep.subr.mxu0 0.0
  %51 = vmatpush1.msra.mxu0 %v21
  %52 = vmatprep.subr.mxu0 0.0
  %53 = vmatpush1.msra.mxu0 %v22
  %54 = vmatprep.subr.mxu0 0.0
  %55 = vmatpush1.msra.mxu0 %v23
  %56 = vmatprep.subr.mxu0 0.0
  %57 = vmatpush1.msra.mxu0 %v24
  %58 = vmatprep.subr.mxu0 0.0
  %59 = vmatpush1.msra.mxu0 %v25
  %60 = vmatprep.subr.mxu0 0.0
  %61 = vmatpush1.msra.mxu0 %v26
  %62 = vmatprep.subr.mxu0 0.0
  %63 = vmatpush1.msra.mxu0 %v27
  %64 = vmatprep.subr.mxu0 0.0
  %65 = vmatpush1.msra.mxu0 %v28
  %66 = vmatprep.subr.mxu0 0.0
  %67 = vmatpush1.msra.mxu0 %v29
  %68 = vmatprep.subr.mxu0 0.0
  %69 = vmatpush1.msra.mxu0 %v30
  %70 = vmatprep.subr.mxu0 0.0
  %71 = vmatpush1.msra.mxu0 0.0
  %72 = vmatprep.subr.mxu0 0.0
  %73 = vmatpush1.msra.mxu0 0.0
  %74 = vmatprep.subr.mxu0 0.0
  %75 = vmatpush1.msra.mxu0 0.0
  %76 = vmatprep.subr.mxu0 0.0
  %77 = vmatpush1.msra.mxu0 0.0
  %78 = vmatprep.subr.mxu0 0.0
  %79 = vmatpush1.msra.mxu0 0.0
  %80 = vmatprep.subr.mxu0 0.0
  %81 = vmatpush1.msra.mxu0 0.0
  %82 = vmatprep.subr.mxu0 0.0
  %83 = vmatpush1.msra.mxu0 0.0
  %84 = vmatprep.subr.mxu0 0.0
  %85 = vmatpush1.msra.mxu0 0.0
  %86 = vmatprep.subr.mxu0 0.0
  %87 = vmatpush1.msra.mxu0 0.0
  %88 = vmatprep.subr.mxu0 0.0
  %89 = vmatpush1.msra.mxu0 0.0
  %90 = vmatprep.subr.mxu0 0.0
  %91 = vmatpush1.msra.mxu0 0.0
  %92 = vmatprep.subr.mxu0 0.0
  %93 = vmatpush1.msra.mxu0 0.0
  %94 = vmatprep.subr.mxu0 0.0
  %95 = vmatpush1.msra.mxu0 0.0
  %96 = vmatprep.subr.mxu0 0.0
  %97 = vmatpush1.msra.mxu0 0.0
  %98 = vmatprep.subr.mxu0 0.0
  %99 = vmatpush1.msra.mxu0 0.0
  %100 = vmatprep.subr.mxu0 0.0
  %101 = vmatpush1.msra.mxu0 0.0
  %102 = vmatprep.mubr.f32.mxu0 0.0
  %103 = vmatmul.mubr.f32.gmra.mrb[0].mxu0 %v14
  %v104 = vpop.f32.mrb[0].mxu0
  %v105 = vadd.f32 %v36, %v104
  %v106 = vpop.f32.mrb[0].mxu0
  %107 = vdwg.mxu0
  %v108 = vsub.f32 0.0, %v105
  %v109 = vmul.f32 %v108, 1.442695
  %v110 = vpow.pop %v109
  %v111 = vadd.f32 %v110, 1.0
  %v112 = vrcp.pop %v111
  %v113 = vmul.f32 3.0, %v112
  %v114 = vsub.f32 4.0, %v113
  %116 = vrot.lane.b32.xlu0 %v111, 127
  %v117 = vpop.permute.xlu0 %116
  %v119 = vrcp.pop %v117
  %v120 = vmul.f32 %v114, %v119
  %122 = vrot.lane.b32.xlu0 %v120, 1
  %v123 = vpop.permute.xlu0 %122
  %vm125 = vcmask 23552
  %v126 = vsel %vm125, %v105, %v113
  %vm127 = vcmask 31744
  %v128 = vsel %vm127, %v126, %v123
  %vm129 = vcmask 33792
  %130 = vst.msk [vmem:[%s3] sm:$0x3] %vm129, %v128
  // Predicated region
  $region14: #{model_forward.7} parent=0 // pred_check
    _
  $region15: #{model_forward.7} parent=0 // pred_check_branch
    %132 = sbr.rel (0) target = $region17
  $region16: #{model_forward.7} parent=0 // pred_region
    _
  $region17: #{model_forward.7} parent=0 // pred_fallthru
    _
  // Predicated region
  $region18: #{model_forward.7} parent=0 // pred_check
    _
  $region19: #{model_forward.7} parent=0 // pred_check_branch
    %134 = sbr.rel (0) target = $region21
  $region20: #{model_forward.7} parent=0 // pred_region
    _
  $region21: #{model_forward.7} parent=0 // pred_fallthru
    _

// kernel: model_forward.6
$region0: #{model_forward.6}
  #allocation0 [shape = 'u32[]', space=smem, size = 0x4, offset = 0x4, fixed_abs, tag = 'smem constant byte address 0x4 - core index']
  #allocation1 [shape = 'u32[144,128]{1,0:T(1,128)}', space=vmem, size = 0x12000, scoped, tag = 'internal scratch']
  %s0 = inlined_call_operand.vmem [shape: f32[2,5,64], index: 0, kind: input, shape index: {}]
  %s1 = inlined_call_operand.vmem [shape: f32[2,5,64], index: 1, kind: input, shape index: {}]
  %s2 = inlined_call_operand.vmem [shape: f32[6,1,64], index: 2, kind: input, shape index: {}]
  %s3 = inlined_call_operand.vmem [shape: f32[6,1,64], index: 3, kind: input, shape index: {}]
  %s4 = inlined_call_operand.vmem [shape: f32[6,1,64], index: 4, kind: input, shape index: {}]
  %s5 = inlined_call_operand.vmem [shape: f32[6,1,64], index: 5, kind: input, shape index: {}]
  %s6 = inlined_call_operand.vmem [shape: bf16[6,64,64], index: 6, kind: input, shape index: {}]
  %s7 = inlined_call_operand.vmem [shape: f32[6,1,64], index: 7, kind: input, shape index: {}]
  %s8 = inlined_call_operand.vmem [shape: bf16[6,64,128], index: 8, kind: input, shape index: {}]
  %s9 = inlined_call_operand.vmem [shape: f32[6,1,128], index: 9, kind: input, shape index: {}]
  %s10 = inlined_call_operand.vmem [shape: bf16[6,64,64], index: 10, kind: input, shape index: {}]
  %s11 = inlined_call_operand.vmem [shape: f32[6,1,64], index: 11, kind: input, shape index: {}]
  %s12 = inlined_call_operand.vmem [shape: f32[6,1,64], index: 12, kind: input, shape index: {}]
  %s13 = inlined_call_operand.vmem [shape: f32[6,1,64], index: 13, kind: input, shape index: {}]
  %s14 = inlined_call_operand.vmem [shape: bf16[6,64,256], index: 14, kind: input, shape index: {}]
  %s15 = inlined_call_operand.vmem [shape: f32[6,1,256], index: 15, kind: input, shape index: {}]
  %s16 = inlined_call_operand.vmem [shape: bf16[6,256,64], index: 16, kind: input, shape index: {}]
  %s17 = inlined_call_operand.vmem [shape: f32[6,1,64], index: 17, kind: input, shape index: {}]
  %s18 = inlined_call_operand.vmem [shape: f32[1,64], index: 18, kind: input, shape index: {}]
  %s19 = inlined_call_operand.vmem [shape: f32[1,64], index: 19, kind: input, shape index: {}]
  %s20 = inlined_call_operand.vmem [shape: f32[2,5,64], index: 20, kind: output, shape index: {}]
  %s21 = sld [smem:[#allocation0]]
  $region125: #{model_forward.6} parent=0
    _
  %s23 = ssub.s32 1, %s21
  %s24 = scalar_select 0, %s23, %s21
  loop: start=0, step=1, limit=14
  $region2: #{model_forward.6} parent=0 // loop_pre_header
    _
  $region3: #{model_forward.6} parent=0 // loop_header
    %s26 = sphi 0, %s30
    %p27 = scmp.ge.s32.totalorder %s26, 14
    %s33 = sphi 0, %s45
    %s34 = sphi 0, %s41
    %s35 = sphi 0, %s33
    %s36 = sphi 0, %s34
    %s37 = sphi 0, %s35
    %s38 = sphi 0, %s36
    %s48 = sphi 0, %s50
    %s51 = sphi 0, %s48
    %s52 = sphi 0, %s51
    %s68 = sphi 0, %s52
    %s74 = sphi 0, %s76
    %s77 = sphi 0, %s74
    %s78 = sphi 0, %s77
    %s94 = sphi 0, %s78
    %s100 = sphi 0, %s102
    %s103 = sphi 0, %s100
    %s104 = sphi 0, %s103
    %s120 = sphi 0, %s104
    %s126 = sphi 0, %s128
    %s129 = sphi 0, %s126
    %s130 = sphi 0, %s129
    %s146 = sphi 0, %s130
    %s152 = sphi 0, %s154
    %s155 = sphi 0, %s152
    %s156 = sphi 0, %s155
    %s172 = sphi 0, %s156
    %s178 = sphi 0, %s180
    %s181 = sphi 0, %s178
    %s182 = sphi 0, %s181
    %s198 = sphi 0, %s182
    %s204 = sphi 0, %s206
    %s207 = sphi 0, %s204
    %s208 = sphi 0, %s207
    %s224 = sphi 0, %s208
    %s230 = sphi 0, %s232
    %s233 = sphi 0, %s230
    %s234 = sphi 0, %s233
    %s250 = sphi 0, %s234
    %s256 = sphi 0, %s258
    %s259 = sphi 0, %s256
    %s260 = sphi 0, %s259
    %s276 = sphi 0, %s260
    %s282 = sphi 0, %s284
    %s285 = sphi 0, %s282
    %s286 = sphi 0, %s285
    %s302 = sphi 0, %s286
    %s308 = sphi 0, %s310
    %s311 = sphi 0, %s308
    %s312 = sphi 0, %s311
    %s328 = sphi 0, %s312
    %s334 = sphi 0, %s336
    %s337 = sphi 0, %s334
    %s338 = sphi 0, %s337
    %s354 = sphi 0, %s338
    %s360 = sphi 0, %s362
    %s363 = sphi 0, %s360
    %s364 = sphi 0, %s363
    %s380 = sphi 0, %s364
    %s386 = sphi 0, %s388
    %s389 = sphi 0, %s386
    %s390 = sphi 0, %s389
    %s406 = sphi 0, %s390
    %s412 = sphi 0, %s414
    %s415 = sphi 0, %s412
    %s416 = sphi 0, %s415
    %s432 = sphi 0, %s416
    %s438 = sphi 0, %s440
    %s441 = sphi 0, %s438
    %s442 = sphi 0, %s441
    %s458 = sphi 0, %s442
    %s464 = sphi 0, %s466
    %s467 = sphi 0, %s464
    %s468 = sphi 0, %s467
    %s484 = sphi 0, %s468
    %s490 = sphi 0, %s492
    %s493 = sphi 0, %s490
    %s494 = sphi 0, %s493
    %s510 = sphi 0, %s494
    %s514 = sphi 0, %s514
    %s516 = sphi 0, %s514
    %s517 = sphi 0, %s516
    %s531 = sphi 0, %s517
    %s535 = sphi 0, %s535
    %s537 = sphi 0, %s535
    %s538 = sphi 0, %s537
    %s552 = sphi 0, %s538
    %s558 = sphi 0, %s560
    %s561 = sphi 0, %s558
    %s562 = sphi 0, %s561
    %s578 = sphi 0, %s562
  $region4: #{model_forward.6} parent=0 // loop_header_branch
    %29 = sbr.rel (%p27) target = $region8
  $region5: #{model_forward.6} parent=0 // loop_body
    %s31 = ssub.s32 %s26, 1
    %s32 = ssub.s32 %s26, 2
    %s39 = sadd.s32 1, %s34
    %p40 = scmp.ge.s32.totalorder %s39, 6
    %s41 = scalar_select %p40, 0, %s39
    %s42 = sadd.s32 1, %s33
    %s43 = scalar_select %p40, %s42, %s33
    %p44 = scmp.ge.s32.totalorder %s43, 2
    %s45 = scalar_select %p44, 0, %s43
    %s46 = ssub.s32 %s33, %s45
    %p47 = scmp.eq.s32.totalorder %s46, 0
    %s49 = sadd.s32 %s48, 1
    %s50 = scalar_select %p47, %s48, %s49
    %p53 = pneg %p47
    %p54 = scmp.eq.s32.totalorder %s26, 11
    %p55 = por %p53, %p54
    %p56 = scmp.ne.s32.totalorder %s48, %s51
    %p57 = scmp.eq.s32.totalorder %s26, 0
    %p58 = por %p56, %p57
    %p59 = scmp.ne.s32.totalorder %s48, %s51
    %p60 = scmp.eq.s32.totalorder %s31, 11
    %p61 = por %p59, %p60
    %p62 = scmp.ne.s32.totalorder %s51, %s52
    %p63 = scmp.eq.s32.totalorder %s31, 0
    %p64 = por %p62, %p63
    %p65 = scmp.ne.s32.totalorder %s51, %s52
    %p66 = scmp.eq.s32.totalorder %s32, 11
    %p67 = por %p65, %p66
    %p69 = scmp.ne.s32.totalorder %s52, %s68
    %p70 = scmp.eq.s32.totalorder %s32, 0
    %p71 = por %p69, %p70
    %s72 = ssub.s32 %s33, %s45
    %p73 = scmp.eq.s32.totalorder %s72, 0
    %s75 = sadd.s32 %s74, 1
    %s76 = scalar_select %p73, %s74, %s75
    %p79 = pneg %p73
    %p80 = scmp.eq.s32.totalorder %s26, 11
    %p81 = por %p79, %p80
    %p82 = scmp.ne.s32.totalorder %s74, %s77
    %p83 = scmp.eq.s32.totalorder %s26, 0
    %p84 = por %p82, %p83
    %p85 = scmp.ne.s32.totalorder %s74, %s77
    %p86 = scmp.eq.s32.totalorder %s31, 11
    %p87 = por %p85, %p86
    %p88 = scmp.ne.s32.totalorder %s77, %s78
    %p89 = scmp.eq.s32.totalorder %s31, 0
    %p90 = por %p88, %p89
    %p91 = scmp.ne.s32.totalorder %s77, %s78
    %p92 = scmp.eq.s32.totalorder %s32, 11
    %p93 = por %p91, %p92
    %p95 = scmp.ne.s32.totalorder %s78, %s94
    %p96 = scmp.eq.s32.totalorder %s32, 0
    %p97 = por %p95, %p96
    %s98 = ssub.s32 %s34, %s41
    %p99 = scmp.eq.s32.totalorder %s98, 0
    %s101 = sadd.s32 %s100, 1
    %s102 = scalar_select %p99, %s100, %s101
    %p105 = pneg %p99
    %p106 = scmp.eq.s32.totalorder %s26, 11
    %p107 = por %p105, %p106
    %p108 = scmp.ne.s32.totalorder %s100, %s103
    %p109 = scmp.eq.s32.totalorder %s26, 0
    %p110 = por %p108, %p109
    %p111 = scmp.ne.s32.totalorder %s100, %s103
    %p112 = scmp.eq.s32.totalorder %s31, 11
    %p113 = por %p111, %p112
    %p114 = scmp.ne.s32.totalorder %s103, %s104
    %p115 = scmp.eq.s32.totalorder %s31, 0
    %p116 = por %p114, %p115
    %p117 = scmp.ne.s32.totalorder %s103, %s104
    %p118 = scmp.eq.s32.totalorder %s32, 11
    %p119 = por %p117, %p118
    %p121 = scmp.ne.s32.totalorder %s104, %s120
    %p122 = scmp.eq.s32.totalorder %s32, 0
    %p123 = por %p121, %p122
    %s124 = ssub.s32 %s34, %s41
    %p125 = scmp.eq.s32.totalorder %s124, 0
    %s127 = sadd.s32 %s126, 1
    %s128 = scalar_select %p125, %s126, %s127
    %p131 = pneg %p125
    %p132 = scmp.eq.s32.totalorder %s26, 11
    %p133 = por %p131, %p132
    %p134 = scmp.ne.s32.totalorder %s126, %s129
    %p135 = scmp.eq.s32.totalorder %s26, 0
    %p136 = por %p134, %p135
    %p137 = scmp.ne.s32.totalorder %s126, %s129
    %p138 = scmp.eq.s32.totalorder %s31, 11
    %p139 = por %p137, %p138
    %p140 = scmp.ne.s32.totalorder %s129, %s130
    %p141 = scmp.eq.s32.totalorder %s31, 0
    %p142 = por %p140, %p141
    %p143 = scmp.ne.s32.totalorder %s129, %s130
    %p144 = scmp.eq.s32.totalorder %s32, 11
    %p145 = por %p143, %p144
    %p147 = scmp.ne.s32.totalorder %s130, %s146
    %p148 = scmp.eq.s32.totalorder %s32, 0
    %p149 = por %p147, %p148
    %s150 = ssub.s32 %s34, %s41
    %p151 = scmp.eq.s32.totalorder %s150, 0
    %s153 = sadd.s32 %s152, 1
    %s154 = scalar_select %p151, %s152, %s153
    %p157 = pneg %p151
    %p158 = scmp.eq.s32.totalorder %s26, 11
    %p159 = por %p157, %p158
    %p160 = scmp.ne.s32.totalorder %s152, %s155
    %p161 = scmp.eq.s32.totalorder %s26, 0
    %p162 = por %p160, %p161
    %p163 = scmp.ne.s32.totalorder %s152, %s155
    %p164 = scmp.eq.s32.totalorder %s31, 11
    %p165 = por %p163, %p164
    %p166 = scmp.ne.s32.totalorder %s155, %s156
    %p167 = scmp.eq.s32.totalorder %s31, 0
    %p168 = por %p166, %p167
    %p169 = scmp.ne.s32.totalorder %s155, %s156
    %p170 = scmp.eq.s32.totalorder %s32, 11
    %p171 = por %p169, %p170
    %p173 = scmp.ne.s32.totalorder %s156, %s172
    %p174 = scmp.eq.s32.totalorder %s32, 0
    %p175 = por %p173, %p174
    %s176 = ssub.s32 %s34, %s41
    %p177 = scmp.eq.s32.totalorder %s176, 0
    %s179 = sadd.s32 %s178, 1
    %s180 = scalar_select %p177, %s178, %s179
    %p183 = pneg %p177
    %p184 = scmp.eq.s32.totalorder %s26, 11
    %p185 = por %p183, %p184
    %p186 = scmp.ne.s32.totalorder %s178, %s181
    %p187 = scmp.eq.s32.totalorder %s26, 0
    %p188 = por %p186, %p187
    %p189 = scmp.ne.s32.totalorder %s178, %s181
    %p190 = scmp.eq.s32.totalorder %s31, 11
    %p191 = por %p189, %p190
    %p192 = scmp.ne.s32.totalorder %s181, %s182
    %p193 = scmp.eq.s32.totalorder %s31, 0
    %p194 = por %p192, %p193
    %p195 = scmp.ne.s32.totalorder %s181, %s182
    %p196 = scmp.eq.s32.totalorder %s32, 11
    %p197 = por %p195, %p196
    %p199 = scmp.ne.s32.totalorder %s182, %s198
    %p200 = scmp.eq.s32.totalorder %s32, 0
    %p201 = por %p199, %p200
    %s202 = ssub.s32 %s34, %s41
    %p203 = scmp.eq.s32.totalorder %s202, 0
    %s205 = sadd.s32 %s204, 1
    %s206 = scalar_select %p203, %s204, %s205
    %p209 = pneg %p203
    %p210 = scmp.eq.s32.totalorder %s26, 11
    %p211 = por %p209, %p210
    %p212 = scmp.ne.s32.totalorder %s204, %s207
    %p213 = scmp.eq.s32.totalorder %s26, 0
    %p214 = por %p212, %p213
    %p215 = scmp.ne.s32.totalorder %s204, %s207
    %p216 = scmp.eq.s32.totalorder %s31, 11
    %p217 = por %p215, %p216
    %p218 = scmp.ne.s32.totalorder %s207, %s208
    %p219 = scmp.eq.s32.totalorder %s31, 0
    %p220 = por %p218, %p219
    %p221 = scmp.ne.s32.totalorder %s207, %s208
    %p222 = scmp.eq.s32.totalorder %s32, 11
    %p223 = por %p221, %p222
    %p225 = scmp.ne.s32.totalorder %s208, %s224
    %p226 = scmp.eq.s32.totalorder %s32, 0
    %p227 = por %p225, %p226
    %s228 = ssub.s32 %s34, %s41
    %p229 = scmp.eq.s32.totalorder %s228, 0
    %s231 = sadd.s32 %s230, 1
    %s232 = scalar_select %p229, %s230, %s231
    %p235 = pneg %p229
    %p236 = scmp.eq.s32.totalorder %s26, 11
    %p237 = por %p235, %p236
    %p238 = scmp.ne.s32.totalorder %s230, %s233
    %p239 = scmp.eq.s32.totalorder %s26, 0
    %p240 = por %p238, %p239
    %p241 = scmp.ne.s32.totalorder %s230, %s233
    %p242 = scmp.eq.s32.totalorder %s31, 11
    %p243 = por %p241, %p242
    %p244 = scmp.ne.s32.totalorder %s233, %s234
    %p245 = scmp.eq.s32.totalorder %s31, 0
    %p246 = por %p244, %p245
    %p247 = scmp.ne.s32.totalorder %s233, %s234
    %p248 = scmp.eq.s32.totalorder %s32, 11
    %p249 = por %p247, %p248
    %p251 = scmp.ne.s32.totalorder %s234, %s250
    %p252 = scmp.eq.s32.totalorder %s32, 0
    %p253 = por %p251, %p252
    %s254 = ssub.s32 %s34, %s41
    %p255 = scmp.eq.s32.totalorder %s254, 0
    %s257 = sadd.s32 %s256, 1
    %s258 = scalar_select %p255, %s256, %s257
    %p261 = pneg %p255
    %p262 = scmp.eq.s32.totalorder %s26, 11
    %p263 = por %p261, %p262
    %p264 = scmp.ne.s32.totalorder %s256, %s259
    %p265 = scmp.eq.s32.totalorder %s26, 0
    %p266 = por %p264, %p265
    %p267 = scmp.ne.s32.totalorder %s256, %s259
    %p268 = scmp.eq.s32.totalorder %s31, 11
    %p269 = por %p267, %p268
    %p270 = scmp.ne.s32.totalorder %s259, %s260
    %p271 = scmp.eq.s32.totalorder %s31, 0
    %p272 = por %p270, %p271
    %p273 = scmp.ne.s32.totalorder %s259, %s260
    %p274 = scmp.eq.s32.totalorder %s32, 11
    %p275 = por %p273, %p274
    %p277 = scmp.ne.s32.totalorder %s260, %s276
    %p278 = scmp.eq.s32.totalorder %s32, 0
    %p279 = por %p277, %p278
    %s280 = ssub.s32 %s34, %s41
    %p281 = scmp.eq.s32.totalorder %s280, 0
    %s283 = sadd.s32 %s282, 1
    %s284 = scalar_select %p281, %s282, %s283
    %p287 = pneg %p281
    %p288 = scmp.eq.s32.totalorder %s26, 11
    %p289 = por %p287, %p288
    %p290 = scmp.ne.s32.totalorder %s282, %s285
    %p291 = scmp.eq.s32.totalorder %s26, 0
    %p292 = por %p290, %p291
    %p293 = scmp.ne.s32.totalorder %s282, %s285
    %p294 = scmp.eq.s32.totalorder %s31, 11
    %p295 = por %p293, %p294
    %p296 = scmp.ne.s32.totalorder %s285, %s286
    %p297 = scmp.eq.s32.totalorder %s31, 0
    %p298 = por %p296, %p297
    %p299 = scmp.ne.s32.totalorder %s285, %s286
    %p300 = scmp.eq.s32.totalorder %s32, 11
    %p301 = por %p299, %p300
    %p303 = scmp.ne.s32.totalorder %s286, %s302
    %p304 = scmp.eq.s32.totalorder %s32, 0
    %p305 = por %p303, %p304
    %s306 = ssub.s32 %s34, %s41
    %p307 = scmp.eq.s32.totalorder %s306, 0
    %s309 = sadd.s32 %s308, 1
    %s310 = scalar_select %p307, %s308, %s309
    %p313 = pneg %p307
    %p314 = scmp.eq.s32.totalorder %s26, 11
    %p315 = por %p313, %p314
    %p316 = scmp.ne.s32.totalorder %s308, %s311
    %p317 = scmp.eq.s32.totalorder %s26, 0
    %p318 = por %p316, %p317
    %p319 = scmp.ne.s32.totalorder %s308, %s311
    %p320 = scmp.eq.s32.totalorder %s31, 11
    %p321 = por %p319, %p320
    %p322 = scmp.ne.s32.totalorder %s311, %s312
    %p323 = scmp.eq.s32.totalorder %s31, 0
    %p324 = por %p322, %p323
    %p325 = scmp.ne.s32.totalorder %s311, %s312
    %p326 = scmp.eq.s32.totalorder %s32, 11
    %p327 = por %p325, %p326
    %p329 = scmp.ne.s32.totalorder %s312, %s328
    %p330 = scmp.eq.s32.totalorder %s32, 0
    %p331 = por %p329, %p330
    %s332 = ssub.s32 %s34, %s41
    %p333 = scmp.eq.s32.totalorder %s332, 0
    %s335 = sadd.s32 %s334, 1
    %s336 = scalar_select %p333, %s334, %s335
    %p339 = pneg %p333
    %p340 = scmp.eq.s32.totalorder %s26, 11
    %p341 = por %p339, %p340
    %p342 = scmp.ne.s32.totalorder %s334, %s337
    %p343 = scmp.eq.s32.totalorder %s26, 0
    %p344 = por %p342, %p343
    %p345 = scmp.ne.s32.totalorder %s334, %s337
    %p346 = scmp.eq.s32.totalorder %s31, 11
    %p347 = por %p345, %p346
    %p348 = scmp.ne.s32.totalorder %s337, %s338
    %p349 = scmp.eq.s32.totalorder %s31, 0
    %p350 = por %p348, %p349
    %p351 = scmp.ne.s32.totalorder %s337, %s338
    %p352 = scmp.eq.s32.totalorder %s32, 11
    %p353 = por %p351, %p352
    %p355 = scmp.ne.s32.totalorder %s338, %s354
    %p356 = scmp.eq.s32.totalorder %s32, 0
    %p357 = por %p355, %p356
    %s358 = ssub.s32 %s34, %s41
    %p359 = scmp.eq.s32.totalorder %s358, 0
    %s361 = sadd.s32 %s360, 1
    %s362 = scalar_select %p359, %s360, %s361
    %p365 = pneg %p359
    %p366 = scmp.eq.s32.totalorder %s26, 11
    %p367 = por %p365, %p366
    %p368 = scmp.ne.s32.totalorder %s360, %s363
    %p369 = scmp.eq.s32.totalorder %s26, 0
    %p370 = por %p368, %p369
    %p371 = scmp.ne.s32.totalorder %s360, %s363
    %p372 = scmp.eq.s32.totalorder %s31, 11
    %p373 = por %p371, %p372
    %p374 = scmp.ne.s32.totalorder %s363, %s364
    %p375 = scmp.eq.s32.totalorder %s31, 0
    %p376 = por %p374, %p375
    %p377 = scmp.ne.s32.totalorder %s363, %s364
    %p378 = scmp.eq.s32.totalorder %s32, 11
    %p379 = por %p377, %p378
    %p381 = scmp.ne.s32.totalorder %s364, %s380
    %p382 = scmp.eq.s32.totalorder %s32, 0
    %p383 = por %p381, %p382
    %s384 = ssub.s32 %s34, %s41
    %p385 = scmp.eq.s32.totalorder %s384, 0
    %s387 = sadd.s32 %s386, 1
    %s388 = scalar_select %p385, %s386, %s387
    %p391 = pneg %p385
    %p392 = scmp.eq.s32.totalorder %s26, 11
    %p393 = por %p391, %p392
    %p394 = scmp.ne.s32.totalorder %s386, %s389
    %p395 = scmp.eq.s32.totalorder %s26, 0
    %p396 = por %p394, %p395
    %p397 = scmp.ne.s32.totalorder %s386, %s389
    %p398 = scmp.eq.s32.totalorder %s31, 11
    %p399 = por %p397, %p398
    %p400 = scmp.ne.s32.totalorder %s389, %s390
    %p401 = scmp.eq.s32.totalorder %s31, 0
    %p402 = por %p400, %p401
    %p403 = scmp.ne.s32.totalorder %s389, %s390
    %p404 = scmp.eq.s32.totalorder %s32, 11
    %p405 = por %p403, %p404
    %p407 = scmp.ne.s32.totalorder %s390, %s406
    %p408 = scmp.eq.s32.totalorder %s32, 0
    %p409 = por %p407, %p408
    %s410 = ssub.s32 %s34, %s41
    %p411 = scmp.eq.s32.totalorder %s410, 0
    %s413 = sadd.s32 %s412, 1
    %s414 = scalar_select %p411, %s412, %s413
    %p417 = pneg %p411
    %p418 = scmp.eq.s32.totalorder %s26, 11
    %p419 = por %p417, %p418
    %p420 = scmp.ne.s32.totalorder %s412, %s415
    %p421 = scmp.eq.s32.totalorder %s26, 0
    %p422 = por %p420, %p421
    %p423 = scmp.ne.s32.totalorder %s412, %s415
    %p424 = scmp.eq.s32.totalorder %s31, 11
    %p425 = por %p423, %p424
    %p426 = scmp.ne.s32.totalorder %s415, %s416
    %p427 = scmp.eq.s32.totalorder %s31, 0
    %p428 = por %p426, %p427
    %p429 = scmp.ne.s32.totalorder %s415, %s416
    %p430 = scmp.eq.s32.totalorder %s32, 11
    %p431 = por %p429, %p430
    %p433 = scmp.ne.s32.totalorder %s416, %s432
    %p434 = scmp.eq.s32.totalorder %s32, 0
    %p435 = por %p433, %p434
    %s436 = ssub.s32 %s34, %s41
    %p437 = scmp.eq.s32.totalorder %s436, 0
    %s439 = sadd.s32 %s438, 1
    %s440 = scalar_select %p437, %s438, %s439
    %p443 = pneg %p437
    %p444 = scmp.eq.s32.totalorder %s26, 11
    %p445 = por %p443, %p444
    %p446 = scmp.ne.s32.totalorder %s438, %s441
    %p447 = scmp.eq.s32.totalorder %s26, 0
    %p448 = por %p446, %p447
    %p449 = scmp.ne.s32.totalorder %s438, %s441
    %p450 = scmp.eq.s32.totalorder %s31, 11
    %p451 = por %p449, %p450
    %p452 = scmp.ne.s32.totalorder %s441, %s442
    %p453 = scmp.eq.s32.totalorder %s31, 0
    %p454 = por %p452, %p453
    %p455 = scmp.ne.s32.totalorder %s441, %s442
    %p456 = scmp.eq.s32.totalorder %s32, 11
    %p457 = por %p455, %p456
    %p459 = scmp.ne.s32.totalorder %s442, %s458
    %p460 = scmp.eq.s32.totalorder %s32, 0
    %p461 = por %p459, %p460
    %s462 = ssub.s32 %s34, %s41
    %p463 = scmp.eq.s32.totalorder %s462, 0
    %s465 = sadd.s32 %s464, 1
    %s466 = scalar_select %p463, %s464, %s465
    %p469 = pneg %p463
    %p470 = scmp.eq.s32.totalorder %s26, 11
    %p471 = por %p469, %p470
    %p472 = scmp.ne.s32.totalorder %s464, %s467
    %p473 = scmp.eq.s32.totalorder %s26, 0
    %p474 = por %p472, %p473
    %p475 = scmp.ne.s32.totalorder %s464, %s467
    %p476 = scmp.eq.s32.totalorder %s31, 11
    %p477 = por %p475, %p476
    %p478 = scmp.ne.s32.totalorder %s467, %s468
    %p479 = scmp.eq.s32.totalorder %s31, 0
    %p480 = por %p478, %p479
    %p481 = scmp.ne.s32.totalorder %s467, %s468
    %p482 = scmp.eq.s32.totalorder %s32, 11
    %p483 = por %p481, %p482
    %p485 = scmp.ne.s32.totalorder %s468, %s484
    %p486 = scmp.eq.s32.totalorder %s32, 0
    %p487 = por %p485, %p486
    %s488 = ssub.s32 %s34, %s41
    %p489 = scmp.eq.s32.totalorder %s488, 0
    %s491 = sadd.s32 %s490, 1
    %s492 = scalar_select %p489, %s490, %s491
    %p495 = pneg %p489
    %p496 = scmp.eq.s32.totalorder %s26, 11
    %p497 = por %p495, %p496
    %p498 = scmp.ne.s32.totalorder %s490, %s493
    %p499 = scmp.eq.s32.totalorder %s26, 0
    %p500 = por %p498, %p499
    %p501 = scmp.ne.s32.totalorder %s490, %s493
    %p502 = scmp.eq.s32.totalorder %s31, 11
    %p503 = por %p501, %p502
    %p504 = scmp.ne.s32.totalorder %s493, %s494
    %p505 = scmp.eq.s32.totalorder %s31, 0
    %p506 = por %p504, %p505
    %p507 = scmp.ne.s32.totalorder %s493, %s494
    %p508 = scmp.eq.s32.totalorder %s32, 11
    %p509 = por %p507, %p508
    %p511 = scmp.ne.s32.totalorder %s494, %s510
    %p512 = scmp.eq.s32.totalorder %s32, 0
    %p513 = por %p511, %p512
    %s515 = sadd.s32 %s514, 1
    %p518 = scmp.eq.s32.totalorder %s26, 11
    %p519 = scmp.ne.s32.totalorder %s514, %s516
    %p520 = scmp.eq.s32.totalorder %s26, 0
    %p521 = por %p519, %p520
    %p522 = scmp.ne.s32.totalorder %s514, %s516
    %p523 = scmp.eq.s32.totalorder %s31, 11
    %p524 = por %p522, %p523
    %p525 = scmp.ne.s32.totalorder %s516, %s517
    %p526 = scmp.eq.s32.totalorder %s31, 0
    %p527 = por %p525, %p526
    %p528 = scmp.ne.s32.totalorder %s516, %s517
    %p529 = scmp.eq.s32.totalorder %s32, 11
    %p530 = por %p528, %p529
    %p532 = scmp.ne.s32.totalorder %s517, %s531
    %p533 = scmp.eq.s32.totalorder %s32, 0
    %p534 = por %p532, %p533
    %s536 = sadd.s32 %s535, 1
    %p539 = scmp.eq.s32.totalorder %s26, 11
    %p540 = scmp.ne.s32.totalorder %s535, %s537
    %p541 = scmp.eq.s32.totalorder %s26, 0
    %p542 = por %p540, %p541
    %p543 = scmp.ne.s32.totalorder %s535, %s537
    %p544 = scmp.eq.s32.totalorder %s31, 11
    %p545 = por %p543, %p544
    %p546 = scmp.ne.s32.totalorder %s537, %s538
    %p547 = scmp.eq.s32.totalorder %s31, 0
    %p548 = por %p546, %p547
    %p549 = scmp.ne.s32.totalorder %s537, %s538
    %p550 = scmp.eq.s32.totalorder %s32, 11
    %p551 = por %p549, %p550
    %p553 = scmp.ne.s32.totalorder %s538, %s552
    %p554 = scmp.eq.s32.totalorder %s32, 0
    %p555 = por %p553, %p554
    %s556 = ssub.s32 %s33, %s45
    %p557 = scmp.eq.s32.totalorder %s556, 0
    %s559 = sadd.s32 %s558, 1
    %s560 = scalar_select %p557, %s558, %s559
    %p563 = pneg %p557
    %p564 = scmp.eq.s32.totalorder %s26, 11
    %p565 = por %p563, %p564
    %p566 = scmp.ne.s32.totalorder %s558, %s561
    %p567 = scmp.eq.s32.totalorder %s26, 0
    %p568 = por %p566, %p567
    %p569 = scmp.ne.s32.totalorder %s558, %s561
    %p570 = scmp.eq.s32.totalorder %s31, 11
    %p571 = por %p569, %p570
    %p572 = scmp.ne.s32.totalorder %s561, %s562
    %p573 = scmp.eq.s32.totalorder %s31, 0
    %p574 = por %p572, %p573
    %p575 = scmp.ne.s32.totalorder %s561, %s562
    %p576 = scmp.eq.s32.totalorder %s32, 11
    %p577 = por %p575, %p576
    %p579 = scmp.ne.s32.totalorder %s562, %s578
    %p580 = scmp.eq.s32.totalorder %s32, 0
    %p581 = por %p579, %p580
    %p582 = scmp.le.s32.totalorder 1, %s26
    %p583 = scmp.lt.s32.totalorder %s26, 13
    %p584 = pnand %p582, %p583
    %p585 = pneg %p584
    // Predicated region
    $region9: #{model_forward.6} parent=5 // pred_check
      _
    $region10: #{model_forward.6} parent=5 // pred_check_branch
      %587 = sbr.rel (%p584) target = $region12
    $region11: #{model_forward.6} parent=5 // pred_region
      %s588 = ssub.s32 %s26, 1
      // Predicated region
      $region13: #{model_forward.6} parent=11 // pred_check
        %p589 = pneg %p527
      $region14: #{model_forward.6} parent=11 // pred_check_branch
        %591 = sbr.rel (%p589) target = $region16
      $region15: #{model_forward.6} parent=11 // pred_region
        _
      $region16: #{model_forward.6} parent=11 // pred_fallthru
        _
      // Predicated region
      $region17: #{model_forward.6} parent=11 // pred_check
        %p592 = pneg %p548
      $region18: #{model_forward.6} parent=11 // pred_check_branch
        %594 = sbr.rel (%p592) target = $region20
      $region19: #{model_forward.6} parent=11 // pred_region
        _
      $region20: #{model_forward.6} parent=11 // pred_fallthru
        _
    $region12: #{model_forward.6} parent=5 // pred_fallthru
      _
    %p595 = scmp.lt.s32.totalorder %s26, 12
    // Predicated region
    $region21: #{model_forward.6} parent=5 // pred_check
      %p596 = pneg %p595
    $region22: #{model_forward.6} parent=5 // pred_check_branch
      %598 = sbr.rel (%p596) target = $region24
    $region23: #{model_forward.6} parent=5 // pred_region
      // Predicated region
      $region25: #{model_forward.6} parent=23 // pred_check
        %p599 = pneg %p58
      $region26: #{model_forward.6} parent=23 // pred_check_branch
        %601 = sbr.rel (%p599) target = $region28
      $region27: #{model_forward.6} parent=23 // pred_region
        %p602 = scmp.lt.s32.totalorder %s33, 1
        %s603 = scalar_select %p602, %s33, 1
        %s604 = smul.addr %s603, 8
        %s605 = scalar_lea.vmem %s0, %s604
      $region28: #{model_forward.6} parent=23 // pred_fallthru
        _
      // Predicated region
      $region29: #{model_forward.6} parent=23 // pred_check
        %p606 = pneg %p84
      $region30: #{model_forward.6} parent=23 // pred_check_branch
        %608 = sbr.rel (%p606) target = $region32
      $region31: #{model_forward.6} parent=23 // pred_region
        %p609 = scmp.lt.s32.totalorder %s33, 1
        %s610 = scalar_select %p609, %s33, 1
        %s611 = smul.addr %s610, 8
        %s612 = scalar_lea.vmem %s1, %s611
      $region32: #{model_forward.6} parent=23 // pred_fallthru
        _
      // Predicated region
      $region33: #{model_forward.6} parent=23 // pred_check
        %p613 = pneg %p110
      $region34: #{model_forward.6} parent=23 // pred_check_branch
        %615 = sbr.rel (%p613) target = $region36
      $region35: #{model_forward.6} parent=23 // pred_region
        %p616 = scmp.lt.s32.totalorder %s34, 5
        %s617 = scalar_select %p616, %s34, 5
        %s618 = scalar_lea.vmem %s2, %s617
      $region36: #{model_forward.6} parent=23 // pred_fallthru
        _
      // Predicated region
      $region37: #{model_forward.6} parent=23 // pred_check
        %p619 = pneg %p136
      $region38: #{model_forward.6} parent=23 // pred_check_branch
        %621 = sbr.rel (%p619) target = $region40
      $region39: #{model_forward.6} parent=23 // pred_region
        %p622 = scmp.lt.s32.totalorder %s34, 5
        %s623 = scalar_select %p622, %s34, 5
        %s624 = scalar_lea.vmem %s3, %s623
      $region40: #{model_forward.6} parent=23 // pred_fallthru
        _
      // Predicated region
      $region41: #{model_forward.6} parent=23 // pred_check
        %p625 = pneg %p162
      $region42: #{model_forward.6} parent=23 // pred_check_branch
        %627 = sbr.rel (%p625) target = $region44
      $region43: #{model_forward.6} parent=23 // pred_region
        %p628 = scmp.lt.s32.totalorder %s34, 5
        %s629 = scalar_select %p628, %s34, 5
        %s630 = scalar_lea.vmem %s4, %s629
      $region44: #{model_forward.6} parent=23 // pred_fallthru
        _
      // Predicated region
      $region45: #{model_forward.6} parent=23 // pred_check
        %p631 = pneg %p188
      $region46: #{model_forward.6} parent=23 // pred_check_branch
        %633 = sbr.rel (%p631) target = $region48
      $region47: #{model_forward.6} parent=23 // pred_region
        %p634 = scmp.lt.s32.totalorder %s34, 5
        %s635 = scalar_select %p634, %s34, 5
        %s636 = scalar_lea.vmem %s5, %s635
      $region48: #{model_forward.6} parent=23 // pred_fallthru
        _
      // Predicated region
      $region49: #{model_forward.6} parent=23 // pred_check
        %p637 = pneg %p214
      $region50: #{model_forward.6} parent=23 // pred_check_branch
        %639 = sbr.rel (%p637) target = $region52
      $region51: #{model_forward.6} parent=23 // pred_region
        %p640 = scmp.lt.s32.totalorder %s34, 5
        %s641 = scalar_select %p640, %s34, 5
        %s642 = smul.addr %s641, 8
        %s643 = smul.addr %s642, 4
        %s644 = scalar_lea.vmem %s6, %s643
      $region52: #{model_forward.6} parent=23 // pred_fallthru
        _
      // Predicated region
      $region53: #{model_forward.6} parent=23 // pred_check
        %p645 = pneg %p240
      $region54: #{model_forward.6} parent=23 // pred_check_branch
        %647 = sbr.rel (%p645) target = $region56
      $region55: #{model_forward.6} parent=23 // pred_region
        %p648 = scmp.lt.s32.totalorder %s34, 5
        %s649 = scalar_select %p648, %s34, 5
        %s650 = scalar_lea.vmem %s7, %s649
      $region56: #{model_forward.6} parent=23 // pred_fallthru
        _
      // Predicated region
      $region57: #{model_forward.6} parent=23 // pred_check
        %p651 = pneg %p266
      $region58: #{model_forward.6} parent=23 // pred_check_branch
        %653 = sbr.rel (%p651) target = $region60
      $region59: #{model_forward.6} parent=23 // pred_region
        %p654 = scmp.lt.s32.totalorder %s34, 5
        %s655 = scalar_select %p654, %s34, 5
        %s656 = smul.addr %s655, 8
        %s657 = smul.addr %s656, 4
        %s658 = scalar_lea.vmem %s8, %s657
      $region60: #{model_forward.6} parent=23 // pred_fallthru
        _
      // Predicated region
      $region61: #{model_forward.6} parent=23 // pred_check
        %p659 = pneg %p292
      $region62: #{model_forward.6} parent=23 // pred_check_branch
        %661 = sbr.rel (%p659) target = $region64
      $region63: #{model_forward.6} parent=23 // pred_region
        %p662 = scmp.lt.s32.totalorder %s34, 5
        %s663 = scalar_select %p662, %s34, 5
        %s664 = scalar_lea.vmem %s9, %s663
      $region64: #{model_forward.6} parent=23 // pred_fallthru
        _
      // Predicated region
      $region65: #{model_forward.6} parent=23 // pred_check
        %p665 = pneg %p318
      $region66: #{model_forward.6} parent=23 // pred_check_branch
        %667 = sbr.rel (%p665) target = $region68
      $region67: #{model_forward.6} parent=23 // pred_region
        %p668 = scmp.lt.s32.totalorder %s34, 5
        %s669 = scalar_select %p668, %s34, 5
        %s670 = smul.addr %s669, 8
        %s671 = smul.addr %s670, 4
        %s672 = scalar_lea.vmem %s10, %s671
      $region68: #{model_forward.6} parent=23 // pred_fallthru
        _
      // Predicated region
      $region69: #{model_forward.6} parent=23 // pred_check
        %p673 = pneg %p344
      $region70: #{model_forward.6} parent=23 // pred_check_branch
        %675 = sbr.rel (%p673) target = $region72
      $region71: #{model_forward.6} parent=23 // pred_region
        %p676 = scmp.lt.s32.totalorder %s34, 5
        %s677 = scalar_select %p676, %s34, 5
        %s678 = scalar_lea.vmem %s11, %s677
      $region72: #{model_forward.6} parent=23 // pred_fallthru
        _
      // Predicated region
      $region73: #{model_forward.6} parent=23 // pred_check
        %p679 = pneg %p370
      $region74: #{model_forward.6} parent=23 // pred_check_branch
        %681 = sbr.rel (%p679) target = $region76
      $region75: #{model_forward.6} parent=23 // pred_region
        %p682 = scmp.lt.s32.totalorder %s34, 5
        %s683 = scalar_select %p682, %s34, 5
        %s684 = scalar_lea.vmem %s12, %s683
      $region76: #{model_forward.6} parent=23 // pred_fallthru
        _
      // Predicated region
      $region77: #{model_forward.6} parent=23 // pred_check
        %p685 = pneg %p396
      $region78: #{model_forward.6} parent=23 // pred_check_branch
        %687 = sbr.rel (%p685) target = $region80
      $region79: #{model_forward.6} parent=23 // pred_region
        %p688 = scmp.lt.s32.totalorder %s34, 5
        %s689 = scalar_select %p688, %s34, 5
        %s690 = scalar_lea.vmem %s13, %s689
      $region80: #{model_forward.6} parent=23 // pred_fallthru
        _
      // Predicated region
      $region81: #{model_forward.6} parent=23 // pred_check
        %p691 = pneg %p422
      $region82: #{model_forward.6} parent=23 // pred_check_branch
        %693 = sbr.rel (%p691) target = $region84
      $region83: #{model_forward.6} parent=23 // pred_region
        %p694 = scmp.lt.s32.totalorder %s34, 5
        %s695 = scalar_select %p694, %s34, 5
        %s696 = smul.addr %s695, 16
        %s697 = smul.addr %s696, 4
        %s698 = scalar_lea.vmem %s14, %s697
      $region84: #{model_forward.6} parent=23 // pred_fallthru
        _
      // Predicated region
      $region85: #{model_forward.6} parent=23 // pred_check
        %p699 = pneg %p448
      $region86: #{model_forward.6} parent=23 // pred_check_branch
        %701 = sbr.rel (%p699) target = $region88
      $region87: #{model_forward.6} parent=23 // pred_region
        %p702 = scmp.lt.s32.totalorder %s34, 5
        %s703 = scalar_select %p702, %s34, 5
        %s704 = smul.addr %s703, 2
        %s705 = scalar_lea.vmem %s15, %s704
      $region88: #{model_forward.6} parent=23 // pred_fallthru
        _
      // Predicated region
      $region89: #{model_forward.6} parent=23 // pred_check
        %p706 = pneg %p474
      $region90: #{model_forward.6} parent=23 // pred_check_branch
        %708 = sbr.rel (%p706) target = $region92
      $region91: #{model_forward.6} parent=23 // pred_region
        %p709 = scmp.lt.s32.totalorder %s34, 5
        %s710 = scalar_select %p709, %s34, 5
        %s711 = smul.addr %s710, 32
        %s712 = smul.addr %s711, 4
        %s713 = scalar_lea.vmem %s16, %s712
      $region92: #{model_forward.6} parent=23 // pred_fallthru
        _
      // Predicated region
      $region93: #{model_forward.6} parent=23 // pred_check
        %p714 = pneg %p500
      $region94: #{model_forward.6} parent=23 // pred_check_branch
        %716 = sbr.rel (%p714) target = $region96
      $region95: #{model_forward.6} parent=23 // pred_region
        %p717 = scmp.lt.s32.totalorder %s34, 5
        %s718 = scalar_select %p717, %s34, 5
        %s719 = scalar_lea.vmem %s17, %s718
      $region96: #{model_forward.6} parent=23 // pred_fallthru
        _
    $region24: #{model_forward.6} parent=5 // pred_fallthru
      _
    %p720 = scmp.le.s32.totalorder 1, %s26
    %p721 = scmp.lt.s32.totalorder %s26, 13
    %p722 = pnand %p720, %p721
    %p723 = pneg %p722
    // Predicated region
    $region97: #{model_forward.6} parent=5 // pred_check
      _
    $region98: #{model_forward.6} parent=5 // pred_check_branch
      %725 = sbr.rel (%p722) target = $region100
    $region99: #{model_forward.6} parent=5 // pred_region
      %s726 = ssub.s32 %s26, 1
      %p727 = scmp.lt.s32.totalorder %s35, 1
      %s728 = scalar_select %p727, %s35, 1
      %s729 = smul.addr %s728, 8
      %s730 = scalar_lea.vmem %s0, %s729
      %p731 = pneg %p64
      %p732 = pneg %p61
      %p733 = scmp.lt.s32.totalorder %s35, 1
      %s734 = scalar_select %p733, %s35, 1
      %s735 = smul.addr %s734, 8
      %s736 = scalar_lea.vmem %s1, %s735
      %p737 = pneg %p90
      %p738 = pneg %p87
      %p739 = scmp.lt.s32.totalorder %s36, 5
      %s740 = scalar_select %p739, %s36, 5
      %s741 = scalar_lea.vmem %s2, %s740
      %p742 = pneg %p116
      %p743 = pneg %p113
      %p744 = scmp.lt.s32.totalorder %s36, 5
      %s745 = scalar_select %p744, %s36, 5
      %s746 = scalar_lea.vmem %s3, %s745
      %p747 = pneg %p142
      %p748 = pneg %p139
      %p749 = scmp.lt.s32.totalorder %s36, 5
      %s750 = scalar_select %p749, %s36, 5
      %s751 = scalar_lea.vmem %s4, %s750
      %p752 = pneg %p168
      %p753 = pneg %p165
      %p754 = scmp.lt.s32.totalorder %s36, 5
      %s755 = scalar_select %p754, %s36, 5
      %s756 = scalar_lea.vmem %s5, %s755
      %p757 = pneg %p194
      %p758 = pneg %p191
      %p759 = scmp.lt.s32.totalorder %s36, 5
      %s760 = scalar_select %p759, %s36, 5
      %s761 = smul.addr %s760, 8
      %s762 = smul.addr %s761, 4
      %s763 = scalar_lea.vmem %s6, %s762
      %p764 = pneg %p220
      %p765 = pneg %p217
      %p766 = scmp.lt.s32.totalorder %s36, 5
      %s767 = scalar_select %p766, %s36, 5
      %s768 = scalar_lea.vmem %s7, %s767
      %p769 = pneg %p246
      %p770 = pneg %p243
      %p771 = scmp.lt.s32.totalorder %s36, 5
      %s772 = scalar_select %p771, %s36, 5
      %s773 = smul.addr %s772, 8
      %s774 = smul.addr %s773, 4
      %s775 = scalar_lea.vmem %s8, %s774
      %p776 = pneg %p272
      %p777 = pneg %p269
      %p778 = scmp.lt.s32.totalorder %s36, 5
      %s779 = scalar_select %p778, %s36, 5
      %s780 = scalar_lea.vmem %s9, %s779
      %p781 = pneg %p298
      %p782 = pneg %p295
      %p783 = scmp.lt.s32.totalorder %s36, 5
      %s784 = scalar_select %p783, %s36, 5
      %s785 = smul.addr %s784, 8
      %s786 = smul.addr %s785, 4
      %s787 = scalar_lea.vmem %s10, %s786
      %p788 = pneg %p324
      %p789 = pneg %p321
      %p790 = scmp.lt.s32.totalorder %s36, 5
      %s791 = scalar_select %p790, %s36, 5
      %s792 = scalar_lea.vmem %s11, %s791
      %p793 = pneg %p350
      %p794 = pneg %p347
      %p795 = scmp.lt.s32.totalorder %s36, 5
      %s796 = scalar_select %p795, %s36, 5
      %s797 = scalar_lea.vmem %s12, %s796
      %p798 = pneg %p376
      %p799 = pneg %p373
      %p800 = scmp.lt.s32.totalorder %s36, 5
      %s801 = scalar_select %p800, %s36, 5
      %s802 = scalar_lea.vmem %s13, %s801
      %p803 = pneg %p402
      %p804 = pneg %p399
      %p805 = scmp.lt.s32.totalorder %s36, 5
      %s806 = scalar_select %p805, %s36, 5
      %s807 = smul.addr %s806, 16
      %s808 = smul.addr %s807, 4
      %s809 = scalar_lea.vmem %s14, %s808
      %p810 = pneg %p428
      %p811 = pneg %p425
      %p812 = scmp.lt.s32.totalorder %s36, 5
      %s813 = scalar_select %p812, %s36, 5
      %s814 = smul.addr %s813, 2
      %s815 = scalar_lea.vmem %s15, %s814
      %p816 = pneg %p454
      %p817 = pneg %p451
      %p818 = scmp.lt.s32.totalorder %s36, 5
      %s819 = scalar_select %p818, %s36, 5
      %s820 = smul.addr %s819, 32
      %s821 = smul.addr %s820, 4
      %s822 = scalar_lea.vmem %s16, %s821
      %p823 = pneg %p480
      %p824 = pneg %p477
      %p825 = scmp.lt.s32.totalorder %s36, 5
      %s826 = scalar_select %p825, %s36, 5
      %s827 = scalar_lea.vmem %s17, %s826
      %p828 = pneg %p506
      %p829 = pneg %p503
      %p830 = pneg %p527
      %p831 = pneg %p524
      %p832 = pneg %p548
      %p833 = pneg %p545
      %p834 = pneg %p574
      %p835 = pneg %p571
      %p836 = scmp.lt.s32.totalorder %s35, 1
      %s837 = scalar_select %p836, %s35, 1
      %s838 = smul.addr %s837, 8
      %s839 = scalar_lea.vmem %s20, %s838
      %p840 = scmp.lt.s32.totalorder %s35, 1
      %s841 = scalar_select %p840, %s35, 1
      %s842 = smul.addr %s841, 8
      %s843 = scalar_lea.vmem %s0, %s842
      %p844 = scmp.lt.s32.totalorder %s35, 1
      %s845 = scalar_select %p844, %s35, 1
      %s846 = smul.addr %s845, 8
      %s847 = scalar_lea.vmem %s1, %s846
      %p848 = scmp.lt.s32.totalorder %s36, 5
      %s849 = scalar_select %p848, %s36, 5
      %s850 = scalar_lea.vmem %s2, %s849
      %p851 = scmp.lt.s32.totalorder %s36, 5
      %s852 = scalar_select %p851, %s36, 5
      %s853 = scalar_lea.vmem %s3, %s852
      %p854 = scmp.lt.s32.totalorder %s36, 5
      %s855 = scalar_select %p854, %s36, 5
      %s856 = scalar_lea.vmem %s4, %s855
      %p857 = scmp.lt.s32.totalorder %s36, 5
      %s858 = scalar_select %p857, %s36, 5
      %s859 = scalar_lea.vmem %s5, %s858
      %p860 = scmp.lt.s32.totalorder %s36, 5
      %s861 = scalar_select %p860, %s36, 5
      %s862 = smul.addr %s861, 8
      %s863 = smul.addr %s862, 4
      %s864 = scalar_lea.vmem %s6, %s863
      %p865 = scmp.lt.s32.totalorder %s36, 5
      %s866 = scalar_select %p865, %s36, 5
      %s867 = scalar_lea.vmem %s7, %s866
      %p868 = scmp.lt.s32.totalorder %s36, 5
      %s869 = scalar_select %p868, %s36, 5
      %s870 = smul.addr %s869, 8
      %s871 = smul.addr %s870, 4
      %s872 = scalar_lea.vmem %s8, %s871
      %p873 = scmp.lt.s32.totalorder %s36, 5
      %s874 = scalar_select %p873, %s36, 5
      %s875 = scalar_lea.vmem %s9, %s874
      %p876 = scmp.lt.s32.totalorder %s36, 5
      %s877 = scalar_select %p876, %s36, 5
      %s878 = smul.addr %s877, 8
      %s879 = smul.addr %s878, 4
      %s880 = scalar_lea.vmem %s10, %s879
      %p881 = scmp.lt.s32.totalorder %s36, 5
      %s882 = scalar_select %p881, %s36, 5
      %s883 = scalar_lea.vmem %s11, %s882
      %p884 = scmp.lt.s32.totalorder %s36, 5
      %s885 = scalar_select %p884, %s36, 5
      %s886 = scalar_lea.vmem %s12, %s885
      %p887 = scmp.lt.s32.totalorder %s36, 5
      %s888 = scalar_select %p887, %s36, 5
      %s889 = scalar_lea.vmem %s13, %s888
      %p890 = scmp.lt.s32.totalorder %s36, 5
      %s891 = scalar_select %p890, %s36, 5
      %s892 = smul.addr %s891, 16
      %s893 = smul.addr %s892, 4
      %s894 = scalar_lea.vmem %s14, %s893
      %p895 = scmp.lt.s32.totalorder %s36, 5
      %s896 = scalar_select %p895, %s36, 5
      %s897 = smul.addr %s896, 2
      %s898 = scalar_lea.vmem %s15, %s897
      %p899 = scmp.lt.s32.totalorder %s36, 5
      %s900 = scalar_select %p899, %s36, 5
      %s901 = smul.addr %s900, 32
      %s902 = smul.addr %s901, 4
      %s903 = scalar_lea.vmem %s16, %s902
      %p904 = scmp.lt.s32.totalorder %s36, 5
      %s905 = scalar_select %p904, %s36, 5
      %s906 = scalar_lea.vmem %s17, %s905
      %p907 = scmp.lt.s32.totalorder %s35, 1
      %s908 = scalar_select %p907, %s35, 1
      %s909 = smul.addr %s908, 8
      %s910 = scalar_lea.vmem %s20, %s909
      %p912 = scmp.eq.s32.totalorder %s36, 0
      // Predicated region
      $region101: #{model_forward.6} parent=99 // pred_check
        %p913 = pneg %p912
      $region102: #{model_forward.6} parent=99 // pred_check_branch
        %915 = sbr.rel (%p913) target = $region104
      $region103: #{model_forward.6} parent=99 // pred_region
        %v916 = vld [vmem:[%s843] sm:$0x1f]
        %vm917 = vcmask 520192
        %918 = vst.msk [vmem:[%s910] sm:$0x1f] %vm917, %v916
      $region104: #{model_forward.6} parent=99 // pred_fallthru
        _
      %v919 = vld [vmem:[%s910] sm:$0x1f]
      %v920 = vld [vmem:[%s847] sm:$0x1f]
      %v921 = vld [vmem:[%s850] sm:$0x1]
      %v922 = vld [vmem:[%s853] sm:$0x1]
      %vm923 = vcmask 520192
      %v924 = vsel %vm923, %v919, 0.0
      %925 = vadd.xlane.f32.xlu0 %v924
      %v926 = vpop.xlane.xlu0 %925
      %v927 = vrcp.pop 64.0
      %v928 = vmul.f32 %v926, %v927
      %v929 = vsub.f32 %v919, %v928
      %v930 = vmul.f32 %v929, %v929
      %v931 = vsel %vm923, %v930, 0.0
      %932 = vadd.xlane.f32.xlu0 %v931
      %v933 = vpop.xlane.xlu0 %932
      %v934 = vmul.f32 %v933, %v927
      %v935 = vadd.f32 %v934, 1e-06
      %v936 = vrsqrt.pop %v935
      %v937 = vmul.f32 %v929, %v936
      %v939 = vlaneseq
      %v940 = vshrl.u32 %v939, 7
      %v941 = vsub.s32 0, %v940
      %v942 = vrot.slane %v921, %v941
      %v944 = vmul.f32 %v937, %v942
      %v946 = vlaneseq
      %v947 = vshrl.u32 %v946, 7
      %v948 = vsub.s32 0, %v947
      %v949 = vrot.slane %v922, %v948
      %v951 = vadd.f32 %v944, %v949
      %v952 = vld [vmem:[%s856] sm:$0x1]
      %v953 = vld [vmem:[%s859] sm:$0x1]
      %v954 = vsel %vm923, %v920, 0.0
      %955 = vadd.xlane.f32.xlu0 %v954
      %v956 = vpop.xlane.xlu0 %955
      %v957 = vmul.f32 %v956, %v927
      %v958 = vsub.f32 %v920, %v957
      %v959 = vmul.f32 %v958, %v958
      %v960 = vsel %vm923, %v959, 0.0
      %961 = vadd.xlane.f32.xlu0 %v960
      %v962 = vpop.xlane.xlu0 %961
      %v963 = vmul.f32 %v962, %v927
      %v964 = vadd.f32 %v963, 1e-06
      %v965 = vrsqrt.pop %v964
      %v966 = vmul.f32 %v958, %v965
      %v968 = vlaneseq
      %v969 = vshrl.u32 %v968, 7
      %v970 = vsub.s32 0, %v969
      %v971 = vrot.slane %v952, %v970
      %v973 = vmul.f32 %v966, %v971
      %v975 = vlaneseq
      %v976 = vshrl.u32 %v975, 7
      %v977 = vsub.s32 0, %v976
      %v978 = vrot.slane %v953, %v977
      %v980 = vadd.f32 %v973, %v978
      %v981 = vpack.c.bf16 %v980, %v980
      %v982 = vld [vmem:[%s864] sm:$0xf]
      %v983 = vld [vmem:[%s864 + $0x4] sm:$0xf]
      %v984 = vld [vmem:[%s864 + $0x8] sm:$0xf]
      %v985 = vld [vmem:[%s864 + $0xc] sm:$0xf]
      %v986 = vld [vmem:[%s864 + $0x10] sm:$0xf]
      %v987 = vld [vmem:[%s864 + $0x14] sm:$0xf]
      %v988 = vld [vmem:[%s864 + $0x18] sm:$0xf]
      %v989 = vld [vmem:[%s864 + $0x1c] sm:$0xf]
      %v990 = vld [vmem:[%s867] sm:$0x1]
      %v992 = vlaneseq
      %v993 = vshrl.u32 %v992, 7
      %v994 = vsub.s32 0, %v993
      %v995 = vrot.slane %v990, %v994
      %v1005 = vunpack.c.l.b16 %v982
      %v1006 = vunpack.c.l.b16 %v983
      %v1007 = vunpack.c.l.b16 %v984
      %v1008 = vunpack.c.l.b16 %v985
      %v1009 = vunpack.c.l.b16 %v986
      %v1010 = vunpack.c.l.b16 %v987
      %v1011 = vunpack.c.l.b16 %v988
      %v1012 = vunpack.c.l.b16 %v989
      %v1013 = vpack.c.b16 %v1006, %v1005
      %v1014 = vpack.c.b16 %v1008, %v1007
      %v1015 = vpack.c.b16 %v1010, %v1009
      %v1016 = vpack.c.b16 %v1012, %v1011
      %vm1021 = vcmask 523264
      %v1023 = vsel %vm1021, %v981, 0
      %1025 = vmatprep.subr.bf16.mxu0 0
      %1026 = vmatpush1.bf16.msra.mxu0 %v1013
      %1027 = vmatprep.subr.bf16.mxu0 0
      %1028 = vmatpush1.bf16.msra.mxu0 %v1014
      %1029 = vmatprep.subr.bf16.mxu0 0
      %1030 = vmatpush1.bf16.msra.mxu0 %v1015
      %1031 = vmatprep.subr.bf16.mxu0 0
      %1032 = vmatpush1.bf16.msra.mxu0 %v1016
      %1033 = vmatprep.subr.bf16.mxu0 0
      %1034 = vmatpush1.bf16.msra.mxu0 0
      %1035 = vmatprep.subr.bf16.mxu0 0
      %1036 = vmatpush1.bf16.msra.mxu0 0
      %1037 = vmatprep.subr.bf16.mxu0 0
      %1038 = vmatpush1.bf16.msra.mxu0 0
      %1039 = vmatprep.subr.bf16.mxu0 0
      %1040 = vmatpush1.bf16.msra.mxu0 0
      %1041 = vmatprep.subr.bf16.mxu0 0
      %1042 = vmatpush1.bf16.msra.mxu0 0
      %1043 = vmatprep.subr.bf16.mxu0 0
      %1044 = vmatpush1.bf16.msra.mxu0 0
      %1045 = vmatprep.subr.bf16.mxu0 0
      %1046 = vmatpush1.bf16.msra.mxu0 0
      %1047 = vmatprep.subr.bf16.mxu0 0
      %1048 = vmatpush1.bf16.msra.mxu0 0
      %1049 = vmatprep.subr.bf16.mxu0 0
      %1050 = vmatpush1.bf16.msra.mxu0 0
      %1051 = vmatprep.subr.bf16.mxu0 0
      %1052 = vmatpush1.bf16.msra.mxu0 0
      %1053 = vmatprep.subr.bf16.mxu0 0
      %1054 = vmatpush1.bf16.msra.mxu0 0
      %1055 = vmatprep.subr.bf16.mxu0 0
      %1056 = vmatpush1.bf16.msra.mxu0 0
      %1057 = vmatprep.mubr.bf16.mxu0 0
      %1058 = vmatmul.mubr.bf16.gmra.mrb[0].mxu0 %v1023
      %v1059 = vpop.f32.mrb[0].mxu0
      %v1060 = vadd.f32 %v995, %v1059
      %v1061 = vpop.f32.mrb[0].mxu0
      %v1062 = vpop.f32.mrb[0].mxu0
      %v1063 = vpop.f32.mrb[0].mxu0
      %1064 = vdwg.mxu0
      %v1065 = vpack.c.bf16 %v951, %v951
      %v1066 = vld [vmem:[%s872] sm:$0xf]
      %v1067 = vld [vmem:[%s872 + $0x4] sm:$0xf]
      %v1068 = vld [vmem:[%s872 + $0x8] sm:$0xf]
      %v1069 = vld [vmem:[%s872 + $0xc] sm:$0xf]
      %v1070 = vld [vmem:[%s872 + $0x10] sm:$0xf]
      %v1071 = vld [vmem:[%s872 + $0x14] sm:$0xf]
      %v1072 = vld [vmem:[%s872 + $0x18] sm:$0xf]
      %v1073 = vld [vmem:[%s872 + $0x1c] sm:$0xf]
      %v1074 = vld [vmem:[%s875] sm:$0x1]
      %v1076 = vlaneseq
      %v1077 = vshrl.u32 %v1076, 7
      %v1078 = vsub.s32 0, %v1077
      %v1079 = vrot.slane %v1074, %v1078
      %v1089 = vunpack.c.l.b16 %v1066
      %v1090 = vunpack.c.l.b16 %v1067
      %v1091 = vunpack.c.l.b16 %v1068
      %v1092 = vunpack.c.l.b16 %v1069
      %v1093 = vunpack.c.l.b16 %v1070
      %v1094 = vunpack.c.l.b16 %v1071
      %v1095 = vunpack.c.l.b16 %v1072
      %v1096 = vunpack.c.l.b16 %v1073
      %v1097 = vpack.c.b16 %v1090, %v1089
      %v1098 = vpack.c.b16 %v1092, %v1091
      %v1099 = vpack.c.b16 %v1094, %v1093
      %v1100 = vpack.c.b16 %v1096, %v1095
      %v1106 = vsel %vm1021, %v1065, 0
      %1108 = vmatprep.subr.bf16.mxu0 0
      %1109 = vmatpush1.bf16.msra.mxu0 %v1097
      %1110 = vmatprep.subr.bf16.mxu0 0
      %1111 = vmatpush1.bf16.msra.mxu0 %v1098
      %1112 = vmatprep.subr.bf16.mxu0 0
      %1113 = vmatpush1.bf16.msra.mxu0 %v1099
      %1114 = vmatprep.subr.bf16.mxu0 0
      %1115 = vmatpush1.bf16.msra.mxu0 %v1100
      %1116 = vmatprep.subr.bf16.mxu0 0
      %1117 = vmatpush1.bf16.msra.mxu0 0
      %1118 = vmatprep.subr.bf16.mxu0 0
      %1119 = vmatpush1.bf16.msra.mxu0 0
      %1120 = vmatprep.subr.bf16.mxu0 0
      %1121 = vmatpush1.bf16.msra.mxu0 0
      %1122 = vmatprep.subr.bf16.mxu0 0
      %1123 = vmatpush1.bf16.msra.mxu0 0
      %1124 = vmatprep.subr.bf16.mxu0 0
      %1125 = vmatpush1.bf16.msra.mxu0 0
      %1126 = vmatprep.subr.bf16.mxu0 0
      %1127 = vmatpush1.bf16.msra.mxu0 0
      %1128 = vmatprep.subr.bf16.mxu0 0
      %1129 = vmatpush1.bf16.msra.mxu0 0
      %1130 = vmatprep.subr.bf16.mxu0 0
      %1131 = vmatpush1.bf16.msra.mxu0 0
      %1132 = vmatprep.subr.bf16.mxu0 0
      %1133 = vmatpush1.bf16.msra.mxu0 0
      %1134 = vmatprep.subr.bf16.mxu0 0
      %1135 = vmatpush1.bf16.msra.mxu0 0
      %1136 = vmatprep.subr.bf16.mxu0 0
      %1137 = vmatpush1.bf16.msra.mxu0 0
      %1138 = vmatprep.subr.bf16.mxu0 0
      %1139 = vmatpush1.bf16.msra.mxu0 0
      %1140 = vmatprep.mubr.bf16.mxu0 0
      %1141 = vmatmul.mubr.bf16.gmra.mrb[0].mxu0 %v1106
      %v1142 = vpop.f32.mrb[0].mxu0
      %v1143 = vadd.f32 %v1079, %v1142
      %v1144 = vpop.f32.mrb[0].mxu0
      %v1145 = vpop.f32.mrb[0].mxu0
      %v1146 = vpop.f32.mrb[0].mxu0
      %1147 = vdwg.mxu0
      %v1148 = vmul.f32 %v1060, 0.35355338
      %1150 = vrot.lane.b32.xlu0 %v1148, 120
      %v1151 = vpop.permute.xlu0 %1150
      %1153 = vrot.lane.b32.xlu0 %v1148, 112
      %v1154 = vpop.permute.xlu0 %1153
      %1156 = vrot.lane.b32.xlu0 %v1148, 104
      %v1157 = vpop.permute.xlu0 %1156
      %1159 = vrot.lane.b32.xlu0 %v1148, 96
      %v1160 = vpop.permute.xlu0 %1159
      %1162 = vrot.lane.b32.xlu0 %v1148, 88
      %v1163 = vpop.permute.xlu0 %1162
      %1165 = vrot.lane.b32.xlu0 %v1148, 80
      %v1166 = vpop.permute.xlu0 %1165
      %1168 = vrot.lane.b32.xlu0 %v1148, 72
      %v1169 = vpop.permute.xlu0 %1168
      %v1171 = vpack.c.bf16 %v1148, %v1148
      %v1172 = vpack.c.bf16 %v1151, %v1151
      %v1173 = vpack.c.bf16 %v1154, %v1154
      %v1174 = vpack.c.bf16 %v1157, %v1157
      %v1175 = vpack.c.bf16 %v1160, %v1160
      %v1176 = vpack.c.bf16 %v1163, %v1163
      %v1177 = vpack.c.bf16 %v1166, %v1166
      %v1178 = vpack.c.bf16 %v1169, %v1169
      %1180 = vrot.lane.b32.xlu0 %v1143, 120
      %v1181 = vpop.permute.xlu0 %1180
      %1183 = vrot.lane.b32.xlu0 %v1143, 112
      %v1184 = vpop.permute.xlu0 %1183
      %1186 = vrot.lane.b32.xlu0 %v1143, 104
      %v1187 = vpop.permute.xlu0 %1186
      %1189 = vrot.lane.b32.xlu0 %v1143, 96
      %v1190 = vpop.permute.xlu0 %1189
      %1192 = vrot.lane.b32.xlu0 %v1143, 88
      %v1193 = vpop.permute.xlu0 %1192
      %1195 = vrot.lane.b32.xlu0 %v1143, 80
      %v1196 = vpop.permute.xlu0 %1195
      %1198 = vrot.lane.b32.xlu0 %v1143, 72
      %v1199 = vpop.permute.xlu0 %1198
      %v1201 = vpack.c.bf16 %v1143, %v1143
      %v1202 = vpack.c.bf16 %v1181, %v1181
      %v1203 = vpack.c.bf16 %v1184, %v1184
      %v1204 = vpack.c.bf16 %v1187, %v1187
      %v1205 = vpack.c.bf16 %v1190, %v1190
      %v1206 = vpack.c.bf16 %v1193, %v1193
      %v1207 = vpack.c.bf16 %v1196, %v1196
      %v1208 = vpack.c.bf16 %v1199, %v1199
      %vm1209 = vcmask 64512
      %v1211 = vsel %vm1209, %v1171, 0
      %v1214 = vsel %vm1209, %v1201, 0
      %1216 = vmatprep.subr.bf16.mxu0 0
      %1217 = vmatpush1.bf16.xpose.msra.mxu0 %v1214
      %1218 = vmatprep.subr.bf16.mxu0 0
      %1219 = vmatpush1.bf16.xpose.msra.mxu0 0
      %1220 = vmatprep.subr.bf16.mxu0 0
      %1221 = vmatpush1.bf16.xpose.msra.mxu0 0
      %1222 = vmatprep.subr.bf16.mxu0 0
      %1223 = vmatpush1.bf16.xpose.msra.mxu0 0
      %1224 = vmatprep.subr.bf16.mxu0 0
      %1225 = vmatpush1.bf16.xpose.msra.mxu0 0
      %1226 = vmatprep.subr.bf16.mxu0 0
      %1227 = vmatpush1.bf16.xpose.msra.mxu0 0
      %1228 = vmatprep.subr.bf16.mxu0 0
      %1229 = vmatpush1.bf16.xpose.msra.mxu0 0
      %1230 = vmatprep.subr.bf16.mxu0 0
      %1231 = vmatpush1.bf16.xpose.msra.mxu0 0
      %1232 = vmatprep.subr.bf16.mxu0 0
      %1233 = vmatpush1.bf16.xpose.msra.mxu0 0
      %1234 = vmatprep.subr.bf16.mxu0 0
      %1235 = vmatpush1.bf16.xpose.msra.mxu0 0
      %1236 = vmatprep.subr.bf16.mxu0 0
      %1237 = vmatpush1.bf16.xpose.msra.mxu0 0
      %1238 = vmatprep.subr.bf16.mxu0 0
      %1239 = vmatpush1.bf16.xpose.msra.mxu0 0
      %1240 = vmatprep.subr.bf16.mxu0 0
      %1241 = vmatpush1.bf16.xpose.msra.mxu0 0
      %1242 = vmatprep.subr.bf16.mxu0 0
      %1243 = vmatpush1.bf16.xpose.msra.mxu0 0
      %1244 = vmatprep.subr.bf16.mxu0 0
      %1245 = vmatpush1.bf16.xpose.msra.mxu0 0
      %1246 = vmatprep.subr.bf16.mxu0 0
      %1247 = vmatpush1.bf16.xpose.msra.mxu0 0
      %1248 = vmatprep.mubr.bf16.mxu0 0
      %1249 = vmatmul.mubr.bf16.gmra.mrb[0].mxu0 %v1211
      %v1250 = vpop.f32.mrb[0].mxu0
      %v1251 = vadd.f32 0.0, %v1250
      %v1252 = vpop.f32.mrb[0].mxu0
      %v1253 = vpop.f32.mrb[0].mxu0
      %v1254 = vpop.f32.mrb[0].mxu0
      %1255 = vdwg.mxu0
      %v1257 = vsel %vm1209, %v1172, 0
      %v1260 = vsel %vm1209, %v1202, 0
      %1262 = vmatprep.subr.bf16.mxu0 0
      %1263 = vmatpush1.bf16.xpose.msra.mxu0 %v1260
      %1264 = vmatprep.subr.bf16.mxu0 0
      %1265 = vmatpush1.bf16.xpose.msra.mxu0 0
      %1266 = vmatprep.subr.bf16.mxu0 0
      %1267 = vmatpush1.bf16.xpose.msra.mxu0 0
      %1268 = vmatprep.subr.bf16.mxu0 0
      %1269 = vmatpush1.bf16.xpose.msra.mxu0 0
      %1270 = vmatprep.subr.bf16.mxu0 0
      %1271 = vmatpush1.bf16.xpose.msra.mxu0 0
      %1272 = vmatprep.subr.bf16.mxu0 0
      %1273 = vmatpush1.bf16.xpose.msra.mxu0 0
      %1274 = vmatprep.subr.bf16.mxu0 0
      %1275 = vmatpush1.bf16.xpose.msra.mxu0 0
      %1276 = vmatprep.subr.bf16.mxu0 0
      %1277 = vmatpush1.bf16.xpose.msra.mxu0 0
      %1278 = vmatprep.subr.bf16.mxu0 0
      %1279 = vmatpush1.bf16.xpose.msra.mxu0 0
      %1280 = vmatprep.subr.bf16.mxu0 0
      %1281 = vmatpush1.bf16.xpose.msra.mxu0 0
      %1282 = vmatprep.subr.bf16.mxu0 0
      %1283 = vmatpush1.bf16.xpose.msra.mxu0 0
      %1284 = vmatprep.subr.bf16.mxu0 0
      %1285 = vmatpush1.bf16.xpose.msra.mxu0 0
      %1286 = vmatprep.subr.bf16.mxu0 0
      %1287 = vmatpush1.bf16.xpose.msra.mxu0 0
      %1288 = vmatprep.subr.bf16.mxu0 0
      %1289 = vmatpush1.bf16.xpose.msra.mxu0 0
      %1290 = vmatprep.subr.bf16.mxu0 0
      %1291 = vmatpush1.bf16.xpose.msra.mxu0 0
      %1292 = vmatprep.subr.bf16.mxu0 0
      %1293 = vmatpush1.bf16.xpose.msra.mxu0 0
      %1294 = vmatprep.mubr.bf16.mxu0 0
      %1295 = vmatmul.mubr.bf16.gmra.mrb[0].mxu0 %v1257
      %v1296 = vpop.f32.mrb[0].mxu0
      %v1297 = vadd.f32 0.0, %v1296
      %v1298 = vpop.f32.mrb[0].mxu0
      %v1299 = vpop.f32.mrb[0].mxu0
      %v1300 = vpop.f32.mrb[0].mxu0
      %1301 = vdwg.mxu0
      %v1303 = vsel %vm1209, %v1173, 0
      %v1306 = vsel %vm1209, %v1203, 0
      %1308 = vmatprep.subr.bf16.mxu0 0
      %1309 = vmatpush1.bf16.xpose.msra.mxu0 %v1306
      %1310 = vmatprep.subr.bf16.mxu0 0
      %1311 = vmatpush1.bf16.xpose.msra.mxu0 0
      %1312 = vmatprep.subr.bf16.mxu0 0
      %1313 = vmatpush1.bf16.xpose.msra.mxu0 0
      %1314 = vmatprep.subr.bf16.mxu0 0
      %1315 = vmatpush1.bf16.xpose.msra.mxu0 0
      %1316 = vmatprep.subr.bf16.mxu0 0
      %1317 = vmatpush1.bf16.xpose.msra.mxu0 0
      %1318 = vmatprep.subr.bf16.mxu0 0
      %1319 = vmatpush1.bf16.xpose.msra.mxu0 0
      %1320 = vmatprep.subr.bf16.mxu0 0
      %1321 = vmatpush1.bf16.xpose.msra.mxu0 0
      %1322 = vmatprep.subr.bf16.mxu0 0
      %1323 = vmatpush1.bf16.xpose.msra.mxu0 0
      %1324 = vmatprep.subr.bf16.mxu0 0
      %1325 = vmatpush1.bf16.xpose.msra.mxu0 0
      %1326 = vmatprep.subr.bf16.mxu0 0
      %1327 = vmatpush1.bf16.xpose.msra.mxu0 0
      %1328 = vmatprep.subr.bf16.mxu0 0
      %1329 = vmatpush1.bf16.xpose.msra.mxu0 0
      %1330 = vmatprep.subr.bf16.mxu0 0
      %1331 = vmatpush1.bf16.xpose.msra.mxu0 0
      %1332 = vmatprep.subr.bf16.mxu0 0
      %1333 = vmatpush1.bf16.xpose.msra.mxu0 0
      %1334 = vmatprep.subr.bf16.mxu0 0
      %1335 = vmatpush1.bf16.xpose.msra.mxu0 0
      %1336 = vmatprep.subr.bf16.mxu0 0
      %1337 = vmatpush1.bf16.xpose.msra.mxu0 0
      %1338 = vmatprep.subr.bf16.mxu0 0
      %1339 = vmatpush1.bf16.xpose.msra.mxu0 0
      %1340 = vmatprep.mubr.bf16.mxu0 0
      %1341 = vmatmul.mubr.bf16.gmra.mrb[0].mxu0 %v1303
      %v1342 = vpop.f32.mrb[0].mxu0
      %v1343 = vadd.f32 0.0, %v1342
      %v1344 = vpop.f32.mrb[0].mxu0
      %v1345 = vpop.f32.mrb[0].mxu0
      %v1346 = vpop.f32.mrb[0].mxu0
      %1347 = vdwg.mxu0
      %v1349 = vsel %vm1209, %v1174, 0
      %v1352 = vsel %vm1209, %v1204, 0
      %1354 = vmatprep.subr.bf16.mxu0 0
      %1355 = vmatpush1.bf16.xpose.msra.mxu0 %v1352
      %1356 = vmatprep.subr.bf16.mxu0 0
      %1357 = vmatpush1.bf16.xpose.msra.mxu0 0
      %1358 = vmatprep.subr.bf16.mxu0 0
      %1359 = vmatpush1.bf16.xpose.msra.mxu0 0
      %1360 = vmatprep.subr.bf16.mxu0 0
      %1361 = vmatpush1.bf16.xpose.msra.mxu0 0
      %1362 = vmatprep.subr.bf16.mxu0 0
      %1363 = vmatpush1.bf16.xpose.msra.mxu0 0
      %1364 = vmatprep.subr.bf16.mxu0 0
      %1365 = vmatpush1.bf16.xpose.msra.mxu0 0
      %1366 = vmatprep.subr.bf16.mxu0 0
      %1367 = vmatpush1.bf16.xpose.msra.mxu0 0
      %1368 = vmatprep.subr.bf16.mxu0 0
      %1369 = vmatpush1.bf16.xpose.msra.mxu0 0
      %1370 = vmatprep.subr.bf16.mxu0 0
      %1371 = vmatpush1.bf16.xpose.msra.mxu0 0
      %1372 = vmatprep.subr.bf16.mxu0 0
      %1373 = vmatpush1.bf16.xpose.msra.mxu0 0
      %1374 = vmatprep.subr.bf16.mxu0 0
      %1375 = vmatpush1.bf16.xpose.msra.mxu0 0
      %1376 = vmatprep.subr.bf16.mxu0 0
      %1377 = vmatpush1.bf16.xpose.msra.mxu0 0
      %1378 = vmatprep.subr.bf16.mxu0 0
      %1379 = vmatpush1.bf16.xpose.msra.mxu0 0
      %1380 = vmatprep.subr.bf16.mxu0 0
      %1381 = vmatpush1.bf16.xpose.msra.mxu0 0
      %1382 = vmatprep.subr.bf16.mxu0 0
      %1383 = vmatpush1.bf16.xpose.msra.mxu0 0
      %1384 = vmatprep.subr.bf16.mxu0 0
      %1385 = vmatpush1.bf16.xpose.msra.mxu0 0
      %1386 = vmatprep.mubr.bf16.mxu0 0
      %1387 = vmatmul.mubr.bf16.gmra.mrb[0].mxu0 %v1349
      %v1388 = vpop.f32.mrb[0].mxu0
      %v1389 = vadd.f32 0.0, %v1388
      %v1390 = vpop.f32.mrb[0].mxu0
      %v1391 = vpop.f32.mrb[0].mxu0
      %v1392 = vpop.f32.mrb[0].mxu0
      %1393 = vdwg.mxu0
      %v1395 = vsel %vm1209, %v1175, 0
      %v1398 = vsel %vm1209, %v1205, 0
      %1400 = vmatprep.subr.bf16.mxu0 0
      %1401 = vmatpush1.bf16.xpose.msra.mxu0 %v1398
      %1402 = vmatprep.subr.bf16.mxu0 0
      %1403 = vmatpush1.bf16.xpose.msra.mxu0 0
      %1404 = vmatprep.subr.bf16.mxu0 0
      %1405 = vmatpush1.bf16.xpose.msra.mxu0 0
      %1406 = vmatprep.subr.bf16.mxu0 0
      %1407 = vmatpush1.bf16.xpose.msra.mxu0 0
      %1408 = vmatprep.subr.bf16.mxu0 0
      %1409 = vmatpush1.bf16.xpose.msra.mxu0 0
      %1410 = vmatprep.subr.bf16.mxu0 0
      %1411 = vmatpush1.bf16.xpose.msra.mxu0 0
      %1412 = vmatprep.subr.bf16.mxu0 0
      %1413 = vmatpush1.bf16.xpose.msra.mxu0 0
      %1414 = vmatprep.subr.bf16.mxu0 0
      %1415 = vmatpush1.bf16.xpose.msra.mxu0 0
      %1416 = vmatprep.subr.bf16.mxu0 0
      %1417 = vmatpush1.bf16.xpose.msra.mxu0 0
      %1418 = vmatprep.subr.bf16.mxu0 0
      %1419 = vmatpush1.bf16.xpose.msra.mxu0 0
      %1420 = vmatprep.subr.bf16.mxu0 0
      %1421 = vmatpush1.bf16.xpose.msra.mxu0 0
      %1422 = vmatprep.subr.bf16.mxu0 0
      %1423 = vmatpush1.bf16.xpose.msra.mxu0 0
      %1424 = vmatprep.subr.bf16.mxu0 0
      %1425 = vmatpush1.bf16.xpose.msra.mxu0 0
      %1426 = vmatprep.subr.bf16.mxu0 0
      %1427 = vmatpush1.bf16.xpose.msra.mxu0 0
      %1428 = vmatprep.subr.bf16.mxu0 0
      %1429 = vmatpush1.bf16.xpose.msra.mxu0 0
      %1430 = vmatprep.subr.bf16.mxu0 0
      %1431 = vmatpush1.bf16.xpose.msra.mxu0 0
      %1432 = vmatprep.mubr.bf16.mxu0 0
      %1433 = vmatmul.mubr.bf16.gmra.mrb[0].mxu0 %v1395
      %v1434 = vpop.f32.mrb[0].mxu0
      %v1435 = vadd.f32 0.0, %v1434
      %v1436 = vpop.f32.mrb[0].mxu0
      %v1437 = vpop.f32.mrb[0].mxu0
      %v1438 = vpop.f32.mrb[0].mxu0
      %1439 = vdwg.mxu0
      %v1441 = vsel %vm1209, %v1176, 0
      %v1444 = vsel %vm1209, %v1206, 0
      %1446 = vmatprep.subr.bf16.mxu0 0
      %1447 = vmatpush1.bf16.xpose.msra.mxu0 %v1444
      %1448 = vmatprep.subr.bf16.mxu0 0
      %1449 = vmatpush1.bf16.xpose.msra.mxu0 0
      %1450 = vmatprep.subr.bf16.mxu0 0
      %1451 = vmatpush1.bf16.xpose.msra.mxu0 0
      %1452 = vmatprep.subr.bf16.mxu0 0
      %1453 = vmatpush1.bf16.xpose.msra.mxu0 0
      %1454 = vmatprep.subr.bf16.mxu0 0
      %1455 = vmatpush1.bf16.xpose.msra.mxu0 0
      %1456 = vmatprep.subr.bf16.mxu0 0
      %1457 = vmatpush1.bf16.xpose.msra.mxu0 0
      %1458 = vmatprep.subr.bf16.mxu0 0
      %1459 = vmatpush1.bf16.xpose.msra.mxu0 0
      %1460 = vmatprep.subr.bf16.mxu0 0
      %1461 = vmatpush1.bf16.xpose.msra.mxu0 0
      %1462 = vmatprep.subr.bf16.mxu0 0
      %1463 = vmatpush1.bf16.xpose.msra.mxu0 0
      %1464 = vmatprep.subr.bf16.mxu0 0
      %1465 = vmatpush1.bf16.xpose.msra.mxu0 0
      %1466 = vmatprep.subr.bf16.mxu0 0
      %1467 = vmatpush1.bf16.xpose.msra.mxu0 0
      %1468 = vmatprep.subr.bf16.mxu0 0
      %1469 = vmatpush1.bf16.xpose.msra.mxu0 0
      %1470 = vmatprep.subr.bf16.mxu0 0
      %1471 = vmatpush1.bf16.xpose.msra.mxu0 0
      %1472 = vmatprep.subr.bf16.mxu0 0
      %1473 = vmatpush1.bf16.xpose.msra.mxu0 0
      %1474 = vmatprep.subr.bf16.mxu0 0
      %1475 = vmatpush1.bf16.xpose.msra.mxu0 0
      %1476 = vmatprep.subr.bf16.mxu0 0
      %1477 = vmatpush1.bf16.xpose.msra.mxu0 0
      %1478 = vmatprep.mubr.bf16.mxu0 0
      %1479 = vmatmul.mubr.bf16.gmra.mrb[0].mxu0 %v1441
      %v1480 = vpop.f32.mrb[0].mxu0
      %v1481 = vadd.f32 0.0, %v1480
      %v1482 = vpop.f32.mrb[0].mxu0
      %v1483 = vpop.f32.mrb[0].mxu0
      %v1484 = vpop.f32.mrb[0].mxu0
      %1485 = vdwg.mxu0
      %v1487 = vsel %vm1209, %v1177, 0
      %v1490 = vsel %vm1209, %v1207, 0
      %1492 = vmatprep.subr.bf16.mxu0 0
      %1493 = vmatpush1.bf16.xpose.msra.mxu0 %v1490
      %1494 = vmatprep.subr.bf16.mxu0 0
      %1495 = vmatpush1.bf16.xpose.msra.mxu0 0
      %1496 = vmatprep.subr.bf16.mxu0 0
      %1497 = vmatpush1.bf16.xpose.msra.mxu0 0
      %1498 = vmatprep.subr.bf16.mxu0 0
      %1499 = vmatpush1.bf16.xpose.msra.mxu0 0
      %1500 = vmatprep.subr.bf16.mxu0 0
      %1501 = vmatpush1.bf16.xpose.msra.mxu0 0
      %1502 = vmatprep.subr.bf16.mxu0 0
      %1503 = vmatpush1.bf16.xpose.msra.mxu0 0
      %1504 = vmatprep.subr.bf16.mxu0 0
      %1505 = vmatpush1.bf16.xpose.msra.mxu0 0
      %1506 = vmatprep.subr.bf16.mxu0 0
      %1507 = vmatpush1.bf16.xpose.msra.mxu0 0
      %1508 = vmatprep.subr.bf16.mxu0 0
      %1509 = vmatpush1.bf16.xpose.msra.mxu0 0
      %1510 = vmatprep.subr.bf16.mxu0 0
      %1511 = vmatpush1.bf16.xpose.msra.mxu0 0
      %1512 = vmatprep.subr.bf16.mxu0 0
      %1513 = vmatpush1.bf16.xpose.msra.mxu0 0
      %1514 = vmatprep.subr.bf16.mxu0 0
      %1515 = vmatpush1.bf16.xpose.msra.mxu0 0
      %1516 = vmatprep.subr.bf16.mxu0 0
      %1517 = vmatpush1.bf16.xpose.msra.mxu0 0
      %1518 = vmatprep.subr.bf16.mxu0 0
      %1519 = vmatpush1.bf16.xpose.msra.mxu0 0
      %1520 = vmatprep.subr.bf16.mxu0 0
      %1521 = vmatpush1.bf16.xpose.msra.mxu0 0
      %1522 = vmatprep.subr.bf16.mxu0 0
      %1523 = vmatpush1.bf16.xpose.msra.mxu0 0
      %1524 = vmatprep.mubr.bf16.mxu0 0
      %1525 = vmatmul.mubr.bf16.gmra.mrb[0].mxu0 %v1487
      %v1526 = vpop.f32.mrb[0].mxu0
      %v1527 = vadd.f32 0.0, %v1526
      %v1528 = vpop.f32.mrb[0].mxu0
      %v1529 = vpop.f32.mrb[0].mxu0
      %v1530 = vpop.f32.mrb[0].mxu0
      %1531 = vdwg.mxu0
      %v1533 = vsel %vm1209, %v1178, 0
      %v1536 = vsel %vm1209, %v1208, 0
      %1538 = vmatprep.subr.bf16.mxu0 0
      %1539 = vmatpush1.bf16.xpose.msra.mxu0 %v1536
      %1540 = vmatprep.subr.bf16.mxu0 0
      %1541 = vmatpush1.bf16.xpose.msra.mxu0 0
      %1542 = vmatprep.subr.bf16.mxu0 0
      %1543 = vmatpush1.bf16.xpose.msra.mxu0 0
      %1544 = vmatprep.subr.bf16.mxu0 0
      %1545 = vmatpush1.bf16.xpose.msra.mxu0 0
      %1546 = vmatprep.subr.bf16.mxu0 0
      %1547 = vmatpush1.bf16.xpose.msra.mxu0 0
      %1548 = vmatprep.subr.bf16.mxu0 0
      %1549 = vmatpush1.bf16.xpose.msra.mxu0 0
      %1550 = vmatprep.subr.bf16.mxu0 0
      %1551 = vmatpush1.bf16.xpose.msra.mxu0 0
      %1552 = vmatprep.subr.bf16.mxu0 0
      %1553 = vmatpush1.bf16.xpose.msra.mxu0 0
      %1554 = vmatprep.subr.bf16.mxu0 0
      %1555 = vmatpush1.bf16.xpose.msra.mxu0 0
      %1556 = vmatprep.subr.bf16.mxu0 0
      %1557 = vmatpush1.bf16.xpose.msra.mxu0 0
      %1558 = vmatprep.subr.bf16.mxu0 0
      %1559 = vmatpush1.bf16.xpose.msra.mxu0 0
      %1560 = vmatprep.subr.bf16.mxu0 0
      %1561 = vmatpush1.bf16.xpose.msra.mxu0 0
      %1562 = vmatprep.subr.bf16.mxu0 0
      %1563 = vmatpush1.bf16.xpose.msra.mxu0 0
      %1564 = vmatprep.subr.bf16.mxu0 0
      %1565 = vmatpush1.bf16.xpose.msra.mxu0 0
      %1566 = vmatprep.subr.bf16.mxu0 0
      %1567 = vmatpush1.bf16.xpose.msra.mxu0 0
      %1568 = vmatprep.subr.bf16.mxu0 0
      %1569 = vmatpush1.bf16.xpose.msra.mxu0 0
      %1570 = vmatprep.mubr.bf16.mxu0 0
      %1571 = vmatmul.mubr.bf16.gmra.mrb[0].mxu0 %v1533
      %v1572 = vpop.f32.mrb[0].mxu0
      %v1573 = vadd.f32 0.0, %v1572
      %v1574 = vpop.f32.mrb[0].mxu0
      %v1575 = vpop.f32.mrb[0].mxu0
      %v1576 = vpop.f32.mrb[0].mxu0
      %1577 = vdwg.mxu0
      %vm1578 = vcmask 36864
      %v1579 = vsel %vm1578, %v1251, -inf
      %1580 = vmax.xlane.f32.xlu0 %v1579
      %v1581 = vpop.xlane.xlu0 %1580
      %v1582 = vsel %vm1578, %v1297, -inf
      %1583 = vmax.xlane.f32.xlu0 %v1582
      %v1584 = vpop.xlane.xlu0 %1583
      %v1585 = vsel %vm1578, %v1343, -inf
      %1586 = vmax.xlane.f32.xlu0 %v1585
      %v1587 = vpop.xlane.xlu0 %1586
      %v1588 = vsel %vm1578, %v1389, -inf
      %1589 = vmax.xlane.f32.xlu0 %v1588
      %v1590 = vpop.xlane.xlu0 %1589
      %v1591 = vsel %vm1578, %v1435, -inf
      %1592 = vmax.xlane.f32.xlu0 %v1591
      %v1593 = vpop.xlane.xlu0 %1592
      %v1594 = vsel %vm1578, %v1481, -inf
      %1595 = vmax.xlane.f32.xlu0 %v1594
      %v1596 = vpop.xlane.xlu0 %1595
      %v1597 = vsel %vm1578, %v1527, -inf
      %1598 = vmax.xlane.f32.xlu0 %v1597
      %v1599 = vpop.xlane.xlu0 %1598
      %v1600 = vsel %vm1578, %v1573, -inf
      %1601 = vmax.xlane.f32.xlu0 %v1600
      %v1602 = vpop.xlane.xlu0 %1601
      %v1603 = vsub.f32 %v1251, %v1581
      %v1604 = vsub.f32 %v1297, %v1584
      %v1605 = vsub.f32 %v1343, %v1587
      %v1606 = vsub.f32 %v1389, %v1590
      %v1607 = vsub.f32 %v1435, %v1593
      %v1608 = vsub.f32 %v1481, %v1596
      %v1609 = vsub.f32 %v1527, %v1599
      %v1610 = vsub.f32 %v1573, %v1602
      %v1611 = vmul.f32 %v1603, 1.442695
      %v1612 = vpow.pop %v1611
      %v1613 = vmul.f32 %v1604, 1.442695
      %v1614 = vpow.pop %v1613
      %v1615 = vmul.f32 %v1605, 1.442695
      %v1616 = vpow.pop %v1615
      %v1617 = vmul.f32 %v1606, 1.442695
      %v1618 = vpow.pop %v1617
      %v1619 = vmul.f32 %v1607, 1.442695
      %v1620 = vpow.pop %v1619
      %v1621 = vmul.f32 %v1608, 1.442695
      %v1622 = vpow.pop %v1621
      %v1623 = vmul.f32 %v1609, 1.442695
      %v1624 = vpow.pop %v1623
      %v1625 = vmul.f32 %v1610, 1.442695
      %v1626 = vpow.pop %v1625
      %v1627 = vsel %vm1578, %v1612, 0.0
      %1628 = vadd.xlane.f32.xlu0 %v1627
      %v1629 = vpop.xlane.xlu0 %1628
      %v1630 = vsel %vm1578, %v1614, 0.0
      %1631 = vadd.xlane.f32.xlu0 %v1630
      %v1632 = vpop.xlane.xlu0 %1631
      %v1633 = vsel %vm1578, %v1616, 0.0
      %1634 = vadd.xlane.f32.xlu0 %v1633
      %v1635 = vpop.xlane.xlu0 %1634
      %v1636 = vsel %vm1578, %v1618, 0.0
      %1637 = vadd.xlane.f32.xlu0 %v1636
      %v1638 = vpop.xlane.xlu0 %1637
      %v1639 = vsel %vm1578, %v1620, 0.0
      %1640 = vadd.xlane.f32.xlu0 %v1639
      %v1641 = vpop.xlane.xlu0 %1640
      %v1642 = vsel %vm1578, %v1622, 0.0
      %1643 = vadd.xlane.f32.xlu0 %v1642
      %v1644 = vpop.xlane.xlu0 %1643
      %v1645 = vsel %vm1578, %v1624, 0.0
      %1646 = vadd.xlane.f32.xlu0 %v1645
      %v1647 = vpop.xlane.xlu0 %1646
      %v1648 = vsel %vm1578, %v1626, 0.0
      %1649 = vadd.xlane.f32.xlu0 %v1648
      %v1650 = vpop.xlane.xlu0 %1649
      %v1651 = vrcp.pop %v1629
      %v1652 = vrcp.pop %v1632
      %v1653 = vrcp.pop %v1635
      %v1654 = vrcp.pop %v1638
      %v1655 = vrcp.pop %v1641
      %v1656 = vrcp.pop %v1644
      %v1657 = vrcp.pop %v1647
      %v1658 = vrcp.pop %v1650
      %v1659 = vmul.f32 %v1612, %v1651
      %v1660 = vmul.f32 %v1614, %v1652
      %v1661 = vmul.f32 %v1616, %v1653
      %v1662 = vmul.f32 %v1618, %v1654
      %v1663 = vmul.f32 %v1620, %v1655
      %v1664 = vmul.f32 %v1622, %v1656
      %v1665 = vmul.f32 %v1624, %v1657
      %v1666 = vmul.f32 %v1626, %v1658
      %v1667 = vpack.c.bf16 %v1659, %v1659
      %v1668 = vpack.c.bf16 %v1660, %v1660
      %v1669 = vpack.c.bf16 %v1661, %v1661
      %v1670 = vpack.c.bf16 %v1662, %v1662
      %v1671 = vpack.c.bf16 %v1663, %v1663
      %v1672 = vpack.c.bf16 %v1664, %v1664
      %v1673 = vpack.c.bf16 %v1665, %v1665
      %v1674 = vpack.c.bf16 %v1666, %v1666
      %1676 = vrot.lane.b32.xlu0 %v1201, 64
      %v1677 = vpop.permute.xlu0 %1676
      %vm1678 = vcmask 39936
      %v1680 = vsel %vm1678, %v1667, 0
      %vm1682 = vcmask 1041408
      %vm1683 = vcmask 1042432
      %v1684 = vsel %vm1682, 4294967295, 65535
      %v1685 = vsel %vm1683, %v1684, 0
      %v1687 = vand.u32 %v1677, %v1685
      %1689 = vmatprep.subr.bf16.mxu0 0
      %1690 = vmatpush1.bf16.msra.mxu0 %v1687
      %1691 = vmatprep.subr.bf16.mxu0 0
      %1692 = vmatpush1.bf16.msra.mxu0 0
      %1693 = vmatprep.subr.bf16.mxu0 0
      %1694 = vmatpush1.bf16.msra.mxu0 0
      %1695 = vmatprep.subr.bf16.mxu0 0
      %1696 = vmatpush1.bf16.msra.mxu0 0
      %1697 = vmatprep.subr.bf16.mxu0 0
      %1698 = vmatpush1.bf16.msra.mxu0 0
      %1699 = vmatprep.subr.bf16.mxu0 0
      %1700 = vmatpush1.bf16.msra.mxu0 0
      %1701 = vmatprep.subr.bf16.mxu0 0
      %1702 = vmatpush1.bf16.msra.mxu0 0
      %1703 = vmatprep.subr.bf16.mxu0 0
      %1704 = vmatpush1.bf16.msra.mxu0 0
      %1705 = vmatprep.subr.bf16.mxu0 0
      %1706 = vmatpush1.bf16.msra.mxu0 0
      %1707 = vmatprep.subr.bf16.mxu0 0
      %1708 = vmatpush1.bf16.msra.mxu0 0
      %1709 = vmatprep.subr.bf16.mxu0 0
      %1710 = vmatpush1.bf16.msra.mxu0 0
      %1711 = vmatprep.subr.bf16.mxu0 0
      %1712 = vmatpush1.bf16.msra.mxu0 0
      %1713 = vmatprep.subr.bf16.mxu0 0
      %1714 = vmatpush1.bf16.msra.mxu0 0
      %1715 = vmatprep.subr.bf16.mxu0 0
      %1716 = vmatpush1.bf16.msra.mxu0 0
      %1717 = vmatprep.subr.bf16.mxu0 0
      %1718 = vmatpush1.bf16.msra.mxu0 0
      %1719 = vmatprep.subr.bf16.mxu0 0
      %1720 = vmatpush1.bf16.msra.mxu0 0
      %1721 = vmatprep.mubr.bf16.mxu0 0
      %1722 = vmatmul.mubr.bf16.gmra.mrb[0].mxu0 %v1680
      %v1723 = vpop.f32.mrb[0].mxu0
      %v1724 = vadd.f32 0.0, %v1723
      %v1725 = vpop.f32.mrb[0].mxu0
      %v1726 = vpop.f32.mrb[0].mxu0
      %v1727 = vpop.f32.mrb[0].mxu0
      %1728 = vdwg.mxu0
      %1730 = vrot.lane.b32.xlu0 %v1202, 64
      %v1731 = vpop.permute.xlu0 %1730
      %v1733 = vsel %vm1678, %v1668, 0
      %v1736 = vand.u32 %v1731, %v1685
      %1738 = vmatprep.subr.bf16.mxu0 0
      %1739 = vmatpush1.bf16.msra.mxu0 %v1736
      %1740 = vmatprep.subr.bf16.mxu0 0
      %1741 = vmatpush1.bf16.msra.mxu0 0
      %1742 = vmatprep.subr.bf16.mxu0 0
      %1743 = vmatpush1.bf16.msra.mxu0 0
      %1744 = vmatprep.subr.bf16.mxu0 0
      %1745 = vmatpush1.bf16.msra.mxu0 0
      %1746 = vmatprep.subr.bf16.mxu0 0
      %1747 = vmatpush1.bf16.msra.mxu0 0
      %1748 = vmatprep.subr.bf16.mxu0 0
      %1749 = vmatpush1.bf16.msra.mxu0 0
      %1750 = vmatprep.subr.bf16.mxu0 0
      %1751 = vmatpush1.bf16.msra.mxu0 0
      %1752 = vmatprep.subr.bf16.mxu0 0
      %1753 = vmatpush1.bf16.msra.mxu0 0
      %1754 = vmatprep.subr.bf16.mxu0 0
      %1755 = vmatpush1.bf16.msra.mxu0 0
      %1756 = vmatprep.subr.bf16.mxu0 0
      %1757 = vmatpush1.bf16.msra.mxu0 0
      %1758 = vmatprep.subr.bf16.mxu0 0
      %1759 = vmatpush1.bf16.msra.mxu0 0
      %1760 = vmatprep.subr.bf16.mxu0 0
      %1761 = vmatpush1.bf16.msra.mxu0 0
      %1762 = vmatprep.subr.bf16.mxu0 0
      %1763 = vmatpush1.bf16.msra.mxu0 0
      %1764 = vmatprep.subr.bf16.mxu0 0
      %1765 = vmatpush1.bf16.msra.mxu0 0
      %1766 = vmatprep.subr.bf16.mxu0 0
      %1767 = vmatpush1.bf16.msra.mxu0 0
      %1768 = vmatprep.subr.bf16.mxu0 0
      %1769 = vmatpush1.bf16.msra.mxu0 0
      %1770 = vmatprep.mubr.bf16.mxu0 0
      %1771 = vmatmul.mubr.bf16.gmra.mrb[0].mxu0 %v1733
      %v1772 = vpop.f32.mrb[0].mxu0
      %v1773 = vadd.f32 0.0, %v1772
      %v1774 = vpop.f32.mrb[0].mxu0
      %v1775 = vpop.f32.mrb[0].mxu0
      %v1776 = vpop.f32.mrb[0].mxu0
      %1777 = vdwg.mxu0
      %1779 = vrot.lane.b32.xlu0 %v1203, 64
      %v1780 = vpop.permute.xlu0 %1779
      %v1782 = vsel %vm1678, %v1669, 0
      %v1785 = vand.u32 %v1780, %v1685
      %1787 = vmatprep.subr.bf16.mxu0 0
      %1788 = vmatpush1.bf16.msra.mxu0 %v1785
      %1789 = vmatprep.subr.bf16.mxu0 0
      %1790 = vmatpush1.bf16.msra.mxu0 0
      %1791 = vmatprep.subr.bf16.mxu0 0
      %1792 = vmatpush1.bf16.msra.mxu0 0
      %1793 = vmatprep.subr.bf16.mxu0 0
      %1794 = vmatpush1.bf16.msra.mxu0 0
      %1795 = vmatprep.subr.bf16.mxu0 0
      %1796 = vmatpush1.bf16.msra.mxu0 0
      %1797 = vmatprep.subr.bf16.mxu0 0
      %1798 = vmatpush1.bf16.msra.mxu0 0
      %1799 = vmatprep.subr.bf16.mxu0 0
      %1800 = vmatpush1.bf16.msra.mxu0 0
      %1801 = vmatprep.subr.bf16.mxu0 0
      %1802 = vmatpush1.bf16.msra.mxu0 0
      %1803 = vmatprep.subr.bf16.mxu0 0
      %1804 = vmatpush1.bf16.msra.mxu0 0
      %1805 = vmatprep.subr.bf16.mxu0 0
      %1806 = vmatpush1.bf16.msra.mxu0 0
      %1807 = vmatprep.subr.bf16.mxu0 0
      %1808 = vmatpush1.bf16.msra.mxu0 0
      %1809 = vmatprep.subr.bf16.mxu0 0
      %1810 = vmatpush1.bf16.msra.mxu0 0
      %1811 = vmatprep.subr.bf16.mxu0 0
      %1812 = vmatpush1.bf16.msra.mxu0 0
      %1813 = vmatprep.subr.bf16.mxu0 0
      %1814 = vmatpush1.bf16.msra.mxu0 0
      %1815 = vmatprep.subr.bf16.mxu0 0
      %1816 = vmatpush1.bf16.msra.mxu0 0
      %1817 = vmatprep.subr.bf16.mxu0 0
      %1818 = vmatpush1.bf16.msra.mxu0 0
      %1819 = vmatprep.mubr.bf16.mxu0 0
      %1820 = vmatmul.mubr.bf16.gmra.mrb[0].mxu0 %v1782
      %v1821 = vpop.f32.mrb[0].mxu0
      %v1822 = vadd.f32 0.0, %v1821
      %v1823 = vpop.f32.mrb[0].mxu0
      %v1824 = vpop.f32.mrb[0].mxu0
      %v1825 = vpop.f32.mrb[0].mxu0
      %1826 = vdwg.mxu0
      %1828 = vrot.lane.b32.xlu0 %v1204, 64
      %v1829 = vpop.permute.xlu0 %1828
      %v1831 = vsel %vm1678, %v1670, 0
      %v1834 = vand.u32 %v1829, %v1685
      %1836 = vmatprep.subr.bf16.mxu0 0
      %1837 = vmatpush1.bf16.msra.mxu0 %v1834
      %1838 = vmatprep.subr.bf16.mxu0 0
      %1839 = vmatpush1.bf16.msra.mxu0 0
      %1840 = vmatprep.subr.bf16.mxu0 0
      %1841 = vmatpush1.bf16.msra.mxu0 0
      %1842 = vmatprep.subr.bf16.mxu0 0
      %1843 = vmatpush1.bf16.msra.mxu0 0
      %1844 = vmatprep.subr.bf16.mxu0 0
      %1845 = vmatpush1.bf16.msra.mxu0 0
      %1846 = vmatprep.subr.bf16.mxu0 0
      %1847 = vmatpush1.bf16.msra.mxu0 0
      %1848 = vmatprep.subr.bf16.mxu0 0
      %1849 = vmatpush1.bf16.msra.mxu0 0
      %1850 = vmatprep.subr.bf16.mxu0 0
      %1851 = vmatpush1.bf16.msra.mxu0 0
      %1852 = vmatprep.subr.bf16.mxu0 0
      %1853 = vmatpush1.bf16.msra.mxu0 0
      %1854 = vmatprep.subr.bf16.mxu0 0
      %1855 = vmatpush1.bf16.msra.mxu0 0
      %1856 = vmatprep.subr.bf16.mxu0 0
      %1857 = vmatpush1.bf16.msra.mxu0 0
      %1858 = vmatprep.subr.bf16.mxu0 0
      %1859 = vmatpush1.bf16.msra.mxu0 0
      %1860 = vmatprep.subr.bf16.mxu0 0
      %1861 = vmatpush1.bf16.msra.mxu0 0
      %1862 = vmatprep.subr.bf16.mxu0 0
      %1863 = vmatpush1.bf16.msra.mxu0 0
      %1864 = vmatprep.subr.bf16.mxu0 0
      %1865 = vmatpush1.bf16.msra.mxu0 0
      %1866 = vmatprep.subr.bf16.mxu0 0
      %1867 = vmatpush1.bf16.msra.mxu0 0
      %1868 = vmatprep.mubr.bf16.mxu0 0
      %1869 = vmatmul.mubr.bf16.gmra.mrb[0].mxu0 %v1831
      %v1870 = vpop.f32.mrb[0].mxu0
      %v1871 = vadd.f32 0.0, %v1870
      %v1872 = vpop.f32.mrb[0].mxu0
      %v1873 = vpop.f32.mrb[0].mxu0
      %v1874 = vpop.f32.mrb[0].mxu0
      %1875 = vdwg.mxu0
      %1877 = vrot.lane.b32.xlu0 %v1205, 64
      %v1878 = vpop.permute.xlu0 %1877
      %v1880 = vsel %vm1678, %v1671, 0
      %v1883 = vand.u32 %v1878, %v1685
      %1885 = vmatprep.subr.bf16.mxu0 0
      %1886 = vmatpush1.bf16.msra.mxu0 %v1883
      %1887 = vmatprep.subr.bf16.mxu0 0
      %1888 = vmatpush1.bf16.msra.mxu0 0
      %1889 = vmatprep.subr.bf16.mxu0 0
      %1890 = vmatpush1.bf16.msra.mxu0 0
      %1891 = vmatprep.subr.bf16.mxu0 0
      %1892 = vmatpush1.bf16.msra.mxu0 0
      %1893 = vmatprep.subr.bf16.mxu0 0
      %1894 = vmatpush1.bf16.msra.mxu0 0
      %1895 = vmatprep.subr.bf16.mxu0 0
      %1896 = vmatpush1.bf16.msra.mxu0 0
      %1897 = vmatprep.subr.bf16.mxu0 0
      %1898 = vmatpush1.bf16.msra.mxu0 0
      %1899 = vmatprep.subr.bf16.mxu0 0
      %1900 = vmatpush1.bf16.msra.mxu0 0
      %1901 = vmatprep.subr.bf16.mxu0 0
      %1902 = vmatpush1.bf16.msra.mxu0 0
      %1903 = vmatprep.subr.bf16.mxu0 0
      %1904 = vmatpush1.bf16.msra.mxu0 0
      %1905 = vmatprep.subr.bf16.mxu0 0
      %1906 = vmatpush1.bf16.msra.mxu0 0
      %1907 = vmatprep.subr.bf16.mxu0 0
      %1908 = vmatpush1.bf16.msra.mxu0 0
      %1909 = vmatprep.subr.bf16.mxu0 0
      %1910 = vmatpush1.bf16.msra.mxu0 0
      %1911 = vmatprep.subr.bf16.mxu0 0
      %1912 = vmatpush1.bf16.msra.mxu0 0
      %1913 = vmatprep.subr.bf16.mxu0 0
      %1914 = vmatpush1.bf16.msra.mxu0 0
      %1915 = vmatprep.subr.bf16.mxu0 0
      %1916 = vmatpush1.bf16.msra.mxu0 0
      %1917 = vmatprep.mubr.bf16.mxu0 0
      %1918 = vmatmul.mubr.bf16.gmra.mrb[0].mxu0 %v1880
      %v1919 = vpop.f32.mrb[0].mxu0
      %v1920 = vadd.f32 0.0, %v1919
      %v1921 = vpop.f32.mrb[0].mxu0
      %v1922 = vpop.f32.mrb[0].mxu0
      %v1923 = vpop.f32.mrb[0].mxu0
      %1924 = vdwg.mxu0
      %1926 = vrot.lane.b32.xlu0 %v1206, 64
      %v1927 = vpop.permute.xlu0 %1926
      %v1929 = vsel %vm1678, %v1672, 0
      %v1932 = vand.u32 %v1927, %v1685
      %1934 = vmatprep.subr.bf16.mxu0 0
      %1935 = vmatpush1.bf16.msra.mxu0 %v1932
      %1936 = vmatprep.subr.bf16.mxu0 0
      %1937 = vmatpush1.bf16.msra.mxu0 0
      %1938 = vmatprep.subr.bf16.mxu0 0
      %1939 = vmatpush1.bf16.msra.mxu0 0
      %1940 = vmatprep.subr.bf16.mxu0 0
      %1941 = vmatpush1.bf16.msra.mxu0 0
      %1942 = vmatprep.subr.bf16.mxu0 0
      %1943 = vmatpush1.bf16.msra.mxu0 0
      %1944 = vmatprep.subr.bf16.mxu0 0
      %1945 = vmatpush1.bf16.msra.mxu0 0
      %1946 = vmatprep.subr.bf16.mxu0 0
      %1947 = vmatpush1.bf16.msra.mxu0 0
      %1948 = vmatprep.subr.bf16.mxu0 0
      %1949 = vmatpush1.bf16.msra.mxu0 0
      %1950 = vmatprep.subr.bf16.mxu0 0
      %1951 = vmatpush1.bf16.msra.mxu0 0
      %1952 = vmatprep.subr.bf16.mxu0 0
      %1953 = vmatpush1.bf16.msra.mxu0 0
      %1954 = vmatprep.subr.bf16.mxu0 0
      %1955 = vmatpush1.bf16.msra.mxu0 0
      %1956 = vmatprep.subr.bf16.mxu0 0
      %1957 = vmatpush1.bf16.msra.mxu0 0
      %1958 = vmatprep.subr.bf16.mxu0 0
      %1959 = vmatpush1.bf16.msra.mxu0 0
      %1960 = vmatprep.subr.bf16.mxu0 0
      %1961 = vmatpush1.bf16.msra.mxu0 0
      %1962 = vmatprep.subr.bf16.mxu0 0
      %1963 = vmatpush1.bf16.msra.mxu0 0
      %1964 = vmatprep.subr.bf16.mxu0 0
      %1965 = vmatpush1.bf16.msra.mxu0 0
      %1966 = vmatprep.mubr.bf16.mxu0 0
      %1967 = vmatmul.mubr.bf16.gmra.mrb[0].mxu0 %v1929
      %v1968 = vpop.f32.mrb[0].mxu0
      %v1969 = vadd.f32 0.0, %v1968
      %v1970 = vpop.f32.mrb[0].mxu0
      %v1971 = vpop.f32.mrb[0].mxu0
      %v1972 = vpop.f32.mrb[0].mxu0
      %1973 = vdwg.mxu0
      %1975 = vrot.lane.b32.xlu0 %v1207, 64
      %v1976 = vpop.permute.xlu0 %1975
      %v1978 = vsel %vm1678, %v1673, 0
      %v1981 = vand.u32 %v1976, %v1685
      %1983 = vmatprep.subr.bf16.mxu0 0
      %1984 = vmatpush1.bf16.msra.mxu0 %v1981
      %1985 = vmatprep.subr.bf16.mxu0 0
      %1986 = vmatpush1.bf16.msra.mxu0 0
      %1987 = vmatprep.subr.bf16.mxu0 0
      %1988 = vmatpush1.bf16.msra.mxu0 0
      %1989 = vmatprep.subr.bf16.mxu0 0
      %1990 = vmatpush1.bf16.msra.mxu0 0
      %1991 = vmatprep.subr.bf16.mxu0 0
      %1992 = vmatpush1.bf16.msra.mxu0 0
      %1993 = vmatprep.subr.bf16.mxu0 0
      %1994 = vmatpush1.bf16.msra.mxu0 0
      %1995 = vmatprep.subr.bf16.mxu0 0
      %1996 = vmatpush1.bf16.msra.mxu0 0
      %1997 = vmatprep.subr.bf16.mxu0 0
      %1998 = vmatpush1.bf16.msra.mxu0 0
      %1999 = vmatprep.subr.bf16.mxu0 0
      %2000 = vmatpush1.bf16.msra.mxu0 0
      %2001 = vmatprep.subr.bf16.mxu0 0
      %2002 = vmatpush1.bf16.msra.mxu0 0
      %2003 = vmatprep.subr.bf16.mxu0 0
      %2004 = vmatpush1.bf16.msra.mxu0 0
      %2005 = vmatprep.subr.bf16.mxu0 0
      %2006 = vmatpush1.bf16.msra.mxu0 0
      %2007 = vmatprep.subr.bf16.mxu0 0
      %2008 = vmatpush1.bf16.msra.mxu0 0
      %2009 = vmatprep.subr.bf16.mxu0 0
      %2010 = vmatpush1.bf16.msra.mxu0 0
      %2011 = vmatprep.subr.bf16.mxu0 0
      %2012 = vmatpush1.bf16.msra.mxu0 0
      %2013 = vmatprep.subr.bf16.mxu0 0
      %2014 = vmatpush1.bf16.msra.mxu0 0
      %2015 = vmatprep.mubr.bf16.mxu0 0
      %2016 = vmatmul.mubr.bf16.gmra.mrb[0].mxu0 %v1978
      %v2017 = vpop.f32.mrb[0].mxu0
      %v2018 = vadd.f32 0.0, %v2017
      %v2019 = vpop.f32.mrb[0].mxu0
      %v2020 = vpop.f32.mrb[0].mxu0
      %v2021 = vpop.f32.mrb[0].mxu0
      %2022 = vdwg.mxu0
      %2024 = vrot.lane.b32.xlu0 %v1208, 64
      %v2025 = vpop.permute.xlu0 %2024
      %v2027 = vsel %vm1678, %v1674, 0
      %v2030 = vand.u32 %v2025, %v1685
      %2032 = vmatprep.subr.bf16.mxu0 0
      %2033 = vmatpush1.bf16.msra.mxu0 %v2030
      %2034 = vmatprep.subr.bf16.mxu0 0
      %2035 = vmatpush1.bf16.msra.mxu0 0
      %2036 = vmatprep.subr.bf16.mxu0 0
      %2037 = vmatpush1.bf16.msra.mxu0 0
      %2038 = vmatprep.subr.bf16.mxu0 0
      %2039 = vmatpush1.bf16.msra.mxu0 0
      %2040 = vmatprep.subr.bf16.mxu0 0
      %2041 = vmatpush1.bf16.msra.mxu0 0
      %2042 = vmatprep.subr.bf16.mxu0 0
      %2043 = vmatpush1.bf16.msra.mxu0 0
      %2044 = vmatprep.subr.bf16.mxu0 0
      %2045 = vmatpush1.bf16.msra.mxu0 0
      %2046 = vmatprep.subr.bf16.mxu0 0
      %2047 = vmatpush1.bf16.msra.mxu0 0
      %2048 = vmatprep.subr.bf16.mxu0 0
      %2049 = vmatpush1.bf16.msra.mxu0 0
      %2050 = vmatprep.subr.bf16.mxu0 0
      %2051 = vmatpush1.bf16.msra.mxu0 0
      %2052 = vmatprep.subr.bf16.mxu0 0
      %2053 = vmatpush1.bf16.msra.mxu0 0
      %2054 = vmatprep.subr.bf16.mxu0 0
      %2055 = vmatpush1.bf16.msra.mxu0 0
      %2056 = vmatprep.subr.bf16.mxu0 0
      %2057 = vmatpush1.bf16.msra.mxu0 0
      %2058 = vmatprep.subr.bf16.mxu0 0
      %2059 = vmatpush1.bf16.msra.mxu0 0
      %2060 = vmatprep.subr.bf16.mxu0 0
      %2061 = vmatpush1.bf16.msra.mxu0 0
      %2062 = vmatprep.subr.bf16.mxu0 0
      %2063 = vmatpush1.bf16.msra.mxu0 0
      %2064 = vmatprep.mubr.bf16.mxu0 0
      %2065 = vmatmul.mubr.bf16.gmra.mrb[0].mxu0 %v2027
      %v2066 = vpop.f32.mrb[0].mxu0
      %v2067 = vadd.f32 0.0, %v2066
      %v2068 = vpop.f32.mrb[0].mxu0
      %v2069 = vpop.f32.mrb[0].mxu0
      %v2070 = vpop.f32.mrb[0].mxu0
      %2071 = vdwg.mxu0
      %2073 = vrot.lane.b32.xlu0 %v1773, 8
      %v2074 = vpop.permute.xlu0 %2073
      %2077 = vrot.lane.b32.xlu0 %v1822, 16
      %v2078 = vpop.permute.xlu0 %2077
      %2081 = vrot.lane.b32.xlu0 %v1871, 24
      %v2082 = vpop.permute.xlu0 %2081
      %2085 = vrot.lane.b32.xlu0 %v1920, 32
      %v2086 = vpop.permute.xlu0 %2085
      %2089 = vrot.lane.b32.xlu0 %v1969, 40
      %v2090 = vpop.permute.xlu0 %2089
      %2093 = vrot.lane.b32.xlu0 %v2018, 48
      %v2094 = vpop.permute.xlu0 %2093
      %2097 = vrot.lane.b32.xlu0 %v2067, 56
      %v2098 = vpop.permute.xlu0 %2097
      %v2100 = vsel %vm1209, %v1724, %v2074
      %vm2101 = vcmask 130048
      %v2102 = vsel %vm2101, %v2100, %v2078
      %vm2103 = vcmask 195584
      %v2104 = vsel %vm2103, %v2102, %v2082
      %vm2105 = vcmask 261120
      %v2106 = vsel %vm2105, %v2104, %v2086
      %vm2107 = vcmask 326656
      %v2108 = vsel %vm2107, %v2106, %v2090
      %vm2109 = vcmask 392192
      %v2110 = vsel %vm2109, %v2108, %v2094
      %vm2111 = vcmask 457728
      %v2112 = vsel %vm2111, %v2110, %v2098
      %v2113 = vpack.c.bf16 %v2112, %v2112
      %v2114 = vld [vmem:[%s880] sm:$0xf]
      %v2115 = vld [vmem:[%s880 + $0x4] sm:$0xf]
      %v2116 = vld [vmem:[%s880 + $0x8] sm:$0xf]
      %v2117 = vld [vmem:[%s880 + $0xc] sm:$0xf]
      %v2118 = vld [vmem:[%s880 + $0x10] sm:$0xf]
      %v2119 = vld [vmem:[%s880 + $0x14] sm:$0xf]
      %v2120 = vld [vmem:[%s880 + $0x18] sm:$0xf]
      %v2121 = vld [vmem:[%s880 + $0x1c] sm:$0xf]
      %v2130 = vunpack.c.l.b16 %v2114
      %v2131 = vunpack.c.l.b16 %v2115
      %v2132 = vunpack.c.l.b16 %v2116
      %v2133 = vunpack.c.l.b16 %v2117
      %v2134 = vunpack.c.l.b16 %v2118
      %v2135 = vunpack.c.l.b16 %v2119
      %v2136 = vunpack.c.l.b16 %v2120
      %v2137 = vunpack.c.l.b16 %v2121
      %v2138 = vpack.c.b16 %v2131, %v2130
      %v2139 = vpack.c.b16 %v2133, %v2132
      %v2140 = vpack.c.b16 %v2135, %v2134
      %v2141 = vpack.c.b16 %v2137, %v2136
      %v2147 = vsel %vm1021, %v2113, 0
      %2149 = vmatprep.subr.bf16.mxu0 0
      %2150 = vmatpush1.bf16.msra.mxu0 %v2138
      %2151 = vmatprep.subr.bf16.mxu0 0
      %2152 = vmatpush1.bf16.msra.mxu0 %v2139
      %2153 = vmatprep.subr.bf16.mxu0 0
      %2154 = vmatpush1.bf16.msra.mxu0 %v2140
      %2155 = vmatprep.subr.bf16.mxu0 0
      %2156 = vmatpush1.bf16.msra.mxu0 %v2141
      %2157 = vmatprep.subr.bf16.mxu0 0
      %2158 = vmatpush1.bf16.msra.mxu0 0
      %2159 = vmatprep.subr.bf16.mxu0 0
      %2160 = vmatpush1.bf16.msra.mxu0 0
      %2161 = vmatprep.subr.bf16.mxu0 0
      %2162 = vmatpush1.bf16.msra.mxu0 0
      %2163 = vmatprep.subr.bf16.mxu0 0
      %2164 = vmatpush1.bf16.msra.mxu0 0
      %2165 = vmatprep.subr.bf16.mxu0 0
      %2166 = vmatpush1.bf16.msra.mxu0 0
      %2167 = vmatprep.subr.bf16.mxu0 0
      %2168 = vmatpush1.bf16.msra.mxu0 0
      %2169 = vmatprep.subr.bf16.mxu0 0
      %2170 = vmatpush1.bf16.msra.mxu0 0
      %2171 = vmatprep.subr.bf16.mxu0 0
      %2172 = vmatpush1.bf16.msra.mxu0 0
      %2173 = vmatprep.subr.bf16.mxu0 0
      %2174 = vmatpush1.bf16.msra.mxu0 0
      %2175 = vmatprep.subr.bf16.mxu0 0
      %2176 = vmatpush1.bf16.msra.mxu0 0
      %2177 = vmatprep.subr.bf16.mxu0 0
      %2178 = vmatpush1.bf16.msra.mxu0 0
      %2179 = vmatprep.subr.bf16.mxu0 0
      %2180 = vmatpush1.bf16.msra.mxu0 0
      %2181 = vmatprep.mubr.bf16.mxu0 0
      %2182 = vmatmul.mubr.bf16.gmra.mrb[0].mxu0 %v2147
      %v2183 = vpop.f32.mrb[0].mxu0
      %v2184 = vadd.f32 0.0, %v2183
      %v2185 = vpop.f32.mrb[0].mxu0
      %v2186 = vpop.f32.mrb[0].mxu0
      %v2187 = vpop.f32.mrb[0].mxu0
      %2188 = vdwg.mxu0
      %v2189 = vadd.f32 %v980, %v2184
      %v2190 = vld [vmem:[%s883] sm:$0x1]
      %v2192 = vlaneseq
      %v2193 = vshrl.u32 %v2192, 7
      %v2194 = vsub.s32 0, %v2193
      %v2195 = vrot.slane %v2190, %v2194
      %v2197 = vadd.f32 %v2189, %v2195
      %v2198 = vld [vmem:[%s886] sm:$0x1]
      %v2199 = vld [vmem:[%s889] sm:$0x1]
      %v2200 = vsel %vm923, %v2197, 0.0
      %2201 = vadd.xlane.f32.xlu0 %v2200
      %v2202 = vpop.xlane.xlu0 %2201
      %v2203 = vmul.f32 %v2202, %v927
      %v2204 = vsub.f32 %v2197, %v2203
      %v2205 = vmul.f32 %v2204, %v2204
      %v2206 = vsel %vm923, %v2205, 0.0
      %2207 = vadd.xlane.f32.xlu0 %v2206
      %v2208 = vpop.xlane.xlu0 %2207
      %v2209 = vmul.f32 %v2208, %v927
      %v2210 = vadd.f32 %v2209, 1e-06
      %v2211 = vrsqrt.pop %v2210
      %v2212 = vmul.f32 %v2204, %v2211
      %v2214 = vlaneseq
      %v2215 = vshrl.u32 %v2214, 7
      %v2216 = vsub.s32 0, %v2215
      %v2217 = vrot.slane %v2198, %v2216
      %v2219 = vmul.f32 %v2212, %v2217
      %v2221 = vlaneseq
      %v2222 = vshrl.u32 %v2221, 7
      %v2223 = vsub.s32 0, %v2222
      %v2224 = vrot.slane %v2199, %v2223
      %v2226 = vadd.f32 %v2219, %v2224
      %v2227 = vpack.c.bf16 %v2226, %v2226
      %v2228 = vld [vmem:[%s894] sm:$0xff]
      %v2229 = vld [vmem:[%s894 + $0x8] sm:$0xff]
      %v2230 = vld [vmem:[%s894 + $0x10] sm:$0xff]
      %v2231 = vld [vmem:[%s894 + $0x18] sm:$0xff]
      %v2232 = vld [vmem:[%s894 + $0x20] sm:$0xff]
      %v2233 = vld [vmem:[%s894 + $0x28] sm:$0xff]
      %v2234 = vld [vmem:[%s894 + $0x30] sm:$0xff]
      %v2235 = vld [vmem:[%s894 + $0x38] sm:$0xff]
      %v2236 = vld [vmem:[%s898] sm:$0x3]
      %v2238 = vlaneseq
      %v2239 = vshrl.u32 %v2238, 7
      %v2240 = vsub.s32 0, %v2239
      %v2241 = vrot.slane %v2236, %v2240
      %v2242 = vlaneseq
      %v2243 = vshrl.u32 %v2242, 7
      %v2244 = vsub.s32 1, %v2243
      %v2245 = vrot.slane %v2236, %v2244
      %v2256 = vunpack.c.l.b16 %v2228
      %v2257 = vunpack.c.h.b16 %v2228
      %v2258 = vunpack.c.l.b16 %v2229
      %v2259 = vunpack.c.h.b16 %v2229
      %v2260 = vunpack.c.l.b16 %v2230
      %v2261 = vunpack.c.h.b16 %v2230
      %v2262 = vunpack.c.l.b16 %v2231
      %v2263 = vunpack.c.h.b16 %v2231
      %v2264 = vunpack.c.l.b16 %v2232
      %v2265 = vunpack.c.h.b16 %v2232
      %v2266 = vunpack.c.l.b16 %v2233
      %v2267 = vunpack.c.h.b16 %v2233
      %v2268 = vunpack.c.l.b16 %v2234
      %v2269 = vunpack.c.h.b16 %v2234
      %v2270 = vunpack.c.l.b16 %v2235
      %v2271 = vunpack.c.h.b16 %v2235
      %v2272 = vpack.c.b16 %v2258, %v2256
      %v2273 = vpack.c.b16 %v2259, %v2257
      %v2274 = vpack.c.b16 %v2262, %v2260
      %v2275 = vpack.c.b16 %v2263, %v2261
      %v2276 = vpack.c.b16 %v2266, %v2264
      %v2277 = vpack.c.b16 %v2267, %v2265
      %v2278 = vpack.c.b16 %v2270, %v2268
      %v2279 = vpack.c.b16 %v2271, %v2269
      %v2289 = vsel %vm1021, %v2227, 0
      %2291 = vmatprep.subr.bf16.mxu0 %v2273
      %2292 = vmatpush1.bf16.msra.mxu0 %v2272
      %2293 = vmatprep.subr.bf16.mxu0 %v2275
      %2294 = vmatpush1.bf16.msra.mxu0 %v2274
      %2295 = vmatprep.subr.bf16.mxu0 %v2277
      %2296 = vmatpush1.bf16.msra.mxu0 %v2276
      %2297 = vmatprep.subr.bf16.mxu0 %v2279
      %2298 = vmatpush1.bf16.msra.mxu0 %v2278
      %2299 = vmatprep.subr.bf16.mxu0 0
      %2300 = vmatpush1.bf16.msra.mxu0 0
      %2301 = vmatprep.subr.bf16.mxu0 0
      %2302 = vmatpush1.bf16.msra.mxu0 0
      %2303 = vmatprep.subr.bf16.mxu0 0
      %2304 = vmatpush1.bf16.msra.mxu0 0
      %2305 = vmatprep.subr.bf16.mxu0 0
      %2306 = vmatpush1.bf16.msra.mxu0 0
      %2307 = vmatprep.subr.bf16.mxu0 0
      %2308 = vmatpush1.bf16.msra.mxu0 0
      %2309 = vmatprep.subr.bf16.mxu0 0
      %2310 = vmatpush1.bf16.msra.mxu0 0
      %2311 = vmatprep.subr.bf16.mxu0 0
      %2312 = vmatpush1.bf16.msra.mxu0 0
      %2313 = vmatprep.subr.bf16.mxu0 0
      %2314 = vmatpush1.bf16.msra.mxu0 0
      %2315 = vmatprep.subr.bf16.mxu0 0
      %2316 = vmatpush1.bf16.msra.mxu0 0
      %2317 = vmatprep.subr.bf16.mxu0 0
      %2318 = vmatpush1.bf16.msra.mxu0 0
      %2319 = vmatprep.subr.bf16.mxu0 0
      %2320 = vmatpush1.bf16.msra.mxu0 0
      %2321 = vmatprep.subr.bf16.mxu0 0
      %2322 = vmatpush1.bf16.msra.mxu0 0
      %2323 = vmatprep.mubr.bf16.mxu0 0
      %2324 = vmatmul.mubr.bf16.gmra.mrb[0].mxu0 %v2289
      %v2325 = vpop.f32.mrb[0].mxu0
      %v2326 = vadd.f32 %v2241, %v2325
      %v2327 = vpop.f32.mrb[0].mxu0
      %v2328 = vadd.f32 %v2245, %v2327
      %v2329 = vpop.f32.mrb[0].mxu0
      %v2330 = vpop.f32.mrb[0].mxu0
      %2331 = vdwg.mxu0
      %v2332 = vmul.f32 %v2326, 0.5
      %v2333 = vmul.f32 %v2328, 0.5
      %v2334 = vmul.f32 %v2326, 0.044715
      %v2335 = vmul.f32 %v2328, 0.044715
      %v2336 = vmul.f32 %v2334, %v2326
      %v2337 = vmul.f32 %v2335, %v2328
      %v2338 = vmul.f32 %v2336, %v2326
      %v2339 = vmul.f32 %v2337, %v2328
      %v2340 = vadd.f32 %v2326, %v2338
      %v2341 = vadd.f32 %v2328, %v2339
      %v2342 = vmul.f32 %v2340, 0.7978846
      %v2343 = vmul.f32 %v2341, 0.7978846
      %v2344 = vtanh.pop %v2342
      %v2345 = vtanh.pop %v2343
      %v2346 = vadd.f32 %v2344, 1.0
      %v2347 = vadd.f32 %v2345, 1.0
      %v2348 = vmul.f32 %v2332, %v2346
      %v2349 = vmul.f32 %v2333, %v2347
      %v2350 = vpack.c.bf16 %v2348, %v2348
      %v2351 = vpack.c.bf16 %v2349, %v2349
      %v2352 = vld [vmem:[%s903] sm:$0xf]
      %v2353 = vld [vmem:[%s903 + $0x4] sm:$0xf]
      %v2354 = vld [vmem:[%s903 + $0x8] sm:$0xf]
      %v2355 = vld [vmem:[%s903 + $0xc] sm:$0xf]
      %v2356 = vld [vmem:[%s903 + $0x10] sm:$0xf]
      %v2357 = vld [vmem:[%s903 + $0x14] sm:$0xf]
      %v2358 = vld [vmem:[%s903 + $0x18] sm:$0xf]
      %v2359 = vld [vmem:[%s903 + $0x1c] sm:$0xf]
      %v2360 = vld [vmem:[%s903 + $0x20] sm:$0xf]
      %v2361 = vld [vmem:[%s903 + $0x24] sm:$0xf]
      %v2362 = vld [vmem:[%s903 + $0x28] sm:$0xf]
      %v2363 = vld [vmem:[%s903 + $0x2c] sm:$0xf]
      %v2364 = vld [vmem:[%s903 + $0x30] sm:$0xf]
      %v2365 = vld [vmem:[%s903 + $0x34] sm:$0xf]
      %v2366 = vld [vmem:[%s903 + $0x38] sm:$0xf]
      %v2367 = vld [vmem:[%s903 + $0x3c] sm:$0xf]
      %v2368 = vld [vmem:[%s903 + $0x40] sm:$0xf]
      %v2369 = vld [vmem:[%s903 + $0x44] sm:$0xf]
      %v2370 = vld [vmem:[%s903 + $0x48] sm:$0xf]
      %v2371 = vld [vmem:[%s903 + $0x4c] sm:$0xf]
      %v2372 = vld [vmem:[%s903 + $0x50] sm:$0xf]
      %v2373 = vld [vmem:[%s903 + $0x54] sm:$0xf]
      %v2374 = vld [vmem:[%s903 + $0x58] sm:$0xf]
      %v2375 = vld [vmem:[%s903 + $0x5c] sm:$0xf]
      %v2376 = vld [vmem:[%s903 + $0x60] sm:$0xf]
      %v2377 = vld [vmem:[%s903 + $0x64] sm:$0xf]
      %v2378 = vld [vmem:[%s903 + $0x68] sm:$0xf]
      %v2379 = vld [vmem:[%s903 + $0x6c] sm:$0xf]
      %v2380 = vld [vmem:[%s903 + $0x70] sm:$0xf]
      %v2381 = vld [vmem:[%s903 + $0x74] sm:$0xf]
      %v2382 = vld [vmem:[%s903 + $0x78] sm:$0xf]
      %v2383 = vld [vmem:[%s903 + $0x7c] sm:$0xf]
      %v2416 = vunpack.c.l.b16 %v2352
      %v2417 = vunpack.c.l.b16 %v2353
      %v2418 = vunpack.c.l.b16 %v2354
      %v2419 = vunpack.c.l.b16 %v2355
      %v2420 = vunpack.c.l.b16 %v2356
      %v2421 = vunpack.c.l.b16 %v2357
      %v2422 = vunpack.c.l.b16 %v2358
      %v2423 = vunpack.c.l.b16 %v2359
      %v2424 = vunpack.c.l.b16 %v2360
      %v2425 = vunpack.c.l.b16 %v2361
      %v2426 = vunpack.c.l.b16 %v2362
      %v2427 = vunpack.c.l.b16 %v2363
      %v2428 = vunpack.c.l.b16 %v2364
      %v2429 = vunpack.c.l.b16 %v2365
      %v2430 = vunpack.c.l.b16 %v2366
      %v2431 = vunpack.c.l.b16 %v2367
      %v2432 = vunpack.c.l.b16 %v2368
      %v2433 = vunpack.c.l.b16 %v2369
      %v2434 = vunpack.c.l.b16 %v2370
      %v2435 = vunpack.c.l.b16 %v2371
      %v2436 = vunpack.c.l.b16 %v2372
      %v2437 = vunpack.c.l.b16 %v2373
      %v2438 = vunpack.c.l.b16 %v2374
      %v2439 = vunpack.c.l.b16 %v2375
      %v2440 = vunpack.c.l.b16 %v2376
      %v2441 = vunpack.c.l.b16 %v2377
      %v2442 = vunpack.c.l.b16 %v2378
      %v2443 = vunpack.c.l.b16 %v2379
      %v2444 = vunpack.c.l.b16 %v2380
      %v2445 = vunpack.c.l.b16 %v2381
      %v2446 = vunpack.c.l.b16 %v2382
      %v2447 = vunpack.c.l.b16 %v2383
      %v2448 = vpack.c.b16 %v2417, %v2416
      %v2449 = vpack.c.b16 %v2419, %v2418
      %v2450 = vpack.c.b16 %v2421, %v2420
      %v2451 = vpack.c.b16 %v2423, %v2422
      %v2452 = vpack.c.b16 %v2425, %v2424
      %v2453 = vpack.c.b16 %v2427, %v2426
      %v2454 = vpack.c.b16 %v2429, %v2428
      %v2455 = vpack.c.b16 %v2431, %v2430
      %v2456 = vpack.c.b16 %v2433, %v2432
      %v2457 = vpack.c.b16 %v2435, %v2434
      %v2458 = vpack.c.b16 %v2437, %v2436
      %v2459 = vpack.c.b16 %v2439, %v2438
      %v2460 = vpack.c.b16 %v2441, %v2440
      %v2461 = vpack.c.b16 %v2443, %v2442
      %v2462 = vpack.c.b16 %v2445, %v2444
      %v2463 = vpack.c.b16 %v2447, %v2446
      %2480 = vmatprep.subr.bf16.mxu0 0
      %2481 = vmatpush1.bf16.msra.mxu0 %v2448
      %2482 = vmatprep.subr.bf16.mxu0 0
      %2483 = vmatpush1.bf16.msra.mxu0 %v2449
      %2484 = vmatprep.subr.bf16.mxu0 0
      %2485 = vmatpush1.bf16.msra.mxu0 %v2450
      %2486 = vmatprep.subr.bf16.mxu0 0
      %2487 = vmatpush1.bf16.msra.mxu0 %v2451
      %2488 = vmatprep.subr.bf16.mxu0 0
      %2489 = vmatpush1.bf16.msra.mxu0 %v2452
      %2490 = vmatprep.subr.bf16.mxu0 0
      %2491 = vmatpush1.bf16.msra.mxu0 %v2453
      %2492 = vmatprep.subr.bf16.mxu0 0
      %2493 = vmatpush1.bf16.msra.mxu0 %v2454
      %2494 = vmatprep.subr.bf16.mxu0 0
      %2495 = vmatpush1.bf16.msra.mxu0 %v2455
      %2496 = vmatprep.subr.bf16.mxu0 0
      %2497 = vmatpush1.bf16.msra.mxu0 %v2456
      %2498 = vmatprep.subr.bf16.mxu0 0
      %2499 = vmatpush1.bf16.msra.mxu0 %v2457
      %2500 = vmatprep.subr.bf16.mxu0 0
      %2501 = vmatpush1.bf16.msra.mxu0 %v2458
      %2502 = vmatprep.subr.bf16.mxu0 0
      %2503 = vmatpush1.bf16.msra.mxu0 %v2459
      %2504 = vmatprep.subr.bf16.mxu0 0
      %2505 = vmatpush1.bf16.msra.mxu0 %v2460
      %2506 = vmatprep.subr.bf16.mxu0 0
      %2507 = vmatpush1.bf16.msra.mxu0 %v2461
      %2508 = vmatprep.subr.bf16.mxu0 0
      %2509 = vmatpush1.bf16.msra.mxu0 %v2462
      %2510 = vmatprep.subr.bf16.mxu0 0
      %2511 = vmatpush1.bf16.msra.mxu0 %v2463
      %2512 = vmatprep.mubr.bf16.mxu0 %v2351
      %2513 = vmatmul.mubr.bf16.gmra.mrb[0].mxu0 %v2350
      %v2514 = vpop.f32.mrb[0].mxu0
      %v2515 = vadd.f32 0.0, %v2514
      %v2516 = vpop.f32.mrb[0].mxu0
      %v2517 = vpop.f32.mrb[0].mxu0
      %v2518 = vpop.f32.mrb[0].mxu0
      %2519 = vdwg.mxu0
      %v2520 = vadd.f32 %v2197, %v2515
      %v2521 = vld [vmem:[%s906] sm:$0x1]
      %v2523 = vlaneseq
      %v2524 = vshrl.u32 %v2523, 7
      %v2525 = vsub.s32 0, %v2524
      %v2526 = vrot.slane %v2521, %v2525
      %v2528 = vadd.f32 %v2520, %v2526
      %p2529 = scmp.lt.s32.totalorder %s36, 5
      // Predicated region
      $region105: #{model_forward.6} parent=99 // pred_check
        %p2530 = pneg %p2529
      $region106: #{model_forward.6} parent=99 // pred_check_branch
        %2532 = sbr.rel (%p2530) target = $region108
      $region107: #{model_forward.6} parent=99 // pred_region
        %2533 = vst.msk [vmem:[%s910] sm:$0x1f] %vm923, %v2528
      $region108: #{model_forward.6} parent=99 // pred_fallthru
        _
      %p2534 = scmp.eq.s32.totalorder %s36, 5
      // Predicated region
      $region109: #{model_forward.6} parent=99 // pred_check
        %p2535 = pneg %p2534
      $region110: #{model_forward.6} parent=99 // pred_check_branch
        %2537 = sbr.rel (%p2535) target = $region112
      $region111: #{model_forward.6} parent=99 // pred_region
        %v2538 = vld [vmem:[%s18] sm:$0x1]
        %v2539 = vld [vmem:[%s19] sm:$0x1]
        %v2540 = vsel %vm923, %v2528, 0.0
        %2541 = vadd.xlane.f32.xlu0 %v2540
        %v2542 = vpop.xlane.xlu0 %2541
        %v2543 = vmul.f32 %v2542, %v927
        %v2544 = vsub.f32 %v2528, %v2543
        %v2545 = vmul.f32 %v2544, %v2544
        %v2546 = vsel %vm923, %v2545, 0.0
        %2547 = vadd.xlane.f32.xlu0 %v2546
        %v2548 = vpop.xlane.xlu0 %2547
        %v2549 = vmul.f32 %v2548, %v927
        %v2550 = vadd.f32 %v2549, 1e-06
        %v2551 = vrsqrt.pop %v2550
        %v2552 = vmul.f32 %v2544, %v2551
        %v2554 = vlaneseq
        %v2555 = vshrl.u32 %v2554, 7
        %v2556 = vsub.s32 0, %v2555
        %v2557 = vrot.slane %v2538, %v2556
        %v2559 = vmul.f32 %v2552, %v2557
        %v2561 = vlaneseq
        %v2562 = vshrl.u32 %v2561, 7
        %v2563 = vsub.s32 0, %v2562
        %v2564 = vrot.slane %v2539, %v2563
        %v2566 = vadd.f32 %v2559, %v2564
        %2567 = vst.msk [vmem:[%s910] sm:$0x1f] %vm923, %v2566
      $region112: #{model_forward.6} parent=99 // pred_fallthru
        _
      %p2568 = scmp.lt.s32.totalorder %s35, 1
      %s2569 = scalar_select %p2568, %s35, 1
      %s2570 = smul.addr %s2569, 8
      %s2571 = scalar_lea.vmem %s20, %s2570
      // Predicated region
      $region113: #{model_forward.6} parent=99 // pred_check
        %p2572 = pneg %p571
      $region114: #{model_forward.6} parent=99 // pred_check_branch
        %2574 = sbr.rel (%p2572) target = $region116
      $region115: #{model_forward.6} parent=99 // pred_region
        _
      $region116: #{model_forward.6} parent=99 // pred_fallthru
        _
    $region100: #{model_forward.6} parent=5 // pred_fallthru
      _
    %p2575 = scmp.le.s32.totalorder 2, %s26
    // Predicated region
    $region117: #{model_forward.6} parent=5 // pred_check
      %p2576 = pneg %p2575
    $region118: #{model_forward.6} parent=5 // pred_check_branch
      %2578 = sbr.rel (%p2576) target = $region120
    $region119: #{model_forward.6} parent=5 // pred_region
      %s2579 = ssub.s32 %s26, 2
      // Predicated region
      $region121: #{model_forward.6} parent=119 // pred_check
        %p2580 = pneg %p577
      $region122: #{model_forward.6} parent=119 // pred_check_branch
        %2582 = sbr.rel (%p2580) target = $region124
      $region123: #{model_forward.6} parent=119 // pred_region
        %p2583 = scmp.lt.s32.totalorder %s37, 1
        %s2584 = scalar_select %p2583, %s37, 1
        %s2585 = smul.addr %s2584, 8
        %s2586 = scalar_lea.vmem %s20, %s2585
      $region124: #{model_forward.6} parent=119 // pred_fallthru
        _
    $region120: #{model_forward.6} parent=5 // pred_fallthru
      _
  $region6: #{model_forward.6} parent=0 // loop_footer
    %s30 = sadd.s32 1, %s26
  $region7: #{model_forward.6} parent=0 // loop_footer_branch
    %25 = sbr.rel target = $region3
  $region8: #{model_forward.6} parent=0 // loop_exit
    _

</llo_original>
